<compile_context>
chip_gen: v6e
topology: v6e:2x2x1
jax: 0.10.0
libtpu: 0.0.40
codegen_flags: <defaults>
</compile_context>

<pallas_src>
import math

import jax
import jax.numpy as jnp
from jax.experimental import pallas as pl
from jax.experimental.pallas import tpu as pltpu  # noqa: F401  (TPU backend assumed)

# ---------------- small synthetic CLIP-ViT config ----------------
BATCH = 2
IN_CH = 3
IMAGE = 32
PATCH = 16
GRID = IMAGE // PATCH               # 2
N_PATCH = GRID * GRID               # 4 patches / image
SEQ = N_PATCH + 1                   # 5 tokens / image (patches + CLS)
WIDTH = 32                          # transformer width
HEADS = 4
HEAD_DIM = WIDTH // HEADS           # 8
MLP_DIM = WIDTH * 4                 # 128
LAYERS = 2
OUT_DIM = 16                        # image-embedding dim (proj)
EPS = 1e-5

PATCH_ROWS = BATCH * N_PATCH        # 8 patch-token rows
ROWS = BATCH * SEQ                  # 10 rows; layout = [patch rows | CLS rows]
PATCH_DIM = IN_CH * PATCH * PATCH   # 768
MM_DTYPE = jnp.bfloat16             # MXU operand dtype (f32 accumulation)


# ---------------- in-kernel helpers ----------------
def _mm(a, b):
    """a @ b on the MXU, bf16 operands, f32 accumulation."""
    return jnp.dot(a.astype(MM_DTYPE), b.astype(MM_DTYPE),
                   preferred_element_type=jnp.float32)


def _mm_t(a, b):
    """a @ b.T (contract last dims) without materializing a transpose."""
    return jax.lax.dot_general(
        a.astype(MM_DTYPE), b.astype(MM_DTYPE),
        dimension_numbers=(((1,), (1,)), ((), ())),
        preferred_element_type=jnp.float32)


def _layernorm(x, g, b):
    """LayerNorm over the last axis with independent E[x], E[x^2] reductions."""
    m1 = jnp.mean(x, axis=-1, keepdims=True)
    m2 = jnp.mean(x * x, axis=-1, keepdims=True)
    var = m2 - m1 * m1
    return (x - m1) * jax.lax.rsqrt(var + EPS) * g + b


# ---------------- single fused ViT kernel (no grid) ----------------
def _vit_kernel(patches_ref, convw_ref, tokbase_ref, mask_ref, hmask_ref,
                lnpre_ref, lnpost_ref, projw_ref,
                ln_ref, wqkv_ref, bqkv_ref, wout_ref, bout_ref,
                wfc_ref, bfc_ref, wcp_ref, bcp_ref,
                out_ref):
    # ---- patch embedding (conv-as-matmul, no bias). The CLS rows of `patches`
    # are zero, so `tok_base + emb` builds every token row exactly in f32. ----
    emb = _mm(patches_ref[...], convw_ref[...])                    # (ROWS, W)
    x = tokbase_ref[...] + emb
    x = _layernorm(x, lnpre_ref[0:1, :], lnpre_ref[1:2, :])

    mask = mask_ref[...]                                           # (ROWS, ROWS) additive

    for l in range(LAYERS):                                        # static unroll; weights VMEM-resident
        ln = ln_ref[l]                                             # (4, W): ln1_g, ln1_b, ln2_g, ln2_b

        # ---- attention branch: x += out_proj(MHA(ln_1(x))) ----
        h = _layernorm(x, ln[0:1, :], ln[1:2, :])
        qkv = _mm(h, wqkv_ref[l]) + bqkv_ref[l]                    # (ROWS, 3W); Q pre-scaled in wrapper
        q = qkv[:, 0:WIDTH]
        k = qkv[:, WIDTH:2 * WIDTH]
        v = qkv[:, 2 * WIDTH:3 * WIDTH]

        # per-head scores stacked on a leading axis -> ONE softmax for all heads
        s = jnp.stack(
            [_mm_t(q[:, hd * HEAD_DIM:(hd + 1) * HEAD_DIM],
                   k[:, hd * HEAD_DIM:(hd + 1) * HEAD_DIM])
             for hd in range(HEADS)], axis=0)                      # (HEADS, ROWS, ROWS)
        s = s + mask
        s = s - jnp.max(s, axis=-1, keepdims=True)
        p = jnp.exp(s)
        p = p * pl.reciprocal(jnp.sum(p, axis=-1, keepdims=True), approx=True)

        # recombine head outputs into (ROWS, WIDTH) with constant column masks
        # (no concats, no in-kernel slicing of w_out), then ONE K=W out-proj matmul.
        attn = _mm(p[0], v) * hmask_ref[0]
        for hd in range(1, HEADS):
            attn = attn + _mm(p[hd], v) * hmask_ref[hd]
        x = x + _mm(attn, wout_ref[l]) + bout_ref[l]

        # ---- MLP branch: x += c_proj(QuickGELU(fc(ln_2(x)))) ----
        h2 = _layernorm(x, ln[2:3, :], ln[3:4, :])
        mid = _mm(h2, wfc_ref[l]) + bfc_ref[l]                     # (ROWS, MLP_DIM)
        mid = mid * jax.nn.sigmoid(1.702 * mid)                    # QuickGELU (f32)
        x = x + _mm(mid, wcp_ref[l]) + bcp_ref[l]

    # ---- ln_post on CLS rows (last BATCH rows) + output projection ----
    cls_x = _layernorm(x[PATCH_ROWS:ROWS, :], lnpost_ref[0:1, :], lnpost_ref[1:2, :])
    out_ref[...] = _mm(cls_x, projw_ref[...]).astype(out_ref.dtype)


# ---------------- parameter initialization (deterministic, synthetic) ----------------
def init_params(key):
    def nrm(k, shape, scale=0.02):
        return scale * jax.random.normal(k, shape, dtype=jnp.float32)

    keys = iter(jax.random.split(key, 8 + LAYERS * 10))
    params = {
        "conv_w": nrm(next(keys), (WIDTH, IN_CH, PATCH, PATCH)),   # conv1 weight (no bias)
        "class_emb": nrm(next(keys), (WIDTH,)),
        "pos_emb": nrm(next(keys), (SEQ, WIDTH)),
        "ln_pre_g": jnp.ones((WIDTH,), jnp.float32),
        "ln_pre_b": jnp.zeros((WIDTH,), jnp.float32),
        "ln_post_g": jnp.ones((WIDTH,), jnp.float32),
        "ln_post_b": jnp.zeros((WIDTH,), jnp.float32),
        "proj": nrm(next(keys), (WIDTH, OUT_DIM)),
        "layers": [],
    }
    for _ in range(LAYERS):
        lyr = {
            "ln1_g": jnp.ones((WIDTH,), jnp.float32),
            "ln1_b": jnp.zeros((WIDTH,), jnp.float32),
            "attn_in_w": nrm(next(keys), (WIDTH, 3 * WIDTH)),      # (in, out); [q|k|v]
            "attn_in_b": nrm(next(keys), (3 * WIDTH,)),
            "attn_out_w": nrm(next(keys), (WIDTH, WIDTH)),
            "attn_out_b": nrm(next(keys), (WIDTH,)),
            "ln2_g": jnp.ones((WIDTH,), jnp.float32),
            "ln2_b": jnp.zeros((WIDTH,), jnp.float32),
            "fc_w": nrm(next(keys), (WIDTH, MLP_DIM)),
            "fc_b": nrm(next(keys), (MLP_DIM,)),
            "cproj_w": nrm(next(keys), (MLP_DIM, WIDTH)),
            "cproj_b": nrm(next(keys), (WIDTH,)),
        }
        params["layers"].append(lyr)
    return params


# ---------------- forward pass (one grid-less pallas_call) ----------------
def encode_image(images, params):
    """images: NCHW float32 [B, C, H, W] -> [B, OUT_DIM]"""
    B = images.shape[0]

    # non-overlapping patch extraction, flattened in (c, u, v) order (conv-as-matmul);
    # zero-pad with one row per CLS token so the kernel needs no scatter.
    x = images.reshape(B, IN_CH, GRID, PATCH, GRID, PATCH)
    x = jnp.transpose(x, (0, 2, 4, 1, 3, 5))                       # (B, gh, gw, C, P, P)
    patches = x.reshape(B * N_PATCH, PATCH_DIM)
    patches = jnp.concatenate(
        [patches, jnp.zeros((B, PATCH_DIM), patches.dtype)], axis=0)
    patches = patches.astype(MM_DTYPE)                              # bf16 pre-cast (MXU operand)
    conv_w = params["conv_w"].reshape(WIDTH, PATCH_DIM).T.astype(MM_DTYPE)

    # token-row base: [patch rows: pos_emb[1..N]] ++ [CLS rows: class_emb + pos_emb[0]]
    pat_base = jnp.tile(params["pos_emb"][1:, :], (B, 1))           # (B*NP, W)
    cls_base = jnp.tile(params["class_emb"][None, :] + params["pos_emb"][0:1, :], (B, 1))
    tok_base = jnp.concatenate([pat_base, cls_base], axis=0)        # (ROWS, W) f32

    # additive block-diagonal mask: tokens attend only within their own image
    r = jnp.arange(ROWS)
    img = jnp.where(r < PATCH_ROWS, r // N_PATCH, r - PATCH_ROWS)
    mask = jnp.where(img[:, None] == img[None, :], 0.0, -1e30).astype(jnp.float32)

    # constant per-head column masks used to recombine head outputs without concats
    hmask = (jnp.arange(WIDTH)[None, :] // HEAD_DIM ==
             jnp.arange(HEADS)[:, None]).astype(jnp.float32)[:, None, :]   # (H, 1, W)

    ln_pre = jnp.stack([params["ln_pre_g"], params["ln_pre_b"]])     # (2, W)
    ln_post = jnp.stack([params["ln_post_g"], params["ln_post_b"]])
    proj = params["proj"].astype(MM_DTYPE)

    # stack per-layer weights along a leading LAYERS axis; bf16 for MXU operands,
    # f32 for biases / LN params; fold 1/sqrt(head_dim) into the Q projection.
    scale = 1.0 / math.sqrt(HEAD_DIM)
    lyrs = params["layers"]
    ln_stack = jnp.stack(
        [jnp.stack([l["ln1_g"], l["ln1_b"], l["ln2_g"], l["ln2_b"]]) for l in lyrs])
    w_qkv = jnp.stack(
        [jnp.concatenate([l["attn_in_w"][:, :WIDTH] * scale,
                          l["attn_in_w"][:, WIDTH:]], axis=1)
         for l in lyrs]).astype(MM_DTYPE)                            # (L, W, 3W)
    b_qkv = jnp.stack(
        [jnp.concatenate([l["attn_in_b"][:WIDTH] * scale, l["attn_in_b"][WIDTH:]])
         for l in lyrs])[:, None, :]                                 # (L, 1, 3W) f32
    w_out = jnp.stack([l["attn_out_w"] for l in lyrs]).astype(MM_DTYPE)
    b_out = jnp.stack([l["attn_out_b"] for l in lyrs])[:, None, :]
    w_fc = jnp.stack([l["fc_w"] for l in lyrs]).astype(MM_DTYPE)
    b_fc = jnp.stack([l["fc_b"] for l in lyrs])[:, None, :]
    w_cp = jnp.stack([l["cproj_w"] for l in lyrs]).astype(MM_DTYPE)
    b_cp = jnp.stack([l["cproj_b"] for l in lyrs])[:, None, :]

    # Single invocation, no grid: every operand is a whole-array VMEM block
    # (total < 200 KB — far under the scoped-VMEM default on v5e/v6e/v7x).
    return pl.pallas_call(
        _vit_kernel,
        out_shape=jax.ShapeDtypeStruct((B, OUT_DIM), jnp.float32),
    )(patches, conv_w, tok_base, mask, hmask, ln_pre, ln_post, proj,
      ln_stack, w_qkv, b_qkv, w_out, b_out, w_fc, b_fc, w_cp, b_cp)


# ---------------- main ----------------
if __name__ == "__main__":
    key = jax.random.PRNGKey(0)
    k_img, k_par = jax.random.split(key)
    images = jax.random.normal(k_img, (BATCH, IN_CH, IMAGE, IMAGE), dtype=jnp.float32)
    params = init_params(k_par)

    # TODO(synk): clip.load / checkpoint IO / train-vs-val preprocessing have no Pallas
    # equivalent; deterministic synthetic parameters are used instead.
    fwd = jax.jit(encode_image)
    out = fwd(images, params)
    jax.block_until_ready(out)
    assert out.shape == (BATCH, OUT_DIM) and out.dtype == jnp.float32
    assert bool(jnp.all(jnp.isfinite(out)))
    print("KERNEL_OK")
</pallas_src>

<mosaic_0001>
module attributes {stable_mosaic.version = 11 : i64} {
  func.func @_vit_kernel(%arg0: memref<10x768xbf16, #tpu.memory_space<vmem>>, %arg1: memref<768x32xbf16, #tpu.memory_space<vmem>>, %arg2: memref<10x32xf32, #tpu.memory_space<vmem>>, %arg3: memref<10x10xf32, #tpu.memory_space<vmem>>, %arg4: memref<4x1x32xf32, #tpu.memory_space<vmem>>, %arg5: memref<2x32xf32, #tpu.memory_space<vmem>>, %arg6: memref<2x32xf32, #tpu.memory_space<vmem>>, %arg7: memref<32x16xbf16, #tpu.memory_space<vmem>>, %arg8: memref<2x4x32xf32, #tpu.memory_space<vmem>>, %arg9: memref<2x32x96xbf16, #tpu.memory_space<vmem>>, %arg10: memref<2x1x96xf32, #tpu.memory_space<vmem>>, %arg11: memref<2x32x32xbf16, #tpu.memory_space<vmem>>, %arg12: memref<2x1x32xf32, #tpu.memory_space<vmem>>, %arg13: memref<2x32x128xbf16, #tpu.memory_space<vmem>>, %arg14: memref<2x1x128xf32, #tpu.memory_space<vmem>>, %arg15: memref<2x128x32xbf16, #tpu.memory_space<vmem>>, %arg16: memref<2x1x32xf32, #tpu.memory_space<vmem>>, %arg17: memref<2x16xf32, #tpu.memory_space<vmem>>) attributes {dimension_semantics = [], scalar_prefetch = 0 : i64, scratch_operands = 0 : i64, tpu.core_type = #tpu.core_type<tc>} {
    %c0 = arith.constant 0 : index
    %c0_0 = arith.constant 0 : index
    %0 = vector.load %arg0[%c0, %c0_0] : memref<10x768xbf16, #tpu.memory_space<vmem>>, vector<10x768xbf16>
    %c0_1 = arith.constant 0 : index
    %c0_2 = arith.constant 0 : index
    %1 = vector.load %arg1[%c0_1, %c0_2] : memref<768x32xbf16, #tpu.memory_space<vmem>>, vector<768x32xbf16>
    %cst = arith.constant dense<0.000000e+00> : vector<10x32xf32>
    %2 = tpu.matmul %0, %1, %cst {dimension_numbers = #tpu.dot_dimension_numbers<[1], [0], [0], [1], [0, 0, 1, 1], [], []>} : vector<10x768xbf16>, vector<768x32xbf16>, vector<10x32xf32> -> vector<10x32xf32>
    %c0_3 = arith.constant 0 : index
    %c0_4 = arith.constant 0 : index
    %3 = vector.load %arg2[%c0_3, %c0_4] : memref<10x32xf32, #tpu.memory_space<vmem>>, vector<10x32xf32>
    %4 = arith.addf %3, %2 : vector<10x32xf32>
    %c0_5 = arith.constant 0 : index
    %c0_6 = arith.constant 0 : index
    %5 = vector.load %arg5[%c0_5, %c0_6] : memref<2x32xf32, #tpu.memory_space<vmem>>, vector<1x32xf32>
    %c1 = arith.constant 1 : index
    %c0_7 = arith.constant 0 : index
    %6 = vector.load %arg5[%c1, %c0_7] : memref<2x32xf32, #tpu.memory_space<vmem>>, vector<1x32xf32>
    %cst_8 = arith.constant dense<0.000000e+00> : vector<10xf32>
    %7 = vector.multi_reduction <add>, %4, %cst_8 [1] : vector<10x32xf32> to vector<10xf32>
    %8 = vector.shape_cast %7 : vector<10xf32> to vector<10x1xf32>
    %cst_9 = arith.constant 3.200000e+01 : f32
    %9 = vector.broadcast %cst_9 : f32 to vector<10x1xf32>
    %10 = arith.divf %8, %9 : vector<10x1xf32>
    %11 = arith.mulf %4, %4 : vector<10x32xf32>
    %cst_10 = arith.constant dense<0.000000e+00> : vector<10xf32>
    %12 = vector.multi_reduction <add>, %11, %cst_10 [1] : vector<10x32xf32> to vector<10xf32>
    %13 = vector.shape_cast %12 : vector<10xf32> to vector<10x1xf32>
    %cst_11 = arith.constant 3.200000e+01 : f32
    %14 = vector.broadcast %cst_11 : f32 to vector<10x1xf32>
    %15 = arith.divf %13, %14 : vector<10x1xf32>
    %16 = arith.mulf %10, %10 : vector<10x1xf32>
    %17 = arith.subf %15, %16 : vector<10x1xf32>
    %18 = vector.broadcast %10 : vector<10x1xf32> to vector<10x32xf32>
    %19 = arith.subf %4, %18 : vector<10x32xf32>
    %cst_12 = arith.constant 9.99999974E-6 : f32
    %20 = vector.broadcast %cst_12 : f32 to vector<10x1xf32>
    %21 = arith.addf %17, %20 : vector<10x1xf32>
    %22 = math.rsqrt %21 : vector<10x1xf32>
    %23 = vector.broadcast %22 : vector<10x1xf32> to vector<10x32xf32>
    %24 = arith.mulf %19, %23 : vector<10x32xf32>
    %25 = vector.broadcast %5 : vector<1x32xf32> to vector<10x32xf32>
    %26 = arith.mulf %24, %25 : vector<10x32xf32>
    %27 = vector.broadcast %6 : vector<1x32xf32> to vector<10x32xf32>
    %28 = arith.addf %26, %27 : vector<10x32xf32>
    %c0_13 = arith.constant 0 : index
    %c0_14 = arith.constant 0 : index
    %29 = vector.load %arg3[%c0_13, %c0_14] : memref<10x10xf32, #tpu.memory_space<vmem>>, vector<10x10xf32>
    %c0_15 = arith.constant 0 : index
    %c0_16 = arith.constant 0 : index
    %c0_17 = arith.constant 0 : index
    %30 = vector.load %arg8[%c0_15, %c0_16, %c0_17] : memref<2x4x32xf32, #tpu.memory_space<vmem>>, vector<1x4x32xf32>
    %31 = vector.shape_cast %30 : vector<1x4x32xf32> to vector<4x32xf32>
    %32 = vector.extract_strided_slice %31 {offsets = [0, 0], sizes = [1, 32], strides = [1, 1]} : vector<4x32xf32> to vector<1x32xf32>
    %33 = vector.extract_strided_slice %31 {offsets = [1, 0], sizes = [1, 32], strides = [1, 1]} : vector<4x32xf32> to vector<1x32xf32>
    %cst_18 = arith.constant dense<0.000000e+00> : vector<10xf32>
    %34 = vector.multi_reduction <add>, %28, %cst_18 [1] : vector<10x32xf32> to vector<10xf32>
    %35 = vector.shape_cast %34 : vector<10xf32> to vector<10x1xf32>
    %cst_19 = arith.constant 3.200000e+01 : f32
    %36 = vector.broadcast %cst_19 : f32 to vector<10x1xf32>
    %37 = arith.divf %35, %36 : vector<10x1xf32>
    %38 = arith.mulf %28, %28 : vector<10x32xf32>
    %cst_20 = arith.constant dense<0.000000e+00> : vector<10xf32>
    %39 = vector.multi_reduction <add>, %38, %cst_20 [1] : vector<10x32xf32> to vector<10xf32>
    %40 = vector.shape_cast %39 : vector<10xf32> to vector<10x1xf32>
    %cst_21 = arith.constant 3.200000e+01 : f32
    %41 = vector.broadcast %cst_21 : f32 to vector<10x1xf32>
    %42 = arith.divf %40, %41 : vector<10x1xf32>
    %43 = arith.mulf %37, %37 : vector<10x1xf32>
    %44 = arith.subf %42, %43 : vector<10x1xf32>
    %45 = vector.broadcast %37 : vector<10x1xf32> to vector<10x32xf32>
    %46 = arith.subf %28, %45 : vector<10x32xf32>
    %cst_22 = arith.constant 9.99999974E-6 : f32
    %47 = vector.broadcast %cst_22 : f32 to vector<10x1xf32>
    %48 = arith.addf %44, %47 : vector<10x1xf32>
    %49 = math.rsqrt %48 : vector<10x1xf32>
    %50 = vector.broadcast %49 : vector<10x1xf32> to vector<10x32xf32>
    %51 = arith.mulf %46, %50 : vector<10x32xf32>
    %52 = vector.broadcast %32 : vector<1x32xf32> to vector<10x32xf32>
    %53 = arith.mulf %51, %52 : vector<10x32xf32>
    %54 = vector.broadcast %33 : vector<1x32xf32> to vector<10x32xf32>
    %55 = arith.addf %53, %54 : vector<10x32xf32>
    %c0_23 = arith.constant 0 : index
    %c0_24 = arith.constant 0 : index
    %c0_25 = arith.constant 0 : index
    %56 = vector.load %arg9[%c0_23, %c0_24, %c0_25] : memref<2x32x96xbf16, #tpu.memory_space<vmem>>, vector<1x32x96xbf16>
    %57 = vector.shape_cast %56 : vector<1x32x96xbf16> to vector<32x96xbf16>
    %58 = arith.truncf %55 : vector<10x32xf32> to vector<10x32xbf16>
    %cst_26 = arith.constant dense<0.000000e+00> : vector<10x96xf32>
    %59 = tpu.matmul %58, %57, %cst_26 {dimension_numbers = #tpu.dot_dimension_numbers<[1], [0], [0], [1], [0, 0, 1, 1], [], []>} : vector<10x32xbf16>, vector<32x96xbf16>, vector<10x96xf32> -> vector<10x96xf32>
    %c0_27 = arith.constant 0 : index
    %c0_28 = arith.constant 0 : index
    %c0_29 = arith.constant 0 : index
    %60 = vector.load %arg10[%c0_27, %c0_28, %c0_29] : memref<2x1x96xf32, #tpu.memory_space<vmem>>, vector<1x1x96xf32>
    %61 = vector.shape_cast %60 : vector<1x1x96xf32> to vector<1x96xf32>
    %62 = vector.broadcast %61 : vector<1x96xf32> to vector<10x96xf32>
    %63 = arith.addf %59, %62 : vector<10x96xf32>
    %64 = vector.extract_strided_slice %63 {offsets = [0, 0], sizes = [10, 32], strides = [1, 1]} : vector<10x96xf32> to vector<10x32xf32>
    %65 = vector.extract_strided_slice %63 {offsets = [0, 32], sizes = [10, 32], strides = [1, 1]} : vector<10x96xf32> to vector<10x32xf32>
    %66 = vector.extract_strided_slice %63 {offsets = [0, 64], sizes = [10, 32], strides = [1, 1]} : vector<10x96xf32> to vector<10x32xf32>
    %67 = vector.extract_strided_slice %64 {offsets = [0, 0], sizes = [10, 8], strides = [1, 1]} : vector<10x32xf32> to vector<10x8xf32>
    %68 = vector.extract_strided_slice %65 {offsets = [0, 0], sizes = [10, 8], strides = [1, 1]} : vector<10x32xf32> to vector<10x8xf32>
    %69 = arith.truncf %67 : vector<10x8xf32> to vector<10x8xbf16>
    %70 = arith.truncf %68 : vector<10x8xf32> to vector<10x8xbf16>
    %cst_30 = arith.constant dense<0.000000e+00> : vector<10x10xf32>
    %71 = tpu.matmul %69, %70, %cst_30 {dimension_numbers = #tpu.dot_dimension_numbers<[1], [1], [0], [0], [0, 0, 1, 0], [], []>} : vector<10x8xbf16>, vector<10x8xbf16>, vector<10x10xf32> -> vector<10x10xf32>
    %72 = vector.extract_strided_slice %64 {offsets = [0, 8], sizes = [10, 8], strides = [1, 1]} : vector<10x32xf32> to vector<10x8xf32>
    %73 = vector.extract_strided_slice %65 {offsets = [0, 8], sizes = [10, 8], strides = [1, 1]} : vector<10x32xf32> to vector<10x8xf32>
    %74 = arith.truncf %72 : vector<10x8xf32> to vector<10x8xbf16>
    %75 = arith.truncf %73 : vector<10x8xf32> to vector<10x8xbf16>
    %cst_31 = arith.constant dense<0.000000e+00> : vector<10x10xf32>
    %76 = tpu.matmul %74, %75, %cst_31 {dimension_numbers = #tpu.dot_dimension_numbers<[1], [1], [0], [0], [0, 0, 1, 0], [], []>} : vector<10x8xbf16>, vector<10x8xbf16>, vector<10x10xf32> -> vector<10x10xf32>
    %77 = vector.extract_strided_slice %64 {offsets = [0, 16], sizes = [10, 8], strides = [1, 1]} : vector<10x32xf32> to vector<10x8xf32>
    %78 = vector.extract_strided_slice %65 {offsets = [0, 16], sizes = [10, 8], strides = [1, 1]} : vector<10x32xf32> to vector<10x8xf32>
    %79 = arith.truncf %77 : vector<10x8xf32> to vector<10x8xbf16>
    %80 = arith.truncf %78 : vector<10x8xf32> to vector<10x8xbf16>
    %cst_32 = arith.constant dense<0.000000e+00> : vector<10x10xf32>
    %81 = tpu.matmul %79, %80, %cst_32 {dimension_numbers = #tpu.dot_dimension_numbers<[1], [1], [0], [0], [0, 0, 1, 0], [], []>} : vector<10x8xbf16>, vector<10x8xbf16>, vector<10x10xf32> -> vector<10x10xf32>
    %82 = vector.extract_strided_slice %64 {offsets = [0, 24], sizes = [10, 8], strides = [1, 1]} : vector<10x32xf32> to vector<10x8xf32>
    %83 = vector.extract_strided_slice %65 {offsets = [0, 24], sizes = [10, 8], strides = [1, 1]} : vector<10x32xf32> to vector<10x8xf32>
    %84 = arith.truncf %82 : vector<10x8xf32> to vector<10x8xbf16>
    %85 = arith.truncf %83 : vector<10x8xf32> to vector<10x8xbf16>
    %cst_33 = arith.constant dense<0.000000e+00> : vector<10x10xf32>
    %86 = tpu.matmul %84, %85, %cst_33 {dimension_numbers = #tpu.dot_dimension_numbers<[1], [1], [0], [0], [0, 0, 1, 0], [], []>} : vector<10x8xbf16>, vector<10x8xbf16>, vector<10x10xf32> -> vector<10x10xf32>
    %87 = vector.shape_cast %71 : vector<10x10xf32> to vector<1x10x10xf32>
    %88 = vector.shape_cast %76 : vector<10x10xf32> to vector<1x10x10xf32>
    %89 = vector.shape_cast %81 : vector<10x10xf32> to vector<1x10x10xf32>
    %90 = vector.shape_cast %86 : vector<10x10xf32> to vector<1x10x10xf32>
    %91 = tpu.concatenate %87, %88, %89, %90 in 0 : vector<1x10x10xf32>, vector<1x10x10xf32>, vector<1x10x10xf32>, vector<1x10x10xf32> -> vector<4x10x10xf32>
    %92 = vector.shape_cast %29 : vector<10x10xf32> to vector<1x10x10xf32>
    %93 = vector.broadcast %92 : vector<1x10x10xf32> to vector<4x10x10xf32>
    %94 = arith.addf %91, %93 : vector<4x10x10xf32>
    %cst_34 = arith.constant dense<0xFF800000> : vector<4x10xf32>
    %95 = vector.multi_reduction <maximumf>, %94, %cst_34 [2] : vector<4x10x10xf32> to vector<4x10xf32>
    %96 = vector.shape_cast %95 : vector<4x10xf32> to vector<4x10x1xf32>
    %97 = vector.broadcast %96 : vector<4x10x1xf32> to vector<4x10x10xf32>
    %98 = arith.subf %94, %97 : vector<4x10x10xf32>
    %99 = math.exp %98 : vector<4x10x10xf32>
    %cst_35 = arith.constant dense<0.000000e+00> : vector<4x10xf32>
    %100 = vector.multi_reduction <add>, %99, %cst_35 [2] : vector<4x10x10xf32> to vector<4x10xf32>
    %101 = vector.shape_cast %100 : vector<4x10xf32> to vector<4x10x1xf32>
    %102 = tpu.reciprocal %101 {approx = true} : vector<4x10x1xf32> -> vector<4x10x1xf32>
    %103 = vector.broadcast %102 : vector<4x10x1xf32> to vector<4x10x10xf32>
    %104 = arith.mulf %99, %103 : vector<4x10x10xf32>
    %105 = vector.extract_strided_slice %104 {offsets = [0, 0, 0], sizes = [1, 10, 10], strides = [1, 1, 1]} : vector<4x10x10xf32> to vector<1x10x10xf32>
    %106 = vector.shape_cast %105 : vector<1x10x10xf32> to vector<10x10xf32>
    %107 = arith.truncf %106 : vector<10x10xf32> to vector<10x10xbf16>
    %108 = arith.truncf %66 : vector<10x32xf32> to vector<10x32xbf16>
    %cst_36 = arith.constant dense<0.000000e+00> : vector<10x32xf32>
    %109 = tpu.matmul %107, %108, %cst_36 {dimension_numbers = #tpu.dot_dimension_numbers<[1], [0], [0], [1], [0, 0, 1, 1], [], []>} : vector<10x10xbf16>, vector<10x32xbf16>, vector<10x32xf32> -> vector<10x32xf32>
    %c0_37 = arith.constant 0 : index
    %c0_38 = arith.constant 0 : index
    %c0_39 = arith.constant 0 : index
    %110 = vector.load %arg4[%c0_37, %c0_38, %c0_39] : memref<4x1x32xf32, #tpu.memory_space<vmem>>, vector<1x1x32xf32>
    %111 = vector.shape_cast %110 : vector<1x1x32xf32> to vector<1x32xf32>
    %112 = vector.broadcast %111 : vector<1x32xf32> to vector<10x32xf32>
    %113 = arith.mulf %109, %112 : vector<10x32xf32>
    %114 = vector.extract_strided_slice %104 {offsets = [1, 0, 0], sizes = [1, 10, 10], strides = [1, 1, 1]} : vector<4x10x10xf32> to vector<1x10x10xf32>
    %115 = vector.shape_cast %114 : vector<1x10x10xf32> to vector<10x10xf32>
    %116 = arith.truncf %115 : vector<10x10xf32> to vector<10x10xbf16>
    %117 = arith.truncf %66 : vector<10x32xf32> to vector<10x32xbf16>
    %cst_40 = arith.constant dense<0.000000e+00> : vector<10x32xf32>
    %118 = tpu.matmul %116, %117, %cst_40 {dimension_numbers = #tpu.dot_dimension_numbers<[1], [0], [0], [1], [0, 0, 1, 1], [], []>} : vector<10x10xbf16>, vector<10x32xbf16>, vector<10x32xf32> -> vector<10x32xf32>
    %c1_41 = arith.constant 1 : index
    %c0_42 = arith.constant 0 : index
    %c0_43 = arith.constant 0 : index
    %119 = vector.load %arg4[%c1_41, %c0_42, %c0_43] : memref<4x1x32xf32, #tpu.memory_space<vmem>>, vector<1x1x32xf32>
    %120 = vector.shape_cast %119 : vector<1x1x32xf32> to vector<1x32xf32>
    %121 = vector.broadcast %120 : vector<1x32xf32> to vector<10x32xf32>
    %122 = arith.mulf %118, %121 : vector<10x32xf32>
    %123 = arith.addf %113, %122 : vector<10x32xf32>
    %124 = vector.extract_strided_slice %104 {offsets = [2, 0, 0], sizes = [1, 10, 10], strides = [1, 1, 1]} : vector<4x10x10xf32> to vector<1x10x10xf32>
    %125 = vector.shape_cast %124 : vector<1x10x10xf32> to vector<10x10xf32>
    %126 = arith.truncf %125 : vector<10x10xf32> to vector<10x10xbf16>
    %127 = arith.truncf %66 : vector<10x32xf32> to vector<10x32xbf16>
    %cst_44 = arith.constant dense<0.000000e+00> : vector<10x32xf32>
    %128 = tpu.matmul %126, %127, %cst_44 {dimension_numbers = #tpu.dot_dimension_numbers<[1], [0], [0], [1], [0, 0, 1, 1], [], []>} : vector<10x10xbf16>, vector<10x32xbf16>, vector<10x32xf32> -> vector<10x32xf32>
    %c2 = arith.constant 2 : index
    %c0_45 = arith.constant 0 : index
    %c0_46 = arith.constant 0 : index
    %129 = vector.load %arg4[%c2, %c0_45, %c0_46] : memref<4x1x32xf32, #tpu.memory_space<vmem>>, vector<1x1x32xf32>
    %130 = vector.shape_cast %129 : vector<1x1x32xf32> to vector<1x32xf32>
    %131 = vector.broadcast %130 : vector<1x32xf32> to vector<10x32xf32>
    %132 = arith.mulf %128, %131 : vector<10x32xf32>
    %133 = arith.addf %123, %132 : vector<10x32xf32>
    %134 = vector.extract_strided_slice %104 {offsets = [3, 0, 0], sizes = [1, 10, 10], strides = [1, 1, 1]} : vector<4x10x10xf32> to vector<1x10x10xf32>
    %135 = vector.shape_cast %134 : vector<1x10x10xf32> to vector<10x10xf32>
    %136 = arith.truncf %135 : vector<10x10xf32> to vector<10x10xbf16>
    %137 = arith.truncf %66 : vector<10x32xf32> to vector<10x32xbf16>
    %cst_47 = arith.constant dense<0.000000e+00> : vector<10x32xf32>
    %138 = tpu.matmul %136, %137, %cst_47 {dimension_numbers = #tpu.dot_dimension_numbers<[1], [0], [0], [1], [0, 0, 1, 1], [], []>} : vector<10x10xbf16>, vector<10x32xbf16>, vector<10x32xf32> -> vector<10x32xf32>
    %c3 = arith.constant 3 : index
    %c0_48 = arith.constant 0 : index
    %c0_49 = arith.constant 0 : index
    %139 = vector.load %arg4[%c3, %c0_48, %c0_49] : memref<4x1x32xf32, #tpu.memory_space<vmem>>, vector<1x1x32xf32>
    %140 = vector.shape_cast %139 : vector<1x1x32xf32> to vector<1x32xf32>
    %141 = vector.broadcast %140 : vector<1x32xf32> to vector<10x32xf32>
    %142 = arith.mulf %138, %141 : vector<10x32xf32>
    %143 = arith.addf %133, %142 : vector<10x32xf32>
    %c0_50 = arith.constant 0 : index
    %c0_51 = arith.constant 0 : index
    %c0_52 = arith.constant 0 : index
    %144 = vector.load %arg11[%c0_50, %c0_51, %c0_52] : memref<2x32x32xbf16, #tpu.memory_space<vmem>>, vector<1x32x32xbf16>
    %145 = vector.shape_cast %144 : vector<1x32x32xbf16> to vector<32x32xbf16>
    %146 = arith.truncf %143 : vector<10x32xf32> to vector<10x32xbf16>
    %cst_53 = arith.constant dense<0.000000e+00> : vector<10x32xf32>
    %147 = tpu.matmul %146, %145, %cst_53 {dimension_numbers = #tpu.dot_dimension_numbers<[1], [0], [0], [1], [0, 0, 1, 1], [], []>} : vector<10x32xbf16>, vector<32x32xbf16>, vector<10x32xf32> -> vector<10x32xf32>
    %148 = arith.addf %28, %147 : vector<10x32xf32>
    %c0_54 = arith.constant 0 : index
    %c0_55 = arith.constant 0 : index
    %c0_56 = arith.constant 0 : index
    %149 = vector.load %arg12[%c0_54, %c0_55, %c0_56] : memref<2x1x32xf32, #tpu.memory_space<vmem>>, vector<1x1x32xf32>
    %150 = vector.shape_cast %149 : vector<1x1x32xf32> to vector<1x32xf32>
    %151 = vector.broadcast %150 : vector<1x32xf32> to vector<10x32xf32>
    %152 = arith.addf %148, %151 : vector<10x32xf32>
    %153 = vector.extract_strided_slice %31 {offsets = [2, 0], sizes = [1, 32], strides = [1, 1]} : vector<4x32xf32> to vector<1x32xf32>
    %154 = vector.extract_strided_slice %31 {offsets = [3, 0], sizes = [1, 32], strides = [1, 1]} : vector<4x32xf32> to vector<1x32xf32>
    %cst_57 = arith.constant dense<0.000000e+00> : vector<10xf32>
    %155 = vector.multi_reduction <add>, %152, %cst_57 [1] : vector<10x32xf32> to vector<10xf32>
    %156 = vector.shape_cast %155 : vector<10xf32> to vector<10x1xf32>
    %cst_58 = arith.constant 3.200000e+01 : f32
    %157 = vector.broadcast %cst_58 : f32 to vector<10x1xf32>
    %158 = arith.divf %156, %157 : vector<10x1xf32>
    %159 = arith.mulf %152, %152 : vector<10x32xf32>
    %cst_59 = arith.constant dense<0.000000e+00> : vector<10xf32>
    %160 = vector.multi_reduction <add>, %159, %cst_59 [1] : vector<10x32xf32> to vector<10xf32>
    %161 = vector.shape_cast %160 : vector<10xf32> to vector<10x1xf32>
    %cst_60 = arith.constant 3.200000e+01 : f32
    %162 = vector.broadcast %cst_60 : f32 to vector<10x1xf32>
    %163 = arith.divf %161, %162 : vector<10x1xf32>
    %164 = arith.mulf %158, %158 : vector<10x1xf32>
    %165 = arith.subf %163, %164 : vector<10x1xf32>
    %166 = vector.broadcast %158 : vector<10x1xf32> to vector<10x32xf32>
    %167 = arith.subf %152, %166 : vector<10x32xf32>
    %cst_61 = arith.constant 9.99999974E-6 : f32
    %168 = vector.broadcast %cst_61 : f32 to vector<10x1xf32>
    %169 = arith.addf %165, %168 : vector<10x1xf32>
    %170 = math.rsqrt %169 : vector<10x1xf32>
    %171 = vector.broadcast %170 : vector<10x1xf32> to vector<10x32xf32>
    %172 = arith.mulf %167, %171 : vector<10x32xf32>
    %173 = vector.broadcast %153 : vector<1x32xf32> to vector<10x32xf32>
    %174 = arith.mulf %172, %173 : vector<10x32xf32>
    %175 = vector.broadcast %154 : vector<1x32xf32> to vector<10x32xf32>
    %176 = arith.addf %174, %175 : vector<10x32xf32>
    %c0_62 = arith.constant 0 : index
    %c0_63 = arith.constant 0 : index
    %c0_64 = arith.constant 0 : index
    %177 = vector.load %arg13[%c0_62, %c0_63, %c0_64] : memref<2x32x128xbf16, #tpu.memory_space<vmem>>, vector<1x32x128xbf16>
    %178 = vector.shape_cast %177 : vector<1x32x128xbf16> to vector<32x128xbf16>
    %179 = arith.truncf %176 : vector<10x32xf32> to vector<10x32xbf16>
    %cst_65 = arith.constant dense<0.000000e+00> : vector<10x128xf32>
    %180 = tpu.matmul %179, %178, %cst_65 {dimension_numbers = #tpu.dot_dimension_numbers<[1], [0], [0], [1], [0, 0, 1, 1], [], []>} : vector<10x32xbf16>, vector<32x128xbf16>, vector<10x128xf32> -> vector<10x128xf32>
    %c0_66 = arith.constant 0 : index
    %c0_67 = arith.constant 0 : index
    %c0_68 = arith.constant 0 : index
    %181 = vector.load %arg14[%c0_66, %c0_67, %c0_68] : memref<2x1x128xf32, #tpu.memory_space<vmem>>, vector<1x1x128xf32>
    %182 = vector.shape_cast %181 : vector<1x1x128xf32> to vector<1x128xf32>
    %183 = vector.broadcast %182 : vector<1x128xf32> to vector<10x128xf32>
    %184 = arith.addf %180, %183 : vector<10x128xf32>
    %cst_69 = arith.constant 1.702000e+00 : f32
    %185 = vector.broadcast %cst_69 : f32 to vector<10x128xf32>
    %186 = arith.mulf %185, %184 : vector<10x128xf32>
    %187 = arith.negf %186 : vector<10x128xf32>
    %188 = math.exp %187 : vector<10x128xf32>
    %cst_70 = arith.constant 1.000000e+00 : f32
    %189 = vector.broadcast %cst_70 : f32 to vector<10x128xf32>
    %190 = arith.addf %189, %188 : vector<10x128xf32>
    %191 = arith.divf %189, %190 : vector<10x128xf32>
    %192 = arith.mulf %184, %191 : vector<10x128xf32>
    %c0_71 = arith.constant 0 : index
    %c0_72 = arith.constant 0 : index
    %c0_73 = arith.constant 0 : index
    %193 = vector.load %arg15[%c0_71, %c0_72, %c0_73] : memref<2x128x32xbf16, #tpu.memory_space<vmem>>, vector<1x128x32xbf16>
    %194 = vector.shape_cast %193 : vector<1x128x32xbf16> to vector<128x32xbf16>
    %195 = arith.truncf %192 : vector<10x128xf32> to vector<10x128xbf16>
    %cst_74 = arith.constant dense<0.000000e+00> : vector<10x32xf32>
    %196 = tpu.matmul %195, %194, %cst_74 {dimension_numbers = #tpu.dot_dimension_numbers<[1], [0], [0], [1], [0, 0, 1, 1], [], []>} : vector<10x128xbf16>, vector<128x32xbf16>, vector<10x32xf32> -> vector<10x32xf32>
    %197 = arith.addf %152, %196 : vector<10x32xf32>
    %c0_75 = arith.constant 0 : index
    %c0_76 = arith.constant 0 : index
    %c0_77 = arith.constant 0 : index
    %198 = vector.load %arg16[%c0_75, %c0_76, %c0_77] : memref<2x1x32xf32, #tpu.memory_space<vmem>>, vector<1x1x32xf32>
    %199 = vector.shape_cast %198 : vector<1x1x32xf32> to vector<1x32xf32>
    %200 = vector.broadcast %199 : vector<1x32xf32> to vector<10x32xf32>
    %201 = arith.addf %197, %200 : vector<10x32xf32>
    %c1_78 = arith.constant 1 : index
    %c0_79 = arith.constant 0 : index
    %c0_80 = arith.constant 0 : index
    %202 = vector.load %arg8[%c1_78, %c0_79, %c0_80] : memref<2x4x32xf32, #tpu.memory_space<vmem>>, vector<1x4x32xf32>
    %203 = vector.shape_cast %202 : vector<1x4x32xf32> to vector<4x32xf32>
    %204 = vector.extract_strided_slice %203 {offsets = [0, 0], sizes = [1, 32], strides = [1, 1]} : vector<4x32xf32> to vector<1x32xf32>
    %205 = vector.extract_strided_slice %203 {offsets = [1, 0], sizes = [1, 32], strides = [1, 1]} : vector<4x32xf32> to vector<1x32xf32>
    %cst_81 = arith.constant dense<0.000000e+00> : vector<10xf32>
    %206 = vector.multi_reduction <add>, %201, %cst_81 [1] : vector<10x32xf32> to vector<10xf32>
    %207 = vector.shape_cast %206 : vector<10xf32> to vector<10x1xf32>
    %cst_82 = arith.constant 3.200000e+01 : f32
    %208 = vector.broadcast %cst_82 : f32 to vector<10x1xf32>
    %209 = arith.divf %207, %208 : vector<10x1xf32>
    %210 = arith.mulf %201, %201 : vector<10x32xf32>
    %cst_83 = arith.constant dense<0.000000e+00> : vector<10xf32>
    %211 = vector.multi_reduction <add>, %210, %cst_83 [1] : vector<10x32xf32> to vector<10xf32>
    %212 = vector.shape_cast %211 : vector<10xf32> to vector<10x1xf32>
    %cst_84 = arith.constant 3.200000e+01 : f32
    %213 = vector.broadcast %cst_84 : f32 to vector<10x1xf32>
    %214 = arith.divf %212, %213 : vector<10x1xf32>
    %215 = arith.mulf %209, %209 : vector<10x1xf32>
    %216 = arith.subf %214, %215 : vector<10x1xf32>
    %217 = vector.broadcast %209 : vector<10x1xf32> to vector<10x32xf32>
    %218 = arith.subf %201, %217 : vector<10x32xf32>
    %cst_85 = arith.constant 9.99999974E-6 : f32
    %219 = vector.broadcast %cst_85 : f32 to vector<10x1xf32>
    %220 = arith.addf %216, %219 : vector<10x1xf32>
    %221 = math.rsqrt %220 : vector<10x1xf32>
    %222 = vector.broadcast %221 : vector<10x1xf32> to vector<10x32xf32>
    %223 = arith.mulf %218, %222 : vector<10x32xf32>
    %224 = vector.broadcast %204 : vector<1x32xf32> to vector<10x32xf32>
    %225 = arith.mulf %223, %224 : vector<10x32xf32>
    %226 = vector.broadcast %205 : vector<1x32xf32> to vector<10x32xf32>
    %227 = arith.addf %225, %226 : vector<10x32xf32>
    %c1_86 = arith.constant 1 : index
    %c0_87 = arith.constant 0 : index
    %c0_88 = arith.constant 0 : index
    %228 = vector.load %arg9[%c1_86, %c0_87, %c0_88] : memref<2x32x96xbf16, #tpu.memory_space<vmem>>, vector<1x32x96xbf16>
    %229 = vector.shape_cast %228 : vector<1x32x96xbf16> to vector<32x96xbf16>
    %230 = arith.truncf %227 : vector<10x32xf32> to vector<10x32xbf16>
    %cst_89 = arith.constant dense<0.000000e+00> : vector<10x96xf32>
    %231 = tpu.matmul %230, %229, %cst_89 {dimension_numbers = #tpu.dot_dimension_numbers<[1], [0], [0], [1], [0, 0, 1, 1], [], []>} : vector<10x32xbf16>, vector<32x96xbf16>, vector<10x96xf32> -> vector<10x96xf32>
    %c1_90 = arith.constant 1 : index
    %c0_91 = arith.constant 0 : index
    %c0_92 = arith.constant 0 : index
    %232 = vector.load %arg10[%c1_90, %c0_91, %c0_92] : memref<2x1x96xf32, #tpu.memory_space<vmem>>, vector<1x1x96xf32>
    %233 = vector.shape_cast %232 : vector<1x1x96xf32> to vector<1x96xf32>
    %234 = vector.broadcast %233 : vector<1x96xf32> to vector<10x96xf32>
    %235 = arith.addf %231, %234 : vector<10x96xf32>
    %236 = vector.extract_strided_slice %235 {offsets = [0, 0], sizes = [10, 32], strides = [1, 1]} : vector<10x96xf32> to vector<10x32xf32>
    %237 = vector.extract_strided_slice %235 {offsets = [0, 32], sizes = [10, 32], strides = [1, 1]} : vector<10x96xf32> to vector<10x32xf32>
    %238 = vector.extract_strided_slice %235 {offsets = [0, 64], sizes = [10, 32], strides = [1, 1]} : vector<10x96xf32> to vector<10x32xf32>
    %239 = vector.extract_strided_slice %236 {offsets = [0, 0], sizes = [10, 8], strides = [1, 1]} : vector<10x32xf32> to vector<10x8xf32>
    %240 = vector.extract_strided_slice %237 {offsets = [0, 0], sizes = [10, 8], strides = [1, 1]} : vector<10x32xf32> to vector<10x8xf32>
    %241 = arith.truncf %239 : vector<10x8xf32> to vector<10x8xbf16>
    %242 = arith.truncf %240 : vector<10x8xf32> to vector<10x8xbf16>
    %cst_93 = arith.constant dense<0.000000e+00> : vector<10x10xf32>
    %243 = tpu.matmul %241, %242, %cst_93 {dimension_numbers = #tpu.dot_dimension_numbers<[1], [1], [0], [0], [0, 0, 1, 0], [], []>} : vector<10x8xbf16>, vector<10x8xbf16>, vector<10x10xf32> -> vector<10x10xf32>
    %244 = vector.extract_strided_slice %236 {offsets = [0, 8], sizes = [10, 8], strides = [1, 1]} : vector<10x32xf32> to vector<10x8xf32>
    %245 = vector.extract_strided_slice %237 {offsets = [0, 8], sizes = [10, 8], strides = [1, 1]} : vector<10x32xf32> to vector<10x8xf32>
    %246 = arith.truncf %244 : vector<10x8xf32> to vector<10x8xbf16>
    %247 = arith.truncf %245 : vector<10x8xf32> to vector<10x8xbf16>
    %cst_94 = arith.constant dense<0.000000e+00> : vector<10x10xf32>
    %248 = tpu.matmul %246, %247, %cst_94 {dimension_numbers = #tpu.dot_dimension_numbers<[1], [1], [0], [0], [0, 0, 1, 0], [], []>} : vector<10x8xbf16>, vector<10x8xbf16>, vector<10x10xf32> -> vector<10x10xf32>
    %249 = vector.extract_strided_slice %236 {offsets = [0, 16], sizes = [10, 8], strides = [1, 1]} : vector<10x32xf32> to vector<10x8xf32>
    %250 = vector.extract_strided_slice %237 {offsets = [0, 16], sizes = [10, 8], strides = [1, 1]} : vector<10x32xf32> to vector<10x8xf32>
    %251 = arith.truncf %249 : vector<10x8xf32> to vector<10x8xbf16>
    %252 = arith.truncf %250 : vector<10x8xf32> to vector<10x8xbf16>
    %cst_95 = arith.constant dense<0.000000e+00> : vector<10x10xf32>
    %253 = tpu.matmul %251, %252, %cst_95 {dimension_numbers = #tpu.dot_dimension_numbers<[1], [1], [0], [0], [0, 0, 1, 0], [], []>} : vector<10x8xbf16>, vector<10x8xbf16>, vector<10x10xf32> -> vector<10x10xf32>
    %254 = vector.extract_strided_slice %236 {offsets = [0, 24], sizes = [10, 8], strides = [1, 1]} : vector<10x32xf32> to vector<10x8xf32>
    %255 = vector.extract_strided_slice %237 {offsets = [0, 24], sizes = [10, 8], strides = [1, 1]} : vector<10x32xf32> to vector<10x8xf32>
    %256 = arith.truncf %254 : vector<10x8xf32> to vector<10x8xbf16>
    %257 = arith.truncf %255 : vector<10x8xf32> to vector<10x8xbf16>
    %cst_96 = arith.constant dense<0.000000e+00> : vector<10x10xf32>
    %258 = tpu.matmul %256, %257, %cst_96 {dimension_numbers = #tpu.dot_dimension_numbers<[1], [1], [0], [0], [0, 0, 1, 0], [], []>} : vector<10x8xbf16>, vector<10x8xbf16>, vector<10x10xf32> -> vector<10x10xf32>
    %259 = vector.shape_cast %243 : vector<10x10xf32> to vector<1x10x10xf32>
    %260 = vector.shape_cast %248 : vector<10x10xf32> to vector<1x10x10xf32>
    %261 = vector.shape_cast %253 : vector<10x10xf32> to vector<1x10x10xf32>
    %262 = vector.shape_cast %258 : vector<10x10xf32> to vector<1x10x10xf32>
    %263 = tpu.concatenate %259, %260, %261, %262 in 0 : vector<1x10x10xf32>, vector<1x10x10xf32>, vector<1x10x10xf32>, vector<1x10x10xf32> -> vector<4x10x10xf32>
    %264 = vector.shape_cast %29 : vector<10x10xf32> to vector<1x10x10xf32>
    %265 = vector.broadcast %264 : vector<1x10x10xf32> to vector<4x10x10xf32>
    %266 = arith.addf %263, %265 : vector<4x10x10xf32>
    %cst_97 = arith.constant dense<0xFF800000> : vector<4x10xf32>
    %267 = vector.multi_reduction <maximumf>, %266, %cst_97 [2] : vector<4x10x10xf32> to vector<4x10xf32>
    %268 = vector.shape_cast %267 : vector<4x10xf32> to vector<4x10x1xf32>
    %269 = vector.broadcast %268 : vector<4x10x1xf32> to vector<4x10x10xf32>
    %270 = arith.subf %266, %269 : vector<4x10x10xf32>
    %271 = math.exp %270 : vector<4x10x10xf32>
    %cst_98 = arith.constant dense<0.000000e+00> : vector<4x10xf32>
    %272 = vector.multi_reduction <add>, %271, %cst_98 [2] : vector<4x10x10xf32> to vector<4x10xf32>
    %273 = vector.shape_cast %272 : vector<4x10xf32> to vector<4x10x1xf32>
    %274 = tpu.reciprocal %273 {approx = true} : vector<4x10x1xf32> -> vector<4x10x1xf32>
    %275 = vector.broadcast %274 : vector<4x10x1xf32> to vector<4x10x10xf32>
    %276 = arith.mulf %271, %275 : vector<4x10x10xf32>
    %277 = vector.extract_strided_slice %276 {offsets = [0, 0, 0], sizes = [1, 10, 10], strides = [1, 1, 1]} : vector<4x10x10xf32> to vector<1x10x10xf32>
    %278 = vector.shape_cast %277 : vector<1x10x10xf32> to vector<10x10xf32>
    %279 = arith.truncf %278 : vector<10x10xf32> to vector<10x10xbf16>
    %280 = arith.truncf %238 : vector<10x32xf32> to vector<10x32xbf16>
    %cst_99 = arith.constant dense<0.000000e+00> : vector<10x32xf32>
    %281 = tpu.matmul %279, %280, %cst_99 {dimension_numbers = #tpu.dot_dimension_numbers<[1], [0], [0], [1], [0, 0, 1, 1], [], []>} : vector<10x10xbf16>, vector<10x32xbf16>, vector<10x32xf32> -> vector<10x32xf32>
    %c0_100 = arith.constant 0 : index
    %c0_101 = arith.constant 0 : index
    %c0_102 = arith.constant 0 : index
    %282 = vector.load %arg4[%c0_100, %c0_101, %c0_102] : memref<4x1x32xf32, #tpu.memory_space<vmem>>, vector<1x1x32xf32>
    %283 = vector.shape_cast %282 : vector<1x1x32xf32> to vector<1x32xf32>
    %284 = vector.broadcast %283 : vector<1x32xf32> to vector<10x32xf32>
    %285 = arith.mulf %281, %284 : vector<10x32xf32>
    %286 = vector.extract_strided_slice %276 {offsets = [1, 0, 0], sizes = [1, 10, 10], strides = [1, 1, 1]} : vector<4x10x10xf32> to vector<1x10x10xf32>
    %287 = vector.shape_cast %286 : vector<1x10x10xf32> to vector<10x10xf32>
    %288 = arith.truncf %287 : vector<10x10xf32> to vector<10x10xbf16>
    %289 = arith.truncf %238 : vector<10x32xf32> to vector<10x32xbf16>
    %cst_103 = arith.constant dense<0.000000e+00> : vector<10x32xf32>
    %290 = tpu.matmul %288, %289, %cst_103 {dimension_numbers = #tpu.dot_dimension_numbers<[1], [0], [0], [1], [0, 0, 1, 1], [], []>} : vector<10x10xbf16>, vector<10x32xbf16>, vector<10x32xf32> -> vector<10x32xf32>
    %c1_104 = arith.constant 1 : index
    %c0_105 = arith.constant 0 : index
    %c0_106 = arith.constant 0 : index
    %291 = vector.load %arg4[%c1_104, %c0_105, %c0_106] : memref<4x1x32xf32, #tpu.memory_space<vmem>>, vector<1x1x32xf32>
    %292 = vector.shape_cast %291 : vector<1x1x32xf32> to vector<1x32xf32>
    %293 = vector.broadcast %292 : vector<1x32xf32> to vector<10x32xf32>
    %294 = arith.mulf %290, %293 : vector<10x32xf32>
    %295 = arith.addf %285, %294 : vector<10x32xf32>
    %296 = vector.extract_strided_slice %276 {offsets = [2, 0, 0], sizes = [1, 10, 10], strides = [1, 1, 1]} : vector<4x10x10xf32> to vector<1x10x10xf32>
    %297 = vector.shape_cast %296 : vector<1x10x10xf32> to vector<10x10xf32>
    %298 = arith.truncf %297 : vector<10x10xf32> to vector<10x10xbf16>
    %299 = arith.truncf %238 : vector<10x32xf32> to vector<10x32xbf16>
    %cst_107 = arith.constant dense<0.000000e+00> : vector<10x32xf32>
    %300 = tpu.matmul %298, %299, %cst_107 {dimension_numbers = #tpu.dot_dimension_numbers<[1], [0], [0], [1], [0, 0, 1, 1], [], []>} : vector<10x10xbf16>, vector<10x32xbf16>, vector<10x32xf32> -> vector<10x32xf32>
    %c2_108 = arith.constant 2 : index
    %c0_109 = arith.constant 0 : index
    %c0_110 = arith.constant 0 : index
    %301 = vector.load %arg4[%c2_108, %c0_109, %c0_110] : memref<4x1x32xf32, #tpu.memory_space<vmem>>, vector<1x1x32xf32>
    %302 = vector.shape_cast %301 : vector<1x1x32xf32> to vector<1x32xf32>
    %303 = vector.broadcast %302 : vector<1x32xf32> to vector<10x32xf32>
    %304 = arith.mulf %300, %303 : vector<10x32xf32>
    %305 = arith.addf %295, %304 : vector<10x32xf32>
    %306 = vector.extract_strided_slice %276 {offsets = [3, 0, 0], sizes = [1, 10, 10], strides = [1, 1, 1]} : vector<4x10x10xf32> to vector<1x10x10xf32>
    %307 = vector.shape_cast %306 : vector<1x10x10xf32> to vector<10x10xf32>
    %308 = arith.truncf %307 : vector<10x10xf32> to vector<10x10xbf16>
    %309 = arith.truncf %238 : vector<10x32xf32> to vector<10x32xbf16>
    %cst_111 = arith.constant dense<0.000000e+00> : vector<10x32xf32>
    %310 = tpu.matmul %308, %309, %cst_111 {dimension_numbers = #tpu.dot_dimension_numbers<[1], [0], [0], [1], [0, 0, 1, 1], [], []>} : vector<10x10xbf16>, vector<10x32xbf16>, vector<10x32xf32> -> vector<10x32xf32>
    %c3_112 = arith.constant 3 : index
    %c0_113 = arith.constant 0 : index
    %c0_114 = arith.constant 0 : index
    %311 = vector.load %arg4[%c3_112, %c0_113, %c0_114] : memref<4x1x32xf32, #tpu.memory_space<vmem>>, vector<1x1x32xf32>
    %312 = vector.shape_cast %311 : vector<1x1x32xf32> to vector<1x32xf32>
    %313 = vector.broadcast %312 : vector<1x32xf32> to vector<10x32xf32>
    %314 = arith.mulf %310, %313 : vector<10x32xf32>
    %315 = arith.addf %305, %314 : vector<10x32xf32>
    %c1_115 = arith.constant 1 : index
    %c0_116 = arith.constant 0 : index
    %c0_117 = arith.constant 0 : index
    %316 = vector.load %arg11[%c1_115, %c0_116, %c0_117] : memref<2x32x32xbf16, #tpu.memory_space<vmem>>, vector<1x32x32xbf16>
    %317 = vector.shape_cast %316 : vector<1x32x32xbf16> to vector<32x32xbf16>
    %318 = arith.truncf %315 : vector<10x32xf32> to vector<10x32xbf16>
    %cst_118 = arith.constant dense<0.000000e+00> : vector<10x32xf32>
    %319 = tpu.matmul %318, %317, %cst_118 {dimension_numbers = #tpu.dot_dimension_numbers<[1], [0], [0], [1], [0, 0, 1, 1], [], []>} : vector<10x32xbf16>, vector<32x32xbf16>, vector<10x32xf32> -> vector<10x32xf32>
    %320 = arith.addf %201, %319 : vector<10x32xf32>
    %c1_119 = arith.constant 1 : index
    %c0_120 = arith.constant 0 : index
    %c0_121 = arith.constant 0 : index
    %321 = vector.load %arg12[%c1_119, %c0_120, %c0_121] : memref<2x1x32xf32, #tpu.memory_space<vmem>>, vector<1x1x32xf32>
    %322 = vector.shape_cast %321 : vector<1x1x32xf32> to vector<1x32xf32>
    %323 = vector.broadcast %322 : vector<1x32xf32> to vector<10x32xf32>
    %324 = arith.addf %320, %323 : vector<10x32xf32>
    %325 = vector.extract_strided_slice %203 {offsets = [2, 0], sizes = [1, 32], strides = [1, 1]} : vector<4x32xf32> to vector<1x32xf32>
    %326 = vector.extract_strided_slice %203 {offsets = [3, 0], sizes = [1, 32], strides = [1, 1]} : vector<4x32xf32> to vector<1x32xf32>
    %cst_122 = arith.constant dense<0.000000e+00> : vector<10xf32>
    %327 = vector.multi_reduction <add>, %324, %cst_122 [1] : vector<10x32xf32> to vector<10xf32>
    %328 = vector.shape_cast %327 : vector<10xf32> to vector<10x1xf32>
    %cst_123 = arith.constant 3.200000e+01 : f32
    %329 = vector.broadcast %cst_123 : f32 to vector<10x1xf32>
    %330 = arith.divf %328, %329 : vector<10x1xf32>
    %331 = arith.mulf %324, %324 : vector<10x32xf32>
    %cst_124 = arith.constant dense<0.000000e+00> : vector<10xf32>
    %332 = vector.multi_reduction <add>, %331, %cst_124 [1] : vector<10x32xf32> to vector<10xf32>
    %333 = vector.shape_cast %332 : vector<10xf32> to vector<10x1xf32>
    %cst_125 = arith.constant 3.200000e+01 : f32
    %334 = vector.broadcast %cst_125 : f32 to vector<10x1xf32>
    %335 = arith.divf %333, %334 : vector<10x1xf32>
    %336 = arith.mulf %330, %330 : vector<10x1xf32>
    %337 = arith.subf %335, %336 : vector<10x1xf32>
    %338 = vector.broadcast %330 : vector<10x1xf32> to vector<10x32xf32>
    %339 = arith.subf %324, %338 : vector<10x32xf32>
    %cst_126 = arith.constant 9.99999974E-6 : f32
    %340 = vector.broadcast %cst_126 : f32 to vector<10x1xf32>
    %341 = arith.addf %337, %340 : vector<10x1xf32>
    %342 = math.rsqrt %341 : vector<10x1xf32>
    %343 = vector.broadcast %342 : vector<10x1xf32> to vector<10x32xf32>
    %344 = arith.mulf %339, %343 : vector<10x32xf32>
    %345 = vector.broadcast %325 : vector<1x32xf32> to vector<10x32xf32>
    %346 = arith.mulf %344, %345 : vector<10x32xf32>
    %347 = vector.broadcast %326 : vector<1x32xf32> to vector<10x32xf32>
    %348 = arith.addf %346, %347 : vector<10x32xf32>
    %c1_127 = arith.constant 1 : index
    %c0_128 = arith.constant 0 : index
    %c0_129 = arith.constant 0 : index
    %349 = vector.load %arg13[%c1_127, %c0_128, %c0_129] : memref<2x32x128xbf16, #tpu.memory_space<vmem>>, vector<1x32x128xbf16>
    %350 = vector.shape_cast %349 : vector<1x32x128xbf16> to vector<32x128xbf16>
    %351 = arith.truncf %348 : vector<10x32xf32> to vector<10x32xbf16>
    %cst_130 = arith.constant dense<0.000000e+00> : vector<10x128xf32>
    %352 = tpu.matmul %351, %350, %cst_130 {dimension_numbers = #tpu.dot_dimension_numbers<[1], [0], [0], [1], [0, 0, 1, 1], [], []>} : vector<10x32xbf16>, vector<32x128xbf16>, vector<10x128xf32> -> vector<10x128xf32>
    %c1_131 = arith.constant 1 : index
    %c0_132 = arith.constant 0 : index
    %c0_133 = arith.constant 0 : index
    %353 = vector.load %arg14[%c1_131, %c0_132, %c0_133] : memref<2x1x128xf32, #tpu.memory_space<vmem>>, vector<1x1x128xf32>
    %354 = vector.shape_cast %353 : vector<1x1x128xf32> to vector<1x128xf32>
    %355 = vector.broadcast %354 : vector<1x128xf32> to vector<10x128xf32>
    %356 = arith.addf %352, %355 : vector<10x128xf32>
    %cst_134 = arith.constant 1.702000e+00 : f32
    %357 = vector.broadcast %cst_134 : f32 to vector<10x128xf32>
    %358 = arith.mulf %357, %356 : vector<10x128xf32>
    %359 = arith.negf %358 : vector<10x128xf32>
    %360 = math.exp %359 : vector<10x128xf32>
    %cst_135 = arith.constant 1.000000e+00 : f32
    %361 = vector.broadcast %cst_135 : f32 to vector<10x128xf32>
    %362 = arith.addf %361, %360 : vector<10x128xf32>
    %363 = arith.divf %361, %362 : vector<10x128xf32>
    %364 = arith.mulf %356, %363 : vector<10x128xf32>
    %c1_136 = arith.constant 1 : index
    %c0_137 = arith.constant 0 : index
    %c0_138 = arith.constant 0 : index
    %365 = vector.load %arg15[%c1_136, %c0_137, %c0_138] : memref<2x128x32xbf16, #tpu.memory_space<vmem>>, vector<1x128x32xbf16>
    %366 = vector.shape_cast %365 : vector<1x128x32xbf16> to vector<128x32xbf16>
    %367 = arith.truncf %364 : vector<10x128xf32> to vector<10x128xbf16>
    %cst_139 = arith.constant dense<0.000000e+00> : vector<10x32xf32>
    %368 = tpu.matmul %367, %366, %cst_139 {dimension_numbers = #tpu.dot_dimension_numbers<[1], [0], [0], [1], [0, 0, 1, 1], [], []>} : vector<10x128xbf16>, vector<128x32xbf16>, vector<10x32xf32> -> vector<10x32xf32>
    %369 = arith.addf %324, %368 : vector<10x32xf32>
    %c1_140 = arith.constant 1 : index
    %c0_141 = arith.constant 0 : index
    %c0_142 = arith.constant 0 : index
    %370 = vector.load %arg16[%c1_140, %c0_141, %c0_142] : memref<2x1x32xf32, #tpu.memory_space<vmem>>, vector<1x1x32xf32>
    %371 = vector.shape_cast %370 : vector<1x1x32xf32> to vector<1x32xf32>
    %372 = vector.broadcast %371 : vector<1x32xf32> to vector<10x32xf32>
    %373 = arith.addf %369, %372 : vector<10x32xf32>
    %374 = vector.extract_strided_slice %373 {offsets = [8, 0], sizes = [2, 32], strides = [1, 1]} : vector<10x32xf32> to vector<2x32xf32>
    %c0_143 = arith.constant 0 : index
    %c0_144 = arith.constant 0 : index
    %375 = vector.load %arg6[%c0_143, %c0_144] : memref<2x32xf32, #tpu.memory_space<vmem>>, vector<1x32xf32>
    %c1_145 = arith.constant 1 : index
    %c0_146 = arith.constant 0 : index
    %376 = vector.load %arg6[%c1_145, %c0_146] : memref<2x32xf32, #tpu.memory_space<vmem>>, vector<1x32xf32>
    %cst_147 = arith.constant dense<0.000000e+00> : vector<2xf32>
    %377 = vector.multi_reduction <add>, %374, %cst_147 [1] : vector<2x32xf32> to vector<2xf32>
    %378 = vector.shape_cast %377 : vector<2xf32> to vector<2x1xf32>
    %cst_148 = arith.constant 3.200000e+01 : f32
    %379 = vector.broadcast %cst_148 : f32 to vector<2x1xf32>
    %380 = arith.divf %378, %379 : vector<2x1xf32>
    %381 = arith.mulf %374, %374 : vector<2x32xf32>
    %cst_149 = arith.constant dense<0.000000e+00> : vector<2xf32>
    %382 = vector.multi_reduction <add>, %381, %cst_149 [1] : vector<2x32xf32> to vector<2xf32>
    %383 = vector.shape_cast %382 : vector<2xf32> to vector<2x1xf32>
    %cst_150 = arith.constant 3.200000e+01 : f32
    %384 = vector.broadcast %cst_150 : f32 to vector<2x1xf32>
    %385 = arith.divf %383, %384 : vector<2x1xf32>
    %386 = arith.mulf %380, %380 : vector<2x1xf32>
    %387 = arith.subf %385, %386 : vector<2x1xf32>
    %388 = vector.broadcast %380 : vector<2x1xf32> to vector<2x32xf32>
    %389 = arith.subf %374, %388 : vector<2x32xf32>
    %cst_151 = arith.constant 9.99999974E-6 : f32
    %390 = vector.broadcast %cst_151 : f32 to vector<2x1xf32>
    %391 = arith.addf %387, %390 : vector<2x1xf32>
    %392 = math.rsqrt %391 : vector<2x1xf32>
    %393 = vector.broadcast %392 : vector<2x1xf32> to vector<2x32xf32>
    %394 = arith.mulf %389, %393 : vector<2x32xf32>
    %395 = vector.broadcast %375 : vector<1x32xf32> to vector<2x32xf32>
    %396 = arith.mulf %394, %395 : vector<2x32xf32>
    %397 = vector.broadcast %376 : vector<1x32xf32> to vector<2x32xf32>
    %398 = arith.addf %396, %397 : vector<2x32xf32>
    %c0_152 = arith.constant 0 : index
    %c0_153 = arith.constant 0 : index
    %399 = vector.load %arg7[%c0_152, %c0_153] : memref<32x16xbf16, #tpu.memory_space<vmem>>, vector<32x16xbf16>
    %400 = arith.truncf %398 : vector<2x32xf32> to vector<2x32xbf16>
    %cst_154 = arith.constant dense<0.000000e+00> : vector<2x16xf32>
    %401 = tpu.matmul %400, %399, %cst_154 {dimension_numbers = #tpu.dot_dimension_numbers<[1], [0], [0], [1], [0, 0, 1, 1], [], []>} : vector<2x32xbf16>, vector<32x16xbf16>, vector<2x16xf32> -> vector<2x16xf32>
    %c0_155 = arith.constant 0 : index
    %c0_156 = arith.constant 0 : index
    %402 = vector.load %arg17[%c0_155, %c0_156] : memref<2x16xf32, #tpu.memory_space<vmem>>, vector<2x16xf32>
    tpu.vector_store %arg17[%c0_155, %c0_156], %401 {strides = array<i32>} : memref<2x16xf32, #tpu.memory_space<vmem>>, vector<2x16xf32>,
    return
  }
}

</mosaic_0001>

<llo_original>
// kernel: encode_image.1
$region0: #{encode_image.1}
  #allocation0 [shape = 'u32[]', space=smem, size = 0x4, offset = 0x4, fixed_abs, tag = 'smem constant byte address 0x4 - core index']
  #allocation1 [shape = 'u32[144,128]{1,0:T(1,128)}', space=vmem, size = 0x12000, scoped, tag = 'internal scratch']
  %s0 = inlined_call_operand.vmem [shape: bf16[10,768], index: 0, kind: input, shape index: {}]
  %s1 = inlined_call_operand.vmem [shape: bf16[768,32], index: 1, kind: input, shape index: {}]
  %s2 = inlined_call_operand.vmem [shape: f32[10,32], index: 2, kind: input, shape index: {}]
  %s3 = inlined_call_operand.vmem [shape: f32[10,10], index: 3, kind: input, shape index: {}]
  %s4 = inlined_call_operand.vmem [shape: f32[4,1,32], index: 4, kind: input, shape index: {}]
  %s5 = inlined_call_operand.vmem [shape: f32[2,32], index: 5, kind: input, shape index: {}]
  %s6 = inlined_call_operand.vmem [shape: f32[2,32], index: 6, kind: input, shape index: {}]
  %s7 = inlined_call_operand.vmem [shape: bf16[32,16], index: 7, kind: input, shape index: {}]
  %s8 = inlined_call_operand.vmem [shape: f32[2,4,32], index: 8, kind: input, shape index: {}]
  %s9 = inlined_call_operand.vmem [shape: bf16[2,32,96], index: 9, kind: input, shape index: {}]
  %s10 = inlined_call_operand.vmem [shape: f32[2,1,96], index: 10, kind: input, shape index: {}]
  %s11 = inlined_call_operand.vmem [shape: bf16[2,32,32], index: 11, kind: input, shape index: {}]
  %s12 = inlined_call_operand.vmem [shape: f32[2,1,32], index: 12, kind: input, shape index: {}]
  %s13 = inlined_call_operand.vmem [shape: bf16[2,32,128], index: 13, kind: input, shape index: {}]
  %s14 = inlined_call_operand.vmem [shape: f32[2,1,128], index: 14, kind: input, shape index: {}]
  %s15 = inlined_call_operand.vmem [shape: bf16[2,128,32], index: 15, kind: input, shape index: {}]
  %s16 = inlined_call_operand.vmem [shape: f32[2,1,32], index: 16, kind: input, shape index: {}]
  %s17 = inlined_call_operand.hbm [shape: f32[2,16], index: 17, kind: output, shape index: {}]
  %s18 = sld [smem:[#allocation0]]
  $region78: #{encode_image.1} parent=0
    _
  %s20 = ssub.s32 1, %s18
  %s21 = scalar_select 0, %s20, %s18
  $region1: #{encode_image.1} parent=0
    #allocation2 [shape = 'u8[1024]{0}', space=vmem, size = 0x400, scoped, tag = 'output window, operand 0, single buffered']
    #allocation3 [shape = 's32[1]{0}', space=sflag, size = 0x4, scoped, tag = 'scoped memory for encode_image.1']
    %22 = vsyncpa [#allocation3], 0
    // Predicated region
    $region2: #{encode_image.1} parent=1 // pred_check
      _
    $region3: #{encode_image.1} parent=1 // pred_check_branch
      %24 = sbr.rel (0) target = $region5
    $region4: #{encode_image.1} parent=1 // pred_region
      _
    $region5: #{encode_image.1} parent=1 // pred_fallthru
      _
    // Predicated region
    $region6: #{encode_image.1} parent=1 // pred_check
      _
    $region7: #{encode_image.1} parent=1 // pred_check_branch
      %26 = sbr.rel (0) target = $region9
    $region8: #{encode_image.1} parent=1 // pred_region
      _
    $region9: #{encode_image.1} parent=1 // pred_fallthru
      _
    // Predicated region
    $region10: #{encode_image.1} parent=1 // pred_check
      _
    $region11: #{encode_image.1} parent=1 // pred_check_branch
      %28 = sbr.rel (0) target = $region13
    $region12: #{encode_image.1} parent=1 // pred_region
      _
    $region13: #{encode_image.1} parent=1 // pred_fallthru
      _
    // Predicated region
    $region14: #{encode_image.1} parent=1 // pred_check
      _
    $region15: #{encode_image.1} parent=1 // pred_check_branch
      %30 = sbr.rel (0) target = $region17
    $region16: #{encode_image.1} parent=1 // pred_region
      _
    $region17: #{encode_image.1} parent=1 // pred_fallthru
      _
    // Predicated region
    $region18: #{encode_image.1} parent=1 // pred_check
      _
    $region19: #{encode_image.1} parent=1 // pred_check_branch
      %32 = sbr.rel (0) target = $region21
    $region20: #{encode_image.1} parent=1 // pred_region
      _
    $region21: #{encode_image.1} parent=1 // pred_fallthru
      _
    // Predicated region
    $region22: #{encode_image.1} parent=1 // pred_check
      _
    $region23: #{encode_image.1} parent=1 // pred_check_branch
      %34 = sbr.rel (0) target = $region25
    $region24: #{encode_image.1} parent=1 // pred_region
      _
    $region25: #{encode_image.1} parent=1 // pred_fallthru
      _
    // Predicated region
    $region26: #{encode_image.1} parent=1 // pred_check
      _
    $region27: #{encode_image.1} parent=1 // pred_check_branch
      %36 = sbr.rel (0) target = $region29
    $region28: #{encode_image.1} parent=1 // pred_region
      _
    $region29: #{encode_image.1} parent=1 // pred_fallthru
      _
    // Predicated region
    $region30: #{encode_image.1} parent=1 // pred_check
      _
    $region31: #{encode_image.1} parent=1 // pred_check_branch
      %38 = sbr.rel (0) target = $region33
    $region32: #{encode_image.1} parent=1 // pred_region
      _
    $region33: #{encode_image.1} parent=1 // pred_fallthru
      _
    // Predicated region
    $region34: #{encode_image.1} parent=1 // pred_check
      _
    $region35: #{encode_image.1} parent=1 // pred_check_branch
      %40 = sbr.rel (0) target = $region37
    $region36: #{encode_image.1} parent=1 // pred_region
      _
    $region37: #{encode_image.1} parent=1 // pred_fallthru
      _
    // Predicated region
    $region38: #{encode_image.1} parent=1 // pred_check
      _
    $region39: #{encode_image.1} parent=1 // pred_check_branch
      %42 = sbr.rel (0) target = $region41
    $region40: #{encode_image.1} parent=1 // pred_region
      _
    $region41: #{encode_image.1} parent=1 // pred_fallthru
      _
    // Predicated region
    $region42: #{encode_image.1} parent=1 // pred_check
      _
    $region43: #{encode_image.1} parent=1 // pred_check_branch
      %44 = sbr.rel (0) target = $region45
    $region44: #{encode_image.1} parent=1 // pred_region
      _
    $region45: #{encode_image.1} parent=1 // pred_fallthru
      _
    // Predicated region
    $region46: #{encode_image.1} parent=1 // pred_check
      _
    $region47: #{encode_image.1} parent=1 // pred_check_branch
      %46 = sbr.rel (0) target = $region49
    $region48: #{encode_image.1} parent=1 // pred_region
      _
    $region49: #{encode_image.1} parent=1 // pred_fallthru
      _
    // Predicated region
    $region50: #{encode_image.1} parent=1 // pred_check
      _
    $region51: #{encode_image.1} parent=1 // pred_check_branch
      %48 = sbr.rel (0) target = $region53
    $region52: #{encode_image.1} parent=1 // pred_region
      _
    $region53: #{encode_image.1} parent=1 // pred_fallthru
      _
    // Predicated region
    $region54: #{encode_image.1} parent=1 // pred_check
      _
    $region55: #{encode_image.1} parent=1 // pred_check_branch
      %50 = sbr.rel (0) target = $region57
    $region56: #{encode_image.1} parent=1 // pred_region
      _
    $region57: #{encode_image.1} parent=1 // pred_fallthru
      _
    // Predicated region
    $region58: #{encode_image.1} parent=1 // pred_check
      _
    $region59: #{encode_image.1} parent=1 // pred_check_branch
      %52 = sbr.rel (0) target = $region61
    $region60: #{encode_image.1} parent=1 // pred_region
      _
    $region61: #{encode_image.1} parent=1 // pred_fallthru
      _
    // Predicated region
    $region62: #{encode_image.1} parent=1 // pred_check
      _
    $region63: #{encode_image.1} parent=1 // pred_check_branch
      %54 = sbr.rel (0) target = $region65
    $region64: #{encode_image.1} parent=1 // pred_region
      _
    $region65: #{encode_image.1} parent=1 // pred_fallthru
      _
    // Predicated region
    $region66: #{encode_image.1} parent=1 // pred_check
      _
    $region67: #{encode_image.1} parent=1 // pred_check_branch
      %56 = sbr.rel (0) target = $region69
    $region68: #{encode_image.1} parent=1 // pred_region
      _
    $region69: #{encode_image.1} parent=1 // pred_fallthru
      _
    %v58 = vld [vmem:[%s0] sm:$0xff]
    %v59 = vld [vmem:[%s0 + $0x8] sm:$0xff]
    %v60 = vld [vmem:[%s0 + $0x10] sm:$0xff]
    %v61 = vld [vmem:[%s0 + $0x18] sm:$0x11]
    %v62 = vld [vmem:[%s0 + $0x20] sm:$0x11]
    %v63 = vld [vmem:[%s0 + $0x28] sm:$0x11]
    %v64 = vld [vmem:[%s1] sm:$0xf]
    %v65 = vld [vmem:[%s1 + $0x4] sm:$0xf]
    %v66 = vld [vmem:[%s1 + $0x8] sm:$0xf]
    %v67 = vld [vmem:[%s1 + $0xc] sm:$0xf]
    %v68 = vld [vmem:[%s1 + $0x10] sm:$0xf]
    %v69 = vld [vmem:[%s1 + $0x14] sm:$0xf]
    %v70 = vld [vmem:[%s1 + $0x18] sm:$0xf]
    %v71 = vld [vmem:[%s1 + $0x1c] sm:$0xf]
    %v72 = vld [vmem:[%s1 + $0x20] sm:$0xf]
    %v73 = vld [vmem:[%s1 + $0x24] sm:$0xf]
    %v74 = vld [vmem:[%s1 + $0x28] sm:$0xf]
    %v75 = vld [vmem:[%s1 + $0x2c] sm:$0xf]
    %v76 = vld [vmem:[%s1 + $0x30] sm:$0xf]
    %v77 = vld [vmem:[%s1 + $0x34] sm:$0xf]
    %v78 = vld [vmem:[%s1 + $0x38] sm:$0xf]
    %v79 = vld [vmem:[%s1 + $0x3c] sm:$0xf]
    %v80 = vld [vmem:[%s1 + $0x40] sm:$0xf]
    %v81 = vld [vmem:[%s1 + $0x44] sm:$0xf]
    %v82 = vld [vmem:[%s1 + $0x48] sm:$0xf]
    %v83 = vld [vmem:[%s1 + $0x4c] sm:$0xf]
    %v84 = vld [vmem:[%s1 + $0x50] sm:$0xf]
    %v85 = vld [vmem:[%s1 + $0x54] sm:$0xf]
    %v86 = vld [vmem:[%s1 + $0x58] sm:$0xf]
    %v87 = vld [vmem:[%s1 + $0x5c] sm:$0xf]
    %v88 = vld [vmem:[%s1 + $0x60] sm:$0xf]
    %v89 = vld [vmem:[%s1 + $0x64] sm:$0xf]
    %v90 = vld [vmem:[%s1 + $0x68] sm:$0xf]
    %v91 = vld [vmem:[%s1 + $0x6c] sm:$0xf]
    %v92 = vld [vmem:[%s1 + $0x70] sm:$0xf]
    %v93 = vld [vmem:[%s1 + $0x74] sm:$0xf]
    %v94 = vld [vmem:[%s1 + $0x78] sm:$0xf]
    %v95 = vld [vmem:[%s1 + $0x7c] sm:$0xf]
    %v96 = vld [vmem:[%s1 + $0x80] sm:$0xf]
    %v97 = vld [vmem:[%s1 + $0x84] sm:$0xf]
    %v98 = vld [vmem:[%s1 + $0x88] sm:$0xf]
    %v99 = vld [vmem:[%s1 + $0x8c] sm:$0xf]
    %v100 = vld [vmem:[%s1 + $0x90] sm:$0xf]
    %v101 = vld [vmem:[%s1 + $0x94] sm:$0xf]
    %v102 = vld [vmem:[%s1 + $0x98] sm:$0xf]
    %v103 = vld [vmem:[%s1 + $0x9c] sm:$0xf]
    %v104 = vld [vmem:[%s1 + $0xa0] sm:$0xf]
    %v105 = vld [vmem:[%s1 + $0xa4] sm:$0xf]
    %v106 = vld [vmem:[%s1 + $0xa8] sm:$0xf]
    %v107 = vld [vmem:[%s1 + $0xac] sm:$0xf]
    %v108 = vld [vmem:[%s1 + $0xb0] sm:$0xf]
    %v109 = vld [vmem:[%s1 + $0xb4] sm:$0xf]
    %v110 = vld [vmem:[%s1 + $0xb8] sm:$0xf]
    %v111 = vld [vmem:[%s1 + $0xbc] sm:$0xf]
    %v112 = vld [vmem:[%s1 + $0xc0] sm:$0xf]
    %v113 = vld [vmem:[%s1 + $0xc4] sm:$0xf]
    %v114 = vld [vmem:[%s1 + $0xc8] sm:$0xf]
    %v115 = vld [vmem:[%s1 + $0xcc] sm:$0xf]
    %v116 = vld [vmem:[%s1 + $0xd0] sm:$0xf]
    %v117 = vld [vmem:[%s1 + $0xd4] sm:$0xf]
    %v118 = vld [vmem:[%s1 + $0xd8] sm:$0xf]
    %v119 = vld [vmem:[%s1 + $0xdc] sm:$0xf]
    %v120 = vld [vmem:[%s1 + $0xe0] sm:$0xf]
    %v121 = vld [vmem:[%s1 + $0xe4] sm:$0xf]
    %v122 = vld [vmem:[%s1 + $0xe8] sm:$0xf]
    %v123 = vld [vmem:[%s1 + $0xec] sm:$0xf]
    %v124 = vld [vmem:[%s1 + $0xf0] sm:$0xf]
    %v125 = vld [vmem:[%s1 + $0xf4] sm:$0xf]
    %v126 = vld [vmem:[%s1 + $0xf8] sm:$0xf]
    %v127 = vld [vmem:[%s1 + $0xfc] sm:$0xf]
    %v128 = vld [vmem:[%s1 + $0x100] sm:$0xf]
    %v129 = vld [vmem:[%s1 + $0x104] sm:$0xf]
    %v130 = vld [vmem:[%s1 + $0x108] sm:$0xf]
    %v131 = vld [vmem:[%s1 + $0x10c] sm:$0xf]
    %v132 = vld [vmem:[%s1 + $0x110] sm:$0xf]
    %v133 = vld [vmem:[%s1 + $0x114] sm:$0xf]
    %v134 = vld [vmem:[%s1 + $0x118] sm:$0xf]
    %v135 = vld [vmem:[%s1 + $0x11c] sm:$0xf]
    %v136 = vld [vmem:[%s1 + $0x120] sm:$0xf]
    %v137 = vld [vmem:[%s1 + $0x124] sm:$0xf]
    %v138 = vld [vmem:[%s1 + $0x128] sm:$0xf]
    %v139 = vld [vmem:[%s1 + $0x12c] sm:$0xf]
    %v140 = vld [vmem:[%s1 + $0x130] sm:$0xf]
    %v141 = vld [vmem:[%s1 + $0x134] sm:$0xf]
    %v142 = vld [vmem:[%s1 + $0x138] sm:$0xf]
    %v143 = vld [vmem:[%s1 + $0x13c] sm:$0xf]
    %v144 = vld [vmem:[%s1 + $0x140] sm:$0xf]
    %v145 = vld [vmem:[%s1 + $0x144] sm:$0xf]
    %v146 = vld [vmem:[%s1 + $0x148] sm:$0xf]
    %v147 = vld [vmem:[%s1 + $0x14c] sm:$0xf]
    %v148 = vld [vmem:[%s1 + $0x150] sm:$0xf]
    %v149 = vld [vmem:[%s1 + $0x154] sm:$0xf]
    %v150 = vld [vmem:[%s1 + $0x158] sm:$0xf]
    %v151 = vld [vmem:[%s1 + $0x15c] sm:$0xf]
    %v152 = vld [vmem:[%s1 + $0x160] sm:$0xf]
    %v153 = vld [vmem:[%s1 + $0x164] sm:$0xf]
    %v154 = vld [vmem:[%s1 + $0x168] sm:$0xf]
    %v155 = vld [vmem:[%s1 + $0x16c] sm:$0xf]
    %v156 = vld [vmem:[%s1 + $0x170] sm:$0xf]
    %v157 = vld [vmem:[%s1 + $0x174] sm:$0xf]
    %v158 = vld [vmem:[%s1 + $0x178] sm:$0xf]
    %v159 = vld [vmem:[%s1 + $0x17c] sm:$0xf]
    %v166 = vunpack.c.l.b16 %v58
    %v167 = vunpack.c.h.b16 %v58
    %v168 = vunpack.c.l.b16 %v59
    %v169 = vunpack.c.h.b16 %v59
    %v170 = vunpack.c.l.b16 %v60
    %v171 = vunpack.c.h.b16 %v60
    %v172 = vunpack.c.l.b16 %v61
    %v173 = vunpack.c.h.b16 %v61
    %v174 = vunpack.c.l.b16 %v62
    %v175 = vunpack.c.h.b16 %v62
    %v176 = vunpack.c.l.b16 %v63
    %v177 = vunpack.c.h.b16 %v63
    %v178 = vpack.c.b16 %v172, %v166
    %v179 = vpack.c.b16 %v173, %v167
    %v180 = vpack.c.b16 %v174, %v168
    %v181 = vpack.c.b16 %v175, %v169
    %v182 = vpack.c.b16 %v176, %v170
    %v183 = vpack.c.b16 %v177, %v171
    %v286 = vunpack.c.l.b16 %v64
    %v287 = vunpack.c.l.b16 %v65
    %v288 = vunpack.c.l.b16 %v66
    %v289 = vunpack.c.l.b16 %v67
    %v290 = vunpack.c.l.b16 %v68
    %v291 = vunpack.c.l.b16 %v69
    %v292 = vunpack.c.l.b16 %v70
    %v293 = vunpack.c.l.b16 %v71
    %v294 = vunpack.c.l.b16 %v72
    %v295 = vunpack.c.l.b16 %v73
    %v296 = vunpack.c.l.b16 %v74
    %v297 = vunpack.c.l.b16 %v75
    %v298 = vunpack.c.l.b16 %v76
    %v299 = vunpack.c.l.b16 %v77
    %v300 = vunpack.c.l.b16 %v78
    %v301 = vunpack.c.l.b16 %v79
    %v302 = vunpack.c.l.b16 %v80
    %v303 = vunpack.c.l.b16 %v81
    %v304 = vunpack.c.l.b16 %v82
    %v305 = vunpack.c.l.b16 %v83
    %v306 = vunpack.c.l.b16 %v84
    %v307 = vunpack.c.l.b16 %v85
    %v308 = vunpack.c.l.b16 %v86
    %v309 = vunpack.c.l.b16 %v87
    %v310 = vunpack.c.l.b16 %v88
    %v311 = vunpack.c.l.b16 %v89
    %v312 = vunpack.c.l.b16 %v90
    %v313 = vunpack.c.l.b16 %v91
    %v314 = vunpack.c.l.b16 %v92
    %v315 = vunpack.c.l.b16 %v93
    %v316 = vunpack.c.l.b16 %v94
    %v317 = vunpack.c.l.b16 %v95
    %v318 = vunpack.c.l.b16 %v96
    %v319 = vunpack.c.l.b16 %v97
    %v320 = vunpack.c.l.b16 %v98
    %v321 = vunpack.c.l.b16 %v99
    %v322 = vunpack.c.l.b16 %v100
    %v323 = vunpack.c.l.b16 %v101
    %v324 = vunpack.c.l.b16 %v102
    %v325 = vunpack.c.l.b16 %v103
    %v326 = vunpack.c.l.b16 %v104
    %v327 = vunpack.c.l.b16 %v105
    %v328 = vunpack.c.l.b16 %v106
    %v329 = vunpack.c.l.b16 %v107
    %v330 = vunpack.c.l.b16 %v108
    %v331 = vunpack.c.l.b16 %v109
    %v332 = vunpack.c.l.b16 %v110
    %v333 = vunpack.c.l.b16 %v111
    %v334 = vunpack.c.l.b16 %v112
    %v335 = vunpack.c.l.b16 %v113
    %v336 = vunpack.c.l.b16 %v114
    %v337 = vunpack.c.l.b16 %v115
    %v338 = vunpack.c.l.b16 %v116
    %v339 = vunpack.c.l.b16 %v117
    %v340 = vunpack.c.l.b16 %v118
    %v341 = vunpack.c.l.b16 %v119
    %v342 = vunpack.c.l.b16 %v120
    %v343 = vunpack.c.l.b16 %v121
    %v344 = vunpack.c.l.b16 %v122
    %v345 = vunpack.c.l.b16 %v123
    %v346 = vunpack.c.l.b16 %v124
    %v347 = vunpack.c.l.b16 %v125
    %v348 = vunpack.c.l.b16 %v126
    %v349 = vunpack.c.l.b16 %v127
    %v350 = vunpack.c.l.b16 %v128
    %v351 = vunpack.c.l.b16 %v129
    %v352 = vunpack.c.l.b16 %v130
    %v353 = vunpack.c.l.b16 %v131
    %v354 = vunpack.c.l.b16 %v132
    %v355 = vunpack.c.l.b16 %v133
    %v356 = vunpack.c.l.b16 %v134
    %v357 = vunpack.c.l.b16 %v135
    %v358 = vunpack.c.l.b16 %v136
    %v359 = vunpack.c.l.b16 %v137
    %v360 = vunpack.c.l.b16 %v138
    %v361 = vunpack.c.l.b16 %v139
    %v362 = vunpack.c.l.b16 %v140
    %v363 = vunpack.c.l.b16 %v141
    %v364 = vunpack.c.l.b16 %v142
    %v365 = vunpack.c.l.b16 %v143
    %v366 = vunpack.c.l.b16 %v144
    %v367 = vunpack.c.l.b16 %v145
    %v368 = vunpack.c.l.b16 %v146
    %v369 = vunpack.c.l.b16 %v147
    %v370 = vunpack.c.l.b16 %v148
    %v371 = vunpack.c.l.b16 %v149
    %v372 = vunpack.c.l.b16 %v150
    %v373 = vunpack.c.l.b16 %v151
    %v374 = vunpack.c.l.b16 %v152
    %v375 = vunpack.c.l.b16 %v153
    %v376 = vunpack.c.l.b16 %v154
    %v377 = vunpack.c.l.b16 %v155
    %v378 = vunpack.c.l.b16 %v156
    %v379 = vunpack.c.l.b16 %v157
    %v380 = vunpack.c.l.b16 %v158
    %v381 = vunpack.c.l.b16 %v159
    %v382 = vpack.c.b16 %v287, %v286
    %v383 = vpack.c.b16 %v289, %v288
    %v384 = vpack.c.b16 %v291, %v290
    %v385 = vpack.c.b16 %v293, %v292
    %v386 = vpack.c.b16 %v295, %v294
    %v387 = vpack.c.b16 %v297, %v296
    %v388 = vpack.c.b16 %v299, %v298
    %v389 = vpack.c.b16 %v301, %v300
    %v390 = vpack.c.b16 %v303, %v302
    %v391 = vpack.c.b16 %v305, %v304
    %v392 = vpack.c.b16 %v307, %v306
    %v393 = vpack.c.b16 %v309, %v308
    %v394 = vpack.c.b16 %v311, %v310
    %v395 = vpack.c.b16 %v313, %v312
    %v396 = vpack.c.b16 %v315, %v314
    %v397 = vpack.c.b16 %v317, %v316
    %v398 = vpack.c.b16 %v319, %v318
    %v399 = vpack.c.b16 %v321, %v320
    %v400 = vpack.c.b16 %v323, %v322
    %v401 = vpack.c.b16 %v325, %v324
    %v402 = vpack.c.b16 %v327, %v326
    %v403 = vpack.c.b16 %v329, %v328
    %v404 = vpack.c.b16 %v331, %v330
    %v405 = vpack.c.b16 %v333, %v332
    %v406 = vpack.c.b16 %v335, %v334
    %v407 = vpack.c.b16 %v337, %v336
    %v408 = vpack.c.b16 %v339, %v338
    %v409 = vpack.c.b16 %v341, %v340
    %v410 = vpack.c.b16 %v343, %v342
    %v411 = vpack.c.b16 %v345, %v344
    %v412 = vpack.c.b16 %v347, %v346
    %v413 = vpack.c.b16 %v349, %v348
    %v414 = vpack.c.b16 %v351, %v350
    %v415 = vpack.c.b16 %v353, %v352
    %v416 = vpack.c.b16 %v355, %v354
    %v417 = vpack.c.b16 %v357, %v356
    %v418 = vpack.c.b16 %v359, %v358
    %v419 = vpack.c.b16 %v361, %v360
    %v420 = vpack.c.b16 %v363, %v362
    %v421 = vpack.c.b16 %v365, %v364
    %v422 = vpack.c.b16 %v367, %v366
    %v423 = vpack.c.b16 %v369, %v368
    %v424 = vpack.c.b16 %v371, %v370
    %v425 = vpack.c.b16 %v373, %v372
    %v426 = vpack.c.b16 %v375, %v374
    %v427 = vpack.c.b16 %v377, %v376
    %v428 = vpack.c.b16 %v379, %v378
    %v429 = vpack.c.b16 %v381, %v380
    %478 = vmatprep.subr.bf16.mxu0 0
    %479 = vmatpush1.bf16.msra.mxu0 %v389
    %480 = vmatprep.subr.bf16.mxu0 0
    %481 = vmatpush1.bf16.msra.mxu0 %v388
    %482 = vmatprep.subr.bf16.mxu0 0
    %483 = vmatpush1.bf16.msra.mxu0 %v387
    %484 = vmatprep.subr.bf16.mxu0 0
    %485 = vmatpush1.bf16.msra.mxu0 %v386
    %486 = vmatprep.subr.bf16.mxu0 0
    %487 = vmatpush1.bf16.msra.mxu0 %v385
    %488 = vmatprep.subr.bf16.mxu0 0
    %489 = vmatpush1.bf16.msra.mxu0 %v384
    %490 = vmatprep.subr.bf16.mxu0 0
    %491 = vmatpush1.bf16.msra.mxu0 %v383
    %492 = vmatprep.subr.bf16.mxu0 0
    %493 = vmatpush1.bf16.msra.mxu0 %v382
    %494 = vmatprep.subr.bf16.mxu0 0
    %495 = vmatpush2.bf16.msra.mxu0 %v397
    %496 = vmatprep.subr.bf16.mxu0 0
    %497 = vmatpush2.bf16.msra.mxu0 %v396
    %498 = vmatprep.subr.bf16.mxu0 0
    %499 = vmatpush2.bf16.msra.mxu0 %v395
    %500 = vmatprep.subr.bf16.mxu0 0
    %501 = vmatpush2.bf16.msra.mxu0 %v394
    %502 = vmatprep.subr.bf16.mxu0 0
    %503 = vmatpush2.bf16.msra.mxu0 %v393
    %504 = vmatprep.subr.bf16.mxu0 0
    %505 = vmatpush2.bf16.msra.mxu0 %v392
    %506 = vmatprep.subr.bf16.mxu0 0
    %507 = vmatpush2.bf16.msra.mxu0 %v391
    %508 = vmatprep.subr.bf16.mxu0 0
    %509 = vmatpush2.bf16.msra.mxu0 %v390
    %510 = vmatprep.mubr.bf16.mxu0 %v179
    %511 = vmatmul.mubr.bf16.gmra.mxu0 %v178
    %v512 = vpop.f32.mrf.mxu0
    %v513 = vadd.f32 0.0, %v512
    %v514 = vpop.f32.mrf.mxu0
    %v515 = vpop.f32.mrf.mxu0
    %v516 = vadd.f32 0.0, %v515
    %v517 = vpop.f32.mrf.mxu0
    %518 = vdwg.mxu0
    %519 = vmatprep.subr.bf16.mxu0 0
    %520 = vmatpush1.bf16.msra.mxu0 %v405
    %521 = vmatprep.subr.bf16.mxu0 0
    %522 = vmatpush1.bf16.msra.mxu0 %v404
    %523 = vmatprep.subr.bf16.mxu0 0
    %524 = vmatpush1.bf16.msra.mxu0 %v403
    %525 = vmatprep.subr.bf16.mxu0 0
    %526 = vmatpush1.bf16.msra.mxu0 %v402
    %527 = vmatprep.subr.bf16.mxu0 0
    %528 = vmatpush1.bf16.msra.mxu0 %v401
    %529 = vmatprep.subr.bf16.mxu0 0
    %530 = vmatpush1.bf16.msra.mxu0 %v400
    %531 = vmatprep.subr.bf16.mxu0 0
    %532 = vmatpush1.bf16.msra.mxu0 %v399
    %533 = vmatprep.subr.bf16.mxu0 0
    %534 = vmatpush1.bf16.msra.mxu0 %v398
    %535 = vmatprep.subr.bf16.mxu0 0
    %536 = vmatpush2.bf16.msra.mxu0 %v413
    %537 = vmatprep.subr.bf16.mxu0 0
    %538 = vmatpush2.bf16.msra.mxu0 %v412
    %539 = vmatprep.subr.bf16.mxu0 0
    %540 = vmatpush2.bf16.msra.mxu0 %v411
    %541 = vmatprep.subr.bf16.mxu0 0
    %542 = vmatpush2.bf16.msra.mxu0 %v410
    %543 = vmatprep.subr.bf16.mxu0 0
    %544 = vmatpush2.bf16.msra.mxu0 %v409
    %545 = vmatprep.subr.bf16.mxu0 0
    %546 = vmatpush2.bf16.msra.mxu0 %v408
    %547 = vmatprep.subr.bf16.mxu0 0
    %548 = vmatpush2.bf16.msra.mxu0 %v407
    %549 = vmatprep.subr.bf16.mxu0 0
    %550 = vmatpush2.bf16.msra.mxu0 %v406
    %551 = vmatprep.mubr.bf16.mxu0 %v181
    %552 = vmatmul.mubr.bf16.gmra.mxu0 %v180
    %v553 = vpop.f32.mrf.mxu0
    %v554 = vadd.f32 %v513, %v553
    %v555 = vpop.f32.mrf.mxu0
    %v556 = vpop.f32.mrf.mxu0
    %v557 = vadd.f32 %v516, %v556
    %v558 = vpop.f32.mrf.mxu0
    %559 = vdwg.mxu0
    %560 = vmatprep.subr.bf16.mxu0 0
    %561 = vmatpush1.bf16.msra.mxu0 %v421
    %562 = vmatprep.subr.bf16.mxu0 0
    %563 = vmatpush1.bf16.msra.mxu0 %v420
    %564 = vmatprep.subr.bf16.mxu0 0
    %565 = vmatpush1.bf16.msra.mxu0 %v419
    %566 = vmatprep.subr.bf16.mxu0 0
    %567 = vmatpush1.bf16.msra.mxu0 %v418
    %568 = vmatprep.subr.bf16.mxu0 0
    %569 = vmatpush1.bf16.msra.mxu0 %v417
    %570 = vmatprep.subr.bf16.mxu0 0
    %571 = vmatpush1.bf16.msra.mxu0 %v416
    %572 = vmatprep.subr.bf16.mxu0 0
    %573 = vmatpush1.bf16.msra.mxu0 %v415
    %574 = vmatprep.subr.bf16.mxu0 0
    %575 = vmatpush1.bf16.msra.mxu0 %v414
    %576 = vmatprep.subr.bf16.mxu0 0
    %577 = vmatpush2.bf16.msra.mxu0 %v429
    %578 = vmatprep.subr.bf16.mxu0 0
    %579 = vmatpush2.bf16.msra.mxu0 %v428
    %580 = vmatprep.subr.bf16.mxu0 0
    %581 = vmatpush2.bf16.msra.mxu0 %v427
    %582 = vmatprep.subr.bf16.mxu0 0
    %583 = vmatpush2.bf16.msra.mxu0 %v426
    %584 = vmatprep.subr.bf16.mxu0 0
    %585 = vmatpush2.bf16.msra.mxu0 %v425
    %586 = vmatprep.subr.bf16.mxu0 0
    %587 = vmatpush2.bf16.msra.mxu0 %v424
    %588 = vmatprep.subr.bf16.mxu0 0
    %589 = vmatpush2.bf16.msra.mxu0 %v423
    %590 = vmatprep.subr.bf16.mxu0 0
    %591 = vmatpush2.bf16.msra.mxu0 %v422
    %592 = vmatprep.mubr.bf16.mxu0 %v183
    %593 = vmatmul.mubr.bf16.gmra.mxu0 %v182
    %v594 = vpop.f32.mrf.mxu0
    %v595 = vadd.f32 %v554, %v594
    %v596 = vpop.f32.mrf.mxu0
    %v597 = vpop.f32.mrf.mxu0
    %v598 = vadd.f32 %v557, %v597
    %v599 = vpop.f32.mrf.mxu0
    %600 = vdwg.mxu0
    %v601 = vld [vmem:[%s2] sm:$0xff]
    %v602 = vld [vmem:[%s2 + $0x8] sm:$0x3]
    %v603 = vadd.f32 %v601, %v595
    %v604 = vadd.f32 %v602, %v598
    %v605 = vld [vmem:[%s5] sm:$0x1]
    %v606 = vld [vmem:[%s5 + $0x1] sm:$0x1]
    %vm607 = vcmask 261120
    %v608 = vsel %vm607, %v603, 0.0
    %609 = vadd.xlane.f32.xlu0 %v608
    %v610 = vpop.xlane.xlu0 %609
    %vm611 = vcmask 254976
    %v612 = vsel %vm611, %v604, 0.0
    %613 = vadd.xlane.f32.xlu0 %v612
    %v614 = vpop.xlane.xlu0 %613
    %v615 = vrcp.pop 32.0
    %v616 = vmul.f32 %v610, %v615
    %v617 = vmul.f32 %v614, %v615
    %v618 = vmul.f32 %v603, %v603
    %v619 = vmul.f32 %v604, %v604
    %v620 = vsel %vm607, %v618, 0.0
    %621 = vadd.xlane.f32.xlu0 %v620
    %v622 = vpop.xlane.xlu0 %621
    %v623 = vsel %vm611, %v619, 0.0
    %624 = vadd.xlane.f32.xlu0 %v623
    %v625 = vpop.xlane.xlu0 %624
    %v626 = vmul.f32 %v622, %v615
    %v627 = vmul.f32 %v625, %v615
    %v628 = vmul.f32 %v616, %v616
    %v629 = vmul.f32 %v617, %v617
    %v630 = vsub.f32 %v626, %v628
    %v631 = vsub.f32 %v627, %v629
    %v632 = vsub.f32 %v603, %v616
    %v633 = vsub.f32 %v604, %v617
    %v634 = vadd.f32 %v630, 1e-05
    %v635 = vadd.f32 %v631, 1e-05
    %v636 = vrsqrt.pop %v634
    %v637 = vrsqrt.pop %v635
    %v638 = vmul.f32 %v632, %v636
    %v639 = vmul.f32 %v633, %v637
    %v640 = vlaneseq
    %v641 = vshrl.u32 %v640, 7
    %v642 = vsub.s32 0, %v641
    %v643 = vrot.slane %v605, %v642
    %v644 = vmul.f32 %v638, %v643
    %v645 = vmul.f32 %v639, %v643
    %v646 = vlaneseq
    %v647 = vshrl.u32 %v646, 7
    %v648 = vsub.s32 0, %v647
    %v649 = vrot.slane %v606, %v648
    %v650 = vadd.f32 %v644, %v649
    %v651 = vadd.f32 %v645, %v649
    %v652 = vld [vmem:[%s3] sm:$0xff]
    %v653 = vld [vmem:[%s3 + $0x8] sm:$0x3]
    %v654 = vld [vmem:[%s8] sm:$0xf]
    %v655 = vsel %vm607, %v650, 0.0
    %656 = vadd.xlane.f32.xlu0 %v655
    %v657 = vpop.xlane.xlu0 %656
    %v658 = vsel %vm611, %v651, 0.0
    %659 = vadd.xlane.f32.xlu0 %v658
    %v660 = vpop.xlane.xlu0 %659
    %v661 = vmul.f32 %v657, %v615
    %v662 = vmul.f32 %v660, %v615
    %v663 = vmul.f32 %v650, %v650
    %v664 = vmul.f32 %v651, %v651
    %v665 = vsel %vm607, %v663, 0.0
    %666 = vadd.xlane.f32.xlu0 %v665
    %v667 = vpop.xlane.xlu0 %666
    %v668 = vsel %vm611, %v664, 0.0
    %669 = vadd.xlane.f32.xlu0 %v668
    %v670 = vpop.xlane.xlu0 %669
    %v671 = vmul.f32 %v667, %v615
    %v672 = vmul.f32 %v670, %v615
    %v673 = vmul.f32 %v661, %v661
    %v674 = vmul.f32 %v662, %v662
    %v675 = vsub.f32 %v671, %v673
    %v676 = vsub.f32 %v672, %v674
    %v677 = vsub.f32 %v650, %v661
    %v678 = vsub.f32 %v651, %v662
    %v679 = vadd.f32 %v675, 1e-05
    %v680 = vadd.f32 %v676, 1e-05
    %v681 = vrsqrt.pop %v679
    %v682 = vrsqrt.pop %v680
    %v683 = vmul.f32 %v677, %v681
    %v684 = vmul.f32 %v678, %v682
    %v685 = vlaneseq
    %v686 = vshrl.u32 %v685, 7
    %v687 = vsub.s32 0, %v686
    %v688 = vrot.slane %v654, %v687
    %v689 = vmul.f32 %v683, %v688
    %v690 = vmul.f32 %v684, %v688
    %v691 = vlaneseq
    %v692 = vshrl.u32 %v691, 7
    %v693 = vsub.s32 1, %v692
    %v694 = vrot.slane %v654, %v693
    %v695 = vadd.f32 %v689, %v694
    %v696 = vadd.f32 %v690, %v694
    %v697 = vld [vmem:[%s9] sm:$0xf]
    %v698 = vld [vmem:[%s9 + $0x4] sm:$0xf]
    %v699 = vld [vmem:[%s9 + $0x8] sm:$0xf]
    %v700 = vld [vmem:[%s9 + $0xc] sm:$0xf]
    %v701 = vpack.c.bf16 %v696, %v695
    %v702 = vld [vmem:[%s10] sm:$0x1]
    %v704 = vlaneseq
    %v705 = vshrl.u32 %v704, 7
    %v706 = vsub.s32 0, %v705
    %v707 = vrot.slane %v702, %v706
    %v713 = vunpack.c.l.b16 %v697
    %v714 = vunpack.c.l.b16 %v698
    %v715 = vunpack.c.l.b16 %v699
    %v716 = vunpack.c.l.b16 %v700
    %v717 = vpack.c.b16 %v714, %v713
    %v718 = vpack.c.b16 %v716, %v715
    %v722 = vsel %vm607, %v701, 0
    %724 = vmatprep.subr.bf16.mxu0 0
    %725 = vmatpush1.bf16.msra.mxu0 0
    %726 = vmatprep.subr.bf16.mxu0 0
    %727 = vmatpush1.bf16.msra.mxu0 0
    %728 = vmatprep.subr.bf16.mxu0 0
    %729 = vmatpush1.bf16.msra.mxu0 0
    %730 = vmatprep.subr.bf16.mxu0 0
    %731 = vmatpush1.bf16.msra.mxu0 0
    %732 = vmatprep.subr.bf16.mxu0 0
    %733 = vmatpush1.bf16.msra.mxu0 0
    %734 = vmatprep.subr.bf16.mxu0 0
    %735 = vmatpush1.bf16.msra.mxu0 0
    %736 = vmatprep.subr.bf16.mxu0 0
    %737 = vmatpush1.bf16.msra.mxu0 %v718
    %738 = vmatprep.subr.bf16.mxu0 0
    %739 = vmatpush1.bf16.msra.mxu0 %v717
    %740 = vmatprep.subr.bf16.mxu0 0
    %741 = vmatpush2.bf16.msra.mxu0 0
    %742 = vmatprep.subr.bf16.mxu0 0
    %743 = vmatpush2.bf16.msra.mxu0 0
    %744 = vmatprep.subr.bf16.mxu0 0
    %745 = vmatpush2.bf16.msra.mxu0 0
    %746 = vmatprep.subr.bf16.mxu0 0
    %747 = vmatpush2.bf16.msra.mxu0 0
    %748 = vmatprep.subr.bf16.mxu0 0
    %749 = vmatpush2.bf16.msra.mxu0 0
    %750 = vmatprep.subr.bf16.mxu0 0
    %751 = vmatpush2.bf16.msra.mxu0 0
    %752 = vmatprep.subr.bf16.mxu0 0
    %753 = vmatpush2.bf16.msra.mxu0 0
    %754 = vmatprep.subr.bf16.mxu0 0
    %755 = vmatpush2.bf16.msra.mxu0 0
    %756 = vmatprep.mubr.bf16.mxu0 0
    %757 = vmatmul.mubr.bf16.gmra.mxu0 %v722
    %v758 = vpop.f32.mrf.mxu0
    %v759 = vadd.f32 %v707, %v758
    %v760 = vpop.f32.mrf.mxu0
    %v761 = vpop.f32.mrf.mxu0
    %v762 = vadd.f32 %v707, %v761
    %v763 = vpop.f32.mrf.mxu0
    %764 = vdwg.mxu0
    %v765 = vpack.c.bf16 %v762, %v759
    %767 = vrot.lane.b32.xlu0 %v765, 96
    %v768 = vpop.permute.xlu0 %767
    %vm769 = vcmask 64512
    %v771 = vsel %vm769, %v765, 0
    %v774 = vsel %vm769, %v768, 0
    %776 = vmatprep.subr.bf16.mxu0 0
    %777 = vmatpush1.bf16.xpose.msra.mxu0 0
    %778 = vmatprep.subr.bf16.mxu0 0
    %779 = vmatpush1.bf16.xpose.msra.mxu0 0
    %780 = vmatprep.subr.bf16.mxu0 0
    %781 = vmatpush1.bf16.xpose.msra.mxu0 0
    %782 = vmatprep.subr.bf16.mxu0 0
    %783 = vmatpush1.bf16.xpose.msra.mxu0 0
    %784 = vmatprep.subr.bf16.mxu0 0
    %785 = vmatpush1.bf16.xpose.msra.mxu0 0
    %786 = vmatprep.subr.bf16.mxu0 0
    %787 = vmatpush1.bf16.xpose.msra.mxu0 0
    %788 = vmatprep.subr.bf16.mxu0 0
    %789 = vmatpush1.bf16.xpose.msra.mxu0 0
    %790 = vmatprep.subr.bf16.mxu0 0
    %791 = vmatpush1.bf16.xpose.msra.mxu0 %v774
    %792 = vmatprep.subr.bf16.mxu0 0
    %793 = vmatpush2.bf16.xpose.msra.mxu0 0
    %794 = vmatprep.subr.bf16.mxu0 0
    %795 = vmatpush2.bf16.xpose.msra.mxu0 0
    %796 = vmatprep.subr.bf16.mxu0 0
    %797 = vmatpush2.bf16.xpose.msra.mxu0 0
    %798 = vmatprep.subr.bf16.mxu0 0
    %799 = vmatpush2.bf16.xpose.msra.mxu0 0
    %800 = vmatprep.subr.bf16.mxu0 0
    %801 = vmatpush2.bf16.xpose.msra.mxu0 0
    %802 = vmatprep.subr.bf16.mxu0 0
    %803 = vmatpush2.bf16.xpose.msra.mxu0 0
    %804 = vmatprep.subr.bf16.mxu0 0
    %805 = vmatpush2.bf16.xpose.msra.mxu0 0
    %806 = vmatprep.subr.bf16.mxu0 0
    %807 = vmatpush2.bf16.xpose.msra.mxu0 0
    %808 = vmatprep.mubr.bf16.mxu0 0
    %809 = vmatmul.mubr.bf16.gmra.mxu0 %v771
    %v810 = vpop.f32.mrf.mxu0
    %v811 = vadd.f32 0.0, %v810
    %v812 = vpop.f32.mrf.mxu0
    %v813 = vpop.f32.mrf.mxu0
    %v814 = vadd.f32 0.0, %v813
    %v815 = vpop.f32.mrf.mxu0
    %816 = vdwg.mxu0
    %817 = vrot.lane.b32.xlu0 %v765, 120
    %v818 = vpop.permute.xlu0 %817
    %819 = vrot.lane.b32.xlu0 %v765, 88
    %v820 = vpop.permute.xlu0 %819
    %v822 = vsel %vm769, %v818, 0
    %v825 = vsel %vm769, %v820, 0
    %827 = vmatprep.subr.bf16.mxu0 0
    %828 = vmatpush1.bf16.xpose.msra.mxu0 0
    %829 = vmatprep.subr.bf16.mxu0 0
    %830 = vmatpush1.bf16.xpose.msra.mxu0 0
    %831 = vmatprep.subr.bf16.mxu0 0
    %832 = vmatpush1.bf16.xpose.msra.mxu0 0
    %833 = vmatprep.subr.bf16.mxu0 0
    %834 = vmatpush1.bf16.xpose.msra.mxu0 0
    %835 = vmatprep.subr.bf16.mxu0 0
    %836 = vmatpush1.bf16.xpose.msra.mxu0 0
    %837 = vmatprep.subr.bf16.mxu0 0
    %838 = vmatpush1.bf16.xpose.msra.mxu0 0
    %839 = vmatprep.subr.bf16.mxu0 0
    %840 = vmatpush1.bf16.xpose.msra.mxu0 0
    %841 = vmatprep.subr.bf16.mxu0 0
    %842 = vmatpush1.bf16.xpose.msra.mxu0 %v825
    %843 = vmatprep.subr.bf16.mxu0 0
    %844 = vmatpush2.bf16.xpose.msra.mxu0 0
    %845 = vmatprep.subr.bf16.mxu0 0
    %846 = vmatpush2.bf16.xpose.msra.mxu0 0
    %847 = vmatprep.subr.bf16.mxu0 0
    %848 = vmatpush2.bf16.xpose.msra.mxu0 0
    %849 = vmatprep.subr.bf16.mxu0 0
    %850 = vmatpush2.bf16.xpose.msra.mxu0 0
    %851 = vmatprep.subr.bf16.mxu0 0
    %852 = vmatpush2.bf16.xpose.msra.mxu0 0
    %853 = vmatprep.subr.bf16.mxu0 0
    %854 = vmatpush2.bf16.xpose.msra.mxu0 0
    %855 = vmatprep.subr.bf16.mxu0 0
    %856 = vmatpush2.bf16.xpose.msra.mxu0 0
    %857 = vmatprep.subr.bf16.mxu0 0
    %858 = vmatpush2.bf16.xpose.msra.mxu0 0
    %859 = vmatprep.mubr.bf16.mxu0 0
    %860 = vmatmul.mubr.bf16.gmra.mxu0 %v822
    %v861 = vpop.f32.mrf.mxu0
    %v862 = vadd.f32 0.0, %v861
    %v863 = vpop.f32.mrf.mxu0
    %v864 = vpop.f32.mrf.mxu0
    %v865 = vadd.f32 0.0, %v864
    %v866 = vpop.f32.mrf.mxu0
    %867 = vdwg.mxu0
    %868 = vrot.lane.b32.xlu0 %v765, 112
    %v869 = vpop.permute.xlu0 %868
    %870 = vrot.lane.b32.xlu0 %v765, 80
    %v871 = vpop.permute.xlu0 %870
    %v873 = vsel %vm769, %v869, 0
    %v876 = vsel %vm769, %v871, 0
    %878 = vmatprep.subr.bf16.mxu0 0
    %879 = vmatpush1.bf16.xpose.msra.mxu0 0
    %880 = vmatprep.subr.bf16.mxu0 0
    %881 = vmatpush1.bf16.xpose.msra.mxu0 0
    %882 = vmatprep.subr.bf16.mxu0 0
    %883 = vmatpush1.bf16.xpose.msra.mxu0 0
    %884 = vmatprep.subr.bf16.mxu0 0
    %885 = vmatpush1.bf16.xpose.msra.mxu0 0
    %886 = vmatprep.subr.bf16.mxu0 0
    %887 = vmatpush1.bf16.xpose.msra.mxu0 0
    %888 = vmatprep.subr.bf16.mxu0 0
    %889 = vmatpush1.bf16.xpose.msra.mxu0 0
    %890 = vmatprep.subr.bf16.mxu0 0
    %891 = vmatpush1.bf16.xpose.msra.mxu0 0
    %892 = vmatprep.subr.bf16.mxu0 0
    %893 = vmatpush1.bf16.xpose.msra.mxu0 %v876
    %894 = vmatprep.subr.bf16.mxu0 0
    %895 = vmatpush2.bf16.xpose.msra.mxu0 0
    %896 = vmatprep.subr.bf16.mxu0 0
    %897 = vmatpush2.bf16.xpose.msra.mxu0 0
    %898 = vmatprep.subr.bf16.mxu0 0
    %899 = vmatpush2.bf16.xpose.msra.mxu0 0
    %900 = vmatprep.subr.bf16.mxu0 0
    %901 = vmatpush2.bf16.xpose.msra.mxu0 0
    %902 = vmatprep.subr.bf16.mxu0 0
    %903 = vmatpush2.bf16.xpose.msra.mxu0 0
    %904 = vmatprep.subr.bf16.mxu0 0
    %905 = vmatpush2.bf16.xpose.msra.mxu0 0
    %906 = vmatprep.subr.bf16.mxu0 0
    %907 = vmatpush2.bf16.xpose.msra.mxu0 0
    %908 = vmatprep.subr.bf16.mxu0 0
    %909 = vmatpush2.bf16.xpose.msra.mxu0 0
    %910 = vmatprep.mubr.bf16.mxu0 0
    %911 = vmatmul.mubr.bf16.gmra.mxu0 %v873
    %v912 = vpop.f32.mrf.mxu0
    %v913 = vadd.f32 0.0, %v912
    %v914 = vpop.f32.mrf.mxu0
    %v915 = vpop.f32.mrf.mxu0
    %v916 = vadd.f32 0.0, %v915
    %v917 = vpop.f32.mrf.mxu0
    %918 = vdwg.mxu0
    %919 = vrot.lane.b32.xlu0 %v765, 104
    %v920 = vpop.permute.xlu0 %919
    %921 = vrot.lane.b32.xlu0 %v765, 72
    %v922 = vpop.permute.xlu0 %921
    %v924 = vsel %vm769, %v920, 0
    %v927 = vsel %vm769, %v922, 0
    %929 = vmatprep.subr.bf16.mxu0 0
    %930 = vmatpush1.bf16.xpose.msra.mxu0 0
    %931 = vmatprep.subr.bf16.mxu0 0
    %932 = vmatpush1.bf16.xpose.msra.mxu0 0
    %933 = vmatprep.subr.bf16.mxu0 0
    %934 = vmatpush1.bf16.xpose.msra.mxu0 0
    %935 = vmatprep.subr.bf16.mxu0 0
    %936 = vmatpush1.bf16.xpose.msra.mxu0 0
    %937 = vmatprep.subr.bf16.mxu0 0
    %938 = vmatpush1.bf16.xpose.msra.mxu0 0
    %939 = vmatprep.subr.bf16.mxu0 0
    %940 = vmatpush1.bf16.xpose.msra.mxu0 0
    %941 = vmatprep.subr.bf16.mxu0 0
    %942 = vmatpush1.bf16.xpose.msra.mxu0 0
    %943 = vmatprep.subr.bf16.mxu0 0
    %944 = vmatpush1.bf16.xpose.msra.mxu0 %v927
    %945 = vmatprep.subr.bf16.mxu0 0
    %946 = vmatpush2.bf16.xpose.msra.mxu0 0
    %947 = vmatprep.subr.bf16.mxu0 0
    %948 = vmatpush2.bf16.xpose.msra.mxu0 0
    %949 = vmatprep.subr.bf16.mxu0 0
    %950 = vmatpush2.bf16.xpose.msra.mxu0 0
    %951 = vmatprep.subr.bf16.mxu0 0
    %952 = vmatpush2.bf16.xpose.msra.mxu0 0
    %953 = vmatprep.subr.bf16.mxu0 0
    %954 = vmatpush2.bf16.xpose.msra.mxu0 0
    %955 = vmatprep.subr.bf16.mxu0 0
    %956 = vmatpush2.bf16.xpose.msra.mxu0 0
    %957 = vmatprep.subr.bf16.mxu0 0
    %958 = vmatpush2.bf16.xpose.msra.mxu0 0
    %959 = vmatprep.subr.bf16.mxu0 0
    %960 = vmatpush2.bf16.xpose.msra.mxu0 0
    %961 = vmatprep.mubr.bf16.mxu0 0
    %962 = vmatmul.mubr.bf16.gmra.mxu0 %v924
    %v963 = vpop.f32.mrf.mxu0
    %v964 = vadd.f32 0.0, %v963
    %v965 = vpop.f32.mrf.mxu0
    %v966 = vpop.f32.mrf.mxu0
    %v967 = vadd.f32 0.0, %v966
    %v968 = vpop.f32.mrf.mxu0
    %969 = vdwg.mxu0
    %v970 = vadd.f32 %v811, %v652
    %v971 = vadd.f32 %v814, %v653
    %v972 = vadd.f32 %v862, %v652
    %v973 = vadd.f32 %v865, %v653
    %v974 = vadd.f32 %v913, %v652
    %v975 = vadd.f32 %v916, %v653
    %v976 = vadd.f32 %v964, %v652
    %v977 = vadd.f32 %v967, %v653
    %vm978 = vcmask 80896
    %v979 = vsel %vm978, %v970, -inf
    %980 = vmax.xlane.f32.xlu0 %v979
    %v981 = vpop.xlane.xlu0 %980
    %vm982 = vcmask 74752
    %v983 = vsel %vm982, %v971, -inf
    %984 = vmax.xlane.f32.xlu0 %v983
    %v985 = vpop.xlane.xlu0 %984
    %v986 = vsel %vm978, %v972, -inf
    %987 = vmax.xlane.f32.xlu0 %v986
    %v988 = vpop.xlane.xlu0 %987
    %v989 = vsel %vm982, %v973, -inf
    %990 = vmax.xlane.f32.xlu0 %v989
    %v991 = vpop.xlane.xlu0 %990
    %v992 = vsel %vm978, %v974, -inf
    %993 = vmax.xlane.f32.xlu0 %v992
    %v994 = vpop.xlane.xlu0 %993
    %v995 = vsel %vm982, %v975, -inf
    %996 = vmax.xlane.f32.xlu0 %v995
    %v997 = vpop.xlane.xlu0 %996
    %v998 = vsel %vm978, %v976, -inf
    %999 = vmax.xlane.f32.xlu0 %v998
    %v1000 = vpop.xlane.xlu0 %999
    %v1001 = vsel %vm982, %v977, -inf
    %1002 = vmax.xlane.f32.xlu0 %v1001
    %v1003 = vpop.xlane.xlu0 %1002
    %v1004 = vsub.f32 %v970, %v981
    %v1005 = vsub.f32 %v971, %v985
    %v1006 = vsub.f32 %v972, %v988
    %v1007 = vsub.f32 %v973, %v991
    %v1008 = vsub.f32 %v974, %v994
    %v1009 = vsub.f32 %v975, %v997
    %v1010 = vsub.f32 %v976, %v1000
    %v1011 = vsub.f32 %v977, %v1003
    %v1012 = vmul.f32 %v1004, 1.442695
    %v1013 = vpow.pop %v1012
    %v1014 = vmul.f32 %v1005, 1.442695
    %v1015 = vpow.pop %v1014
    %v1016 = vmul.f32 %v1006, 1.442695
    %v1017 = vpow.pop %v1016
    %v1018 = vmul.f32 %v1007, 1.442695
    %v1019 = vpow.pop %v1018
    %v1020 = vmul.f32 %v1008, 1.442695
    %v1021 = vpow.pop %v1020
    %v1022 = vmul.f32 %v1009, 1.442695
    %v1023 = vpow.pop %v1022
    %v1024 = vmul.f32 %v1010, 1.442695
    %v1025 = vpow.pop %v1024
    %v1026 = vmul.f32 %v1011, 1.442695
    %v1027 = vpow.pop %v1026
    %v1028 = vsel %vm978, %v1013, 0.0
    %1029 = vadd.xlane.f32.xlu0 %v1028
    %v1030 = vpop.xlane.xlu0 %1029
    %v1031 = vsel %vm982, %v1015, 0.0
    %1032 = vadd.xlane.f32.xlu0 %v1031
    %v1033 = vpop.xlane.xlu0 %1032
    %v1034 = vsel %vm978, %v1017, 0.0
    %1035 = vadd.xlane.f32.xlu0 %v1034
    %v1036 = vpop.xlane.xlu0 %1035
    %v1037 = vsel %vm982, %v1019, 0.0
    %1038 = vadd.xlane.f32.xlu0 %v1037
    %v1039 = vpop.xlane.xlu0 %1038
    %v1040 = vsel %vm978, %v1021, 0.0
    %1041 = vadd.xlane.f32.xlu0 %v1040
    %v1042 = vpop.xlane.xlu0 %1041
    %v1043 = vsel %vm982, %v1023, 0.0
    %1044 = vadd.xlane.f32.xlu0 %v1043
    %v1045 = vpop.xlane.xlu0 %1044
    %v1046 = vsel %vm978, %v1025, 0.0
    %1047 = vadd.xlane.f32.xlu0 %v1046
    %v1048 = vpop.xlane.xlu0 %1047
    %v1049 = vsel %vm982, %v1027, 0.0
    %1050 = vadd.xlane.f32.xlu0 %v1049
    %v1051 = vpop.xlane.xlu0 %1050
    %v1052 = vrcp.pop %v1030
    %v1053 = vrcp.pop %v1033
    %v1054 = vrcp.pop %v1036
    %v1055 = vrcp.pop %v1039
    %v1056 = vrcp.pop %v1042
    %v1057 = vrcp.pop %v1045
    %v1058 = vrcp.pop %v1048
    %v1059 = vrcp.pop %v1051
    %v1060 = vmul.f32 %v1013, %v1052
    %v1061 = vmul.f32 %v1015, %v1053
    %v1062 = vmul.f32 %v1017, %v1054
    %v1063 = vmul.f32 %v1019, %v1055
    %v1064 = vmul.f32 %v1021, %v1056
    %v1065 = vmul.f32 %v1023, %v1057
    %v1066 = vmul.f32 %v1025, %v1058
    %v1067 = vmul.f32 %v1027, %v1059
    %v1068 = vpack.c.bf16 %v1061, %v1060
    %1069 = vrot.lane.b32.xlu0 %v765, 64
    %v1070 = vpop.permute.xlu0 %1069
    %v1072 = vsel %vm978, %v1068, 0
    %vm1074 = vcmask 1044480
    %v1076 = vsel %vm1074, %v1070, 0
    %1078 = vmatprep.subr.bf16.mxu0 0
    %1079 = vmatpush1.bf16.msra.mxu0 0
    %1080 = vmatprep.subr.bf16.mxu0 0
    %1081 = vmatpush1.bf16.msra.mxu0 0
    %1082 = vmatprep.subr.bf16.mxu0 0
    %1083 = vmatpush1.bf16.msra.mxu0 0
    %1084 = vmatprep.subr.bf16.mxu0 0
    %1085 = vmatpush1.bf16.msra.mxu0 0
    %1086 = vmatprep.subr.bf16.mxu0 0
    %1087 = vmatpush1.bf16.msra.mxu0 0
    %1088 = vmatprep.subr.bf16.mxu0 0
    %1089 = vmatpush1.bf16.msra.mxu0 0
    %1090 = vmatprep.subr.bf16.mxu0 0
    %1091 = vmatpush1.bf16.msra.mxu0 0
    %1092 = vmatprep.subr.bf16.mxu0 0
    %1093 = vmatpush1.bf16.msra.mxu0 %v1076
    %1094 = vmatprep.subr.bf16.mxu0 0
    %1095 = vmatpush2.bf16.msra.mxu0 0
    %1096 = vmatprep.subr.bf16.mxu0 0
    %1097 = vmatpush2.bf16.msra.mxu0 0
    %1098 = vmatprep.subr.bf16.mxu0 0
    %1099 = vmatpush2.bf16.msra.mxu0 0
    %1100 = vmatprep.subr.bf16.mxu0 0
    %1101 = vmatpush2.bf16.msra.mxu0 0
    %1102 = vmatprep.subr.bf16.mxu0 0
    %1103 = vmatpush2.bf16.msra.mxu0 0
    %1104 = vmatprep.subr.bf16.mxu0 0
    %1105 = vmatpush2.bf16.msra.mxu0 0
    %1106 = vmatprep.subr.bf16.mxu0 0
    %1107 = vmatpush2.bf16.msra.mxu0 0
    %1108 = vmatprep.subr.bf16.mxu0 0
    %1109 = vmatpush2.bf16.msra.mxu0 0
    %1110 = vmatprep.mubr.bf16.mxu0 0
    %1111 = vmatmul.mubr.bf16.gmra.mxu0 %v1072
    %v1112 = vpop.f32.mrf.mxu0
    %v1113 = vadd.f32 0.0, %v1112
    %v1114 = vpop.f32.mrf.mxu0
    %v1115 = vpop.f32.mrf.mxu0
    %v1116 = vadd.f32 0.0, %v1115
    %v1117 = vpop.f32.mrf.mxu0
    %1118 = vdwg.mxu0
    %v1119 = vld [vmem:[%s4] sm:$0x1]
    %v1121 = vlaneseq
    %v1122 = vshrl.u32 %v1121, 7
    %v1123 = vsub.s32 0, %v1122
    %v1124 = vrot.slane %v1119, %v1123
    %v1126 = vmul.f32 %v1113, %v1124
    %v1127 = vmul.f32 %v1116, %v1124
    %v1128 = vpack.c.bf16 %v1063, %v1062
    %v1130 = vsel %vm978, %v1128, 0
    %1132 = vmatprep.subr.bf16.mxu0 0
    %1133 = vmatpush1.bf16.msra.mxu0 0
    %1134 = vmatprep.subr.bf16.mxu0 0
    %1135 = vmatpush1.bf16.msra.mxu0 0
    %1136 = vmatprep.subr.bf16.mxu0 0
    %1137 = vmatpush1.bf16.msra.mxu0 0
    %1138 = vmatprep.subr.bf16.mxu0 0
    %1139 = vmatpush1.bf16.msra.mxu0 0
    %1140 = vmatprep.subr.bf16.mxu0 0
    %1141 = vmatpush1.bf16.msra.mxu0 0
    %1142 = vmatprep.subr.bf16.mxu0 0
    %1143 = vmatpush1.bf16.msra.mxu0 0
    %1144 = vmatprep.subr.bf16.mxu0 0
    %1145 = vmatpush1.bf16.msra.mxu0 0
    %1146 = vmatprep.subr.bf16.mxu0 0
    %1147 = vmatpush1.bf16.msra.mxu0 %v1076
    %1148 = vmatprep.subr.bf16.mxu0 0
    %1149 = vmatpush2.bf16.msra.mxu0 0
    %1150 = vmatprep.subr.bf16.mxu0 0
    %1151 = vmatpush2.bf16.msra.mxu0 0
    %1152 = vmatprep.subr.bf16.mxu0 0
    %1153 = vmatpush2.bf16.msra.mxu0 0
    %1154 = vmatprep.subr.bf16.mxu0 0
    %1155 = vmatpush2.bf16.msra.mxu0 0
    %1156 = vmatprep.subr.bf16.mxu0 0
    %1157 = vmatpush2.bf16.msra.mxu0 0
    %1158 = vmatprep.subr.bf16.mxu0 0
    %1159 = vmatpush2.bf16.msra.mxu0 0
    %1160 = vmatprep.subr.bf16.mxu0 0
    %1161 = vmatpush2.bf16.msra.mxu0 0
    %1162 = vmatprep.subr.bf16.mxu0 0
    %1163 = vmatpush2.bf16.msra.mxu0 0
    %1164 = vmatprep.mubr.bf16.mxu0 0
    %1165 = vmatmul.mubr.bf16.gmra.mxu0 %v1130
    %v1166 = vpop.f32.mrf.mxu0
    %v1167 = vadd.f32 0.0, %v1166
    %v1168 = vpop.f32.mrf.mxu0
    %v1169 = vpop.f32.mrf.mxu0
    %v1170 = vadd.f32 0.0, %v1169
    %v1171 = vpop.f32.mrf.mxu0
    %1172 = vdwg.mxu0
    %s1173 = scalar_lea.vmem %s4, 1
    %v1174 = vld [vmem:[%s1173] sm:$0x1]
    %v1176 = vlaneseq
    %v1177 = vshrl.u32 %v1176, 7
    %v1178 = vsub.s32 0, %v1177
    %v1179 = vrot.slane %v1174, %v1178
    %v1181 = vmul.f32 %v1167, %v1179
    %v1182 = vmul.f32 %v1170, %v1179
    %v1183 = vadd.f32 %v1126, %v1181
    %v1184 = vadd.f32 %v1127, %v1182
    %v1185 = vpack.c.bf16 %v1065, %v1064
    %v1187 = vsel %vm978, %v1185, 0
    %1189 = vmatprep.subr.bf16.mxu0 0
    %1190 = vmatpush1.bf16.msra.mxu0 0
    %1191 = vmatprep.subr.bf16.mxu0 0
    %1192 = vmatpush1.bf16.msra.mxu0 0
    %1193 = vmatprep.subr.bf16.mxu0 0
    %1194 = vmatpush1.bf16.msra.mxu0 0
    %1195 = vmatprep.subr.bf16.mxu0 0
    %1196 = vmatpush1.bf16.msra.mxu0 0
    %1197 = vmatprep.subr.bf16.mxu0 0
    %1198 = vmatpush1.bf16.msra.mxu0 0
    %1199 = vmatprep.subr.bf16.mxu0 0
    %1200 = vmatpush1.bf16.msra.mxu0 0
    %1201 = vmatprep.subr.bf16.mxu0 0
    %1202 = vmatpush1.bf16.msra.mxu0 0
    %1203 = vmatprep.subr.bf16.mxu0 0
    %1204 = vmatpush1.bf16.msra.mxu0 %v1076
    %1205 = vmatprep.subr.bf16.mxu0 0
    %1206 = vmatpush2.bf16.msra.mxu0 0
    %1207 = vmatprep.subr.bf16.mxu0 0
    %1208 = vmatpush2.bf16.msra.mxu0 0
    %1209 = vmatprep.subr.bf16.mxu0 0
    %1210 = vmatpush2.bf16.msra.mxu0 0
    %1211 = vmatprep.subr.bf16.mxu0 0
    %1212 = vmatpush2.bf16.msra.mxu0 0
    %1213 = vmatprep.subr.bf16.mxu0 0
    %1214 = vmatpush2.bf16.msra.mxu0 0
    %1215 = vmatprep.subr.bf16.mxu0 0
    %1216 = vmatpush2.bf16.msra.mxu0 0
    %1217 = vmatprep.subr.bf16.mxu0 0
    %1218 = vmatpush2.bf16.msra.mxu0 0
    %1219 = vmatprep.subr.bf16.mxu0 0
    %1220 = vmatpush2.bf16.msra.mxu0 0
    %1221 = vmatprep.mubr.bf16.mxu0 0
    %1222 = vmatmul.mubr.bf16.gmra.mxu0 %v1187
    %v1223 = vpop.f32.mrf.mxu0
    %v1224 = vadd.f32 0.0, %v1223
    %v1225 = vpop.f32.mrf.mxu0
    %v1226 = vpop.f32.mrf.mxu0
    %v1227 = vadd.f32 0.0, %v1226
    %v1228 = vpop.f32.mrf.mxu0
    %1229 = vdwg.mxu0
    %s1230 = scalar_lea.vmem %s4, 2
    %v1231 = vld [vmem:[%s1230] sm:$0x1]
    %v1233 = vlaneseq
    %v1234 = vshrl.u32 %v1233, 7
    %v1235 = vsub.s32 0, %v1234
    %v1236 = vrot.slane %v1231, %v1235
    %v1238 = vmul.f32 %v1224, %v1236
    %v1239 = vmul.f32 %v1227, %v1236
    %v1240 = vadd.f32 %v1183, %v1238
    %v1241 = vadd.f32 %v1184, %v1239
    %v1242 = vpack.c.bf16 %v1067, %v1066
    %v1244 = vsel %vm978, %v1242, 0
    %1246 = vmatprep.subr.bf16.mxu0 0
    %1247 = vmatpush1.bf16.msra.mxu0 0
    %1248 = vmatprep.subr.bf16.mxu0 0
    %1249 = vmatpush1.bf16.msra.mxu0 0
    %1250 = vmatprep.subr.bf16.mxu0 0
    %1251 = vmatpush1.bf16.msra.mxu0 0
    %1252 = vmatprep.subr.bf16.mxu0 0
    %1253 = vmatpush1.bf16.msra.mxu0 0
    %1254 = vmatprep.subr.bf16.mxu0 0
    %1255 = vmatpush1.bf16.msra.mxu0 0
    %1256 = vmatprep.subr.bf16.mxu0 0
    %1257 = vmatpush1.bf16.msra.mxu0 0
    %1258 = vmatprep.subr.bf16.mxu0 0
    %1259 = vmatpush1.bf16.msra.mxu0 0
    %1260 = vmatprep.subr.bf16.mxu0 0
    %1261 = vmatpush1.bf16.msra.mxu0 %v1076
    %1262 = vmatprep.subr.bf16.mxu0 0
    %1263 = vmatpush2.bf16.msra.mxu0 0
    %1264 = vmatprep.subr.bf16.mxu0 0
    %1265 = vmatpush2.bf16.msra.mxu0 0
    %1266 = vmatprep.subr.bf16.mxu0 0
    %1267 = vmatpush2.bf16.msra.mxu0 0
    %1268 = vmatprep.subr.bf16.mxu0 0
    %1269 = vmatpush2.bf16.msra.mxu0 0
    %1270 = vmatprep.subr.bf16.mxu0 0
    %1271 = vmatpush2.bf16.msra.mxu0 0
    %1272 = vmatprep.subr.bf16.mxu0 0
    %1273 = vmatpush2.bf16.msra.mxu0 0
    %1274 = vmatprep.subr.bf16.mxu0 0
    %1275 = vmatpush2.bf16.msra.mxu0 0
    %1276 = vmatprep.subr.bf16.mxu0 0
    %1277 = vmatpush2.bf16.msra.mxu0 0
    %1278 = vmatprep.mubr.bf16.mxu0 0
    %1279 = vmatmul.mubr.bf16.gmra.mxu0 %v1244
    %v1280 = vpop.f32.mrf.mxu0
    %v1281 = vadd.f32 0.0, %v1280
    %v1282 = vpop.f32.mrf.mxu0
    %v1283 = vpop.f32.mrf.mxu0
    %v1284 = vadd.f32 0.0, %v1283
    %v1285 = vpop.f32.mrf.mxu0
    %1286 = vdwg.mxu0
    %s1287 = scalar_lea.vmem %s4, 3
    %v1288 = vld [vmem:[%s1287] sm:$0x1]
    %v1290 = vlaneseq
    %v1291 = vshrl.u32 %v1290, 7
    %v1292 = vsub.s32 0, %v1291
    %v1293 = vrot.slane %v1288, %v1292
    %v1295 = vmul.f32 %v1281, %v1293
    %v1296 = vmul.f32 %v1284, %v1293
    %v1297 = vadd.f32 %v1240, %v1295
    %v1298 = vadd.f32 %v1241, %v1296
    %v1299 = vld [vmem:[%s11] sm:$0xf]
    %v1300 = vld [vmem:[%s11 + $0x4] sm:$0xf]
    %v1301 = vld [vmem:[%s11 + $0x8] sm:$0xf]
    %v1302 = vld [vmem:[%s11 + $0xc] sm:$0xf]
    %v1303 = vpack.c.bf16 %v1298, %v1297
    %v1308 = vunpack.c.l.b16 %v1299
    %v1309 = vunpack.c.l.b16 %v1300
    %v1310 = vunpack.c.l.b16 %v1301
    %v1311 = vunpack.c.l.b16 %v1302
    %v1312 = vpack.c.b16 %v1309, %v1308
    %v1313 = vpack.c.b16 %v1311, %v1310
    %v1317 = vsel %vm607, %v1303, 0
    %1319 = vmatprep.subr.bf16.mxu0 0
    %1320 = vmatpush1.bf16.msra.mxu0 0
    %1321 = vmatprep.subr.bf16.mxu0 0
    %1322 = vmatpush1.bf16.msra.mxu0 0
    %1323 = vmatprep.subr.bf16.mxu0 0
    %1324 = vmatpush1.bf16.msra.mxu0 0
    %1325 = vmatprep.subr.bf16.mxu0 0
    %1326 = vmatpush1.bf16.msra.mxu0 0
    %1327 = vmatprep.subr.bf16.mxu0 0
    %1328 = vmatpush1.bf16.msra.mxu0 0
    %1329 = vmatprep.subr.bf16.mxu0 0
    %1330 = vmatpush1.bf16.msra.mxu0 0
    %1331 = vmatprep.subr.bf16.mxu0 0
    %1332 = vmatpush1.bf16.msra.mxu0 %v1313
    %1333 = vmatprep.subr.bf16.mxu0 0
    %1334 = vmatpush1.bf16.msra.mxu0 %v1312
    %1335 = vmatprep.subr.bf16.mxu0 0
    %1336 = vmatpush2.bf16.msra.mxu0 0
    %1337 = vmatprep.subr.bf16.mxu0 0
    %1338 = vmatpush2.bf16.msra.mxu0 0
    %1339 = vmatprep.subr.bf16.mxu0 0
    %1340 = vmatpush2.bf16.msra.mxu0 0
    %1341 = vmatprep.subr.bf16.mxu0 0
    %1342 = vmatpush2.bf16.msra.mxu0 0
    %1343 = vmatprep.subr.bf16.mxu0 0
    %1344 = vmatpush2.bf16.msra.mxu0 0
    %1345 = vmatprep.subr.bf16.mxu0 0
    %1346 = vmatpush2.bf16.msra.mxu0 0
    %1347 = vmatprep.subr.bf16.mxu0 0
    %1348 = vmatpush2.bf16.msra.mxu0 0
    %1349 = vmatprep.subr.bf16.mxu0 0
    %1350 = vmatpush2.bf16.msra.mxu0 0
    %1351 = vmatprep.mubr.bf16.mxu0 0
    %1352 = vmatmul.mubr.bf16.gmra.mxu0 %v1317
    %v1353 = vpop.f32.mrf.mxu0
    %v1354 = vadd.f32 0.0, %v1353
    %v1355 = vpop.f32.mrf.mxu0
    %v1356 = vpop.f32.mrf.mxu0
    %v1357 = vadd.f32 0.0, %v1356
    %v1358 = vpop.f32.mrf.mxu0
    %1359 = vdwg.mxu0
    %v1360 = vadd.f32 %v650, %v1354
    %v1361 = vadd.f32 %v651, %v1357
    %v1362 = vld [vmem:[%s12] sm:$0x1]
    %v1364 = vlaneseq
    %v1365 = vshrl.u32 %v1364, 7
    %v1366 = vsub.s32 0, %v1365
    %v1367 = vrot.slane %v1362, %v1366
    %v1369 = vadd.f32 %v1360, %v1367
    %v1370 = vadd.f32 %v1361, %v1367
    %v1371 = vsel %vm607, %v1369, 0.0
    %1372 = vadd.xlane.f32.xlu0 %v1371
    %v1373 = vpop.xlane.xlu0 %1372
    %v1374 = vsel %vm611, %v1370, 0.0
    %1375 = vadd.xlane.f32.xlu0 %v1374
    %v1376 = vpop.xlane.xlu0 %1375
    %v1377 = vmul.f32 %v1373, %v615
    %v1378 = vmul.f32 %v1376, %v615
    %v1379 = vmul.f32 %v1369, %v1369
    %v1380 = vmul.f32 %v1370, %v1370
    %v1381 = vsel %vm607, %v1379, 0.0
    %1382 = vadd.xlane.f32.xlu0 %v1381
    %v1383 = vpop.xlane.xlu0 %1382
    %v1384 = vsel %vm611, %v1380, 0.0
    %1385 = vadd.xlane.f32.xlu0 %v1384
    %v1386 = vpop.xlane.xlu0 %1385
    %v1387 = vmul.f32 %v1383, %v615
    %v1388 = vmul.f32 %v1386, %v615
    %v1389 = vmul.f32 %v1377, %v1377
    %v1390 = vmul.f32 %v1378, %v1378
    %v1391 = vsub.f32 %v1387, %v1389
    %v1392 = vsub.f32 %v1388, %v1390
    %v1393 = vsub.f32 %v1369, %v1377
    %v1394 = vsub.f32 %v1370, %v1378
    %v1395 = vadd.f32 %v1391, 1e-05
    %v1396 = vadd.f32 %v1392, 1e-05
    %v1397 = vrsqrt.pop %v1395
    %v1398 = vrsqrt.pop %v1396
    %v1399 = vmul.f32 %v1393, %v1397
    %v1400 = vmul.f32 %v1394, %v1398
    %v1401 = vlaneseq
    %v1402 = vshrl.u32 %v1401, 7
    %v1403 = vsub.s32 2, %v1402
    %v1404 = vrot.slane %v654, %v1403
    %v1405 = vmul.f32 %v1399, %v1404
    %v1406 = vmul.f32 %v1400, %v1404
    %v1407 = vlaneseq
    %v1408 = vshrl.u32 %v1407, 7
    %v1409 = vsub.s32 3, %v1408
    %v1410 = vrot.slane %v654, %v1409
    %v1411 = vadd.f32 %v1405, %v1410
    %v1412 = vadd.f32 %v1406, %v1410
    %v1413 = vld [vmem:[%s13] sm:$0xf]
    %v1414 = vld [vmem:[%s13 + $0x4] sm:$0xf]
    %v1415 = vld [vmem:[%s13 + $0x8] sm:$0xf]
    %v1416 = vld [vmem:[%s13 + $0xc] sm:$0xf]
    %v1417 = vpack.c.bf16 %v1412, %v1411
    %v1418 = vld [vmem:[%s14] sm:$0x1]
    %v1420 = vlaneseq
    %v1421 = vshrl.u32 %v1420, 7
    %v1422 = vsub.s32 0, %v1421
    %v1423 = vrot.slane %v1418, %v1422
    %v1429 = vunpack.c.l.b16 %v1413
    %v1430 = vunpack.c.l.b16 %v1414
    %v1431 = vunpack.c.l.b16 %v1415
    %v1432 = vunpack.c.l.b16 %v1416
    %v1433 = vpack.c.b16 %v1430, %v1429
    %v1434 = vpack.c.b16 %v1432, %v1431
    %v1438 = vsel %vm607, %v1417, 0
    %1440 = vmatprep.subr.bf16.mxu0 0
    %1441 = vmatpush1.bf16.msra.mxu0 0
    %1442 = vmatprep.subr.bf16.mxu0 0
    %1443 = vmatpush1.bf16.msra.mxu0 0
    %1444 = vmatprep.subr.bf16.mxu0 0
    %1445 = vmatpush1.bf16.msra.mxu0 0
    %1446 = vmatprep.subr.bf16.mxu0 0
    %1447 = vmatpush1.bf16.msra.mxu0 0
    %1448 = vmatprep.subr.bf16.mxu0 0
    %1449 = vmatpush1.bf16.msra.mxu0 0
    %1450 = vmatprep.subr.bf16.mxu0 0
    %1451 = vmatpush1.bf16.msra.mxu0 0
    %1452 = vmatprep.subr.bf16.mxu0 0
    %1453 = vmatpush1.bf16.msra.mxu0 %v1434
    %1454 = vmatprep.subr.bf16.mxu0 0
    %1455 = vmatpush1.bf16.msra.mxu0 %v1433
    %1456 = vmatprep.subr.bf16.mxu0 0
    %1457 = vmatpush2.bf16.msra.mxu0 0
    %1458 = vmatprep.subr.bf16.mxu0 0
    %1459 = vmatpush2.bf16.msra.mxu0 0
    %1460 = vmatprep.subr.bf16.mxu0 0
    %1461 = vmatpush2.bf16.msra.mxu0 0
    %1462 = vmatprep.subr.bf16.mxu0 0
    %1463 = vmatpush2.bf16.msra.mxu0 0
    %1464 = vmatprep.subr.bf16.mxu0 0
    %1465 = vmatpush2.bf16.msra.mxu0 0
    %1466 = vmatprep.subr.bf16.mxu0 0
    %1467 = vmatpush2.bf16.msra.mxu0 0
    %1468 = vmatprep.subr.bf16.mxu0 0
    %1469 = vmatpush2.bf16.msra.mxu0 0
    %1470 = vmatprep.subr.bf16.mxu0 0
    %1471 = vmatpush2.bf16.msra.mxu0 0
    %1472 = vmatprep.mubr.bf16.mxu0 0
    %1473 = vmatmul.mubr.bf16.gmra.mxu0 %v1438
    %v1474 = vpop.f32.mrf.mxu0
    %v1475 = vadd.f32 %v1423, %v1474
    %v1476 = vpop.f32.mrf.mxu0
    %v1477 = vpop.f32.mrf.mxu0
    %v1478 = vadd.f32 %v1423, %v1477
    %v1479 = vpop.f32.mrf.mxu0
    %1480 = vdwg.mxu0
    %v1481 = vmul.f32 %v1475, 1.702
    %v1482 = vmul.f32 %v1478, 1.702
    %v1483 = vxor.u32 %v1481, 2147483648
    %v1484 = vxor.u32 %v1482, 2147483648
    %v1485 = vmul.f32 %v1483, 1.442695
    %v1486 = vpow.pop %v1485
    %v1487 = vmul.f32 %v1484, 1.442695
    %v1488 = vpow.pop %v1487
    %v1489 = vadd.f32 %v1486, 1.0
    %v1490 = vadd.f32 %v1488, 1.0
    %v1491 = vrcp.pop %v1489
    %v1492 = vmul.f32 1.0, %v1491
    %v1493 = vrcp.pop %v1490
    %v1494 = vmul.f32 1.0, %v1493
    %v1495 = vmul.f32 %v1475, %v1492
    %v1496 = vmul.f32 %v1478, %v1494
    %v1497 = vld [vmem:[%s15] sm:$0xf]
    %v1498 = vld [vmem:[%s15 + $0x4] sm:$0xf]
    %v1499 = vld [vmem:[%s15 + $0x8] sm:$0xf]
    %v1500 = vld [vmem:[%s15 + $0xc] sm:$0xf]
    %v1501 = vld [vmem:[%s15 + $0x10] sm:$0xf]
    %v1502 = vld [vmem:[%s15 + $0x14] sm:$0xf]
    %v1503 = vld [vmem:[%s15 + $0x18] sm:$0xf]
    %v1504 = vld [vmem:[%s15 + $0x1c] sm:$0xf]
    %v1505 = vld [vmem:[%s15 + $0x20] sm:$0xf]
    %v1506 = vld [vmem:[%s15 + $0x24] sm:$0xf]
    %v1507 = vld [vmem:[%s15 + $0x28] sm:$0xf]
    %v1508 = vld [vmem:[%s15 + $0x2c] sm:$0xf]
    %v1509 = vld [vmem:[%s15 + $0x30] sm:$0xf]
    %v1510 = vld [vmem:[%s15 + $0x34] sm:$0xf]
    %v1511 = vld [vmem:[%s15 + $0x38] sm:$0xf]
    %v1512 = vld [vmem:[%s15 + $0x3c] sm:$0xf]
    %v1513 = vpack.c.bf16 %v1496, %v1495
    %v1530 = vunpack.c.l.b16 %v1497
    %v1531 = vunpack.c.l.b16 %v1498
    %v1532 = vunpack.c.l.b16 %v1499
    %v1533 = vunpack.c.l.b16 %v1500
    %v1534 = vunpack.c.l.b16 %v1501
    %v1535 = vunpack.c.l.b16 %v1502
    %v1536 = vunpack.c.l.b16 %v1503
    %v1537 = vunpack.c.l.b16 %v1504
    %v1538 = vunpack.c.l.b16 %v1505
    %v1539 = vunpack.c.l.b16 %v1506
    %v1540 = vunpack.c.l.b16 %v1507
    %v1541 = vunpack.c.l.b16 %v1508
    %v1542 = vunpack.c.l.b16 %v1509
    %v1543 = vunpack.c.l.b16 %v1510
    %v1544 = vunpack.c.l.b16 %v1511
    %v1545 = vunpack.c.l.b16 %v1512
    %v1546 = vpack.c.b16 %v1531, %v1530
    %v1547 = vpack.c.b16 %v1533, %v1532
    %v1548 = vpack.c.b16 %v1535, %v1534
    %v1549 = vpack.c.b16 %v1537, %v1536
    %v1550 = vpack.c.b16 %v1539, %v1538
    %v1551 = vpack.c.b16 %v1541, %v1540
    %v1552 = vpack.c.b16 %v1543, %v1542
    %v1553 = vpack.c.b16 %v1545, %v1544
    %1562 = vmatprep.subr.bf16.mxu0 0
    %1563 = vmatpush1.bf16.msra.mxu0 %v1553
    %1564 = vmatprep.subr.bf16.mxu0 0
    %1565 = vmatpush1.bf16.msra.mxu0 %v1552
    %1566 = vmatprep.subr.bf16.mxu0 0
    %1567 = vmatpush1.bf16.msra.mxu0 %v1551
    %1568 = vmatprep.subr.bf16.mxu0 0
    %1569 = vmatpush1.bf16.msra.mxu0 %v1550
    %1570 = vmatprep.subr.bf16.mxu0 0
    %1571 = vmatpush1.bf16.msra.mxu0 %v1549
    %1572 = vmatprep.subr.bf16.mxu0 0
    %1573 = vmatpush1.bf16.msra.mxu0 %v1548
    %1574 = vmatprep.subr.bf16.mxu0 0
    %1575 = vmatpush1.bf16.msra.mxu0 %v1547
    %1576 = vmatprep.subr.bf16.mxu0 0
    %1577 = vmatpush1.bf16.msra.mxu0 %v1546
    %1578 = vmatprep.subr.bf16.mxu0 0
    %1579 = vmatpush2.bf16.msra.mxu0 0
    %1580 = vmatprep.subr.bf16.mxu0 0
    %1581 = vmatpush2.bf16.msra.mxu0 0
    %1582 = vmatprep.subr.bf16.mxu0 0
    %1583 = vmatpush2.bf16.msra.mxu0 0
    %1584 = vmatprep.subr.bf16.mxu0 0
    %1585 = vmatpush2.bf16.msra.mxu0 0
    %1586 = vmatprep.subr.bf16.mxu0 0
    %1587 = vmatpush2.bf16.msra.mxu0 0
    %1588 = vmatprep.subr.bf16.mxu0 0
    %1589 = vmatpush2.bf16.msra.mxu0 0
    %1590 = vmatprep.subr.bf16.mxu0 0
    %1591 = vmatpush2.bf16.msra.mxu0 0
    %1592 = vmatprep.subr.bf16.mxu0 0
    %1593 = vmatpush2.bf16.msra.mxu0 0
    %1594 = vmatprep.mubr.bf16.mxu0 0
    %1595 = vmatmul.mubr.bf16.gmra.mxu0 %v1513
    %v1596 = vpop.f32.mrf.mxu0
    %v1597 = vadd.f32 0.0, %v1596
    %v1598 = vpop.f32.mrf.mxu0
    %v1599 = vpop.f32.mrf.mxu0
    %v1600 = vadd.f32 0.0, %v1599
    %v1601 = vpop.f32.mrf.mxu0
    %1602 = vdwg.mxu0
    %v1603 = vadd.f32 %v1369, %v1597
    %v1604 = vadd.f32 %v1370, %v1600
    %v1605 = vld [vmem:[%s16] sm:$0x1]
    %v1607 = vlaneseq
    %v1608 = vshrl.u32 %v1607, 7
    %v1609 = vsub.s32 0, %v1608
    %v1610 = vrot.slane %v1605, %v1609
    %v1612 = vadd.f32 %v1603, %v1610
    %v1613 = vadd.f32 %v1604, %v1610
    %s1614 = scalar_lea.vmem %s8, 4
    %v1615 = vld [vmem:[%s1614] sm:$0xf]
    %v1616 = vsel %vm607, %v1612, 0.0
    %1617 = vadd.xlane.f32.xlu0 %v1616
    %v1618 = vpop.xlane.xlu0 %1617
    %v1619 = vsel %vm611, %v1613, 0.0
    %1620 = vadd.xlane.f32.xlu0 %v1619
    %v1621 = vpop.xlane.xlu0 %1620
    %v1622 = vmul.f32 %v1618, %v615
    %v1623 = vmul.f32 %v1621, %v615
    %v1624 = vmul.f32 %v1612, %v1612
    %v1625 = vmul.f32 %v1613, %v1613
    %v1626 = vsel %vm607, %v1624, 0.0
    %1627 = vadd.xlane.f32.xlu0 %v1626
    %v1628 = vpop.xlane.xlu0 %1627
    %v1629 = vsel %vm611, %v1625, 0.0
    %1630 = vadd.xlane.f32.xlu0 %v1629
    %v1631 = vpop.xlane.xlu0 %1630
    %v1632 = vmul.f32 %v1628, %v615
    %v1633 = vmul.f32 %v1631, %v615
    %v1634 = vmul.f32 %v1622, %v1622
    %v1635 = vmul.f32 %v1623, %v1623
    %v1636 = vsub.f32 %v1632, %v1634
    %v1637 = vsub.f32 %v1633, %v1635
    %v1638 = vsub.f32 %v1612, %v1622
    %v1639 = vsub.f32 %v1613, %v1623
    %v1640 = vadd.f32 %v1636, 1e-05
    %v1641 = vadd.f32 %v1637, 1e-05
    %v1642 = vrsqrt.pop %v1640
    %v1643 = vrsqrt.pop %v1641
    %v1644 = vmul.f32 %v1638, %v1642
    %v1645 = vmul.f32 %v1639, %v1643
    %v1646 = vlaneseq
    %v1647 = vshrl.u32 %v1646, 7
    %v1648 = vsub.s32 0, %v1647
    %v1649 = vrot.slane %v1615, %v1648
    %v1650 = vmul.f32 %v1644, %v1649
    %v1651 = vmul.f32 %v1645, %v1649
    %v1652 = vlaneseq
    %v1653 = vshrl.u32 %v1652, 7
    %v1654 = vsub.s32 1, %v1653
    %v1655 = vrot.slane %v1615, %v1654
    %v1656 = vadd.f32 %v1650, %v1655
    %v1657 = vadd.f32 %v1651, %v1655
    %s1658 = scalar_lea.vmem %s9, 16
    %v1659 = vld [vmem:[%s1658] sm:$0xf]
    %v1660 = vld [vmem:[%s1658 + $0x4] sm:$0xf]
    %v1661 = vld [vmem:[%s1658 + $0x8] sm:$0xf]
    %v1662 = vld [vmem:[%s1658 + $0xc] sm:$0xf]
    %v1663 = vpack.c.bf16 %v1657, %v1656
    %s1664 = scalar_lea.vmem %s10, 1
    %v1665 = vld [vmem:[%s1664] sm:$0x1]
    %v1667 = vlaneseq
    %v1668 = vshrl.u32 %v1667, 7
    %v1669 = vsub.s32 0, %v1668
    %v1670 = vrot.slane %v1665, %v1669
    %v1676 = vunpack.c.l.b16 %v1659
    %v1677 = vunpack.c.l.b16 %v1660
    %v1678 = vunpack.c.l.b16 %v1661
    %v1679 = vunpack.c.l.b16 %v1662
    %v1680 = vpack.c.b16 %v1677, %v1676
    %v1681 = vpack.c.b16 %v1679, %v1678
    %v1685 = vsel %vm607, %v1663, 0
    %1687 = vmatprep.subr.bf16.mxu0 0
    %1688 = vmatpush1.bf16.msra.mxu0 0
    %1689 = vmatprep.subr.bf16.mxu0 0
    %1690 = vmatpush1.bf16.msra.mxu0 0
    %1691 = vmatprep.subr.bf16.mxu0 0
    %1692 = vmatpush1.bf16.msra.mxu0 0
    %1693 = vmatprep.subr.bf16.mxu0 0
    %1694 = vmatpush1.bf16.msra.mxu0 0
    %1695 = vmatprep.subr.bf16.mxu0 0
    %1696 = vmatpush1.bf16.msra.mxu0 0
    %1697 = vmatprep.subr.bf16.mxu0 0
    %1698 = vmatpush1.bf16.msra.mxu0 0
    %1699 = vmatprep.subr.bf16.mxu0 0
    %1700 = vmatpush1.bf16.msra.mxu0 %v1681
    %1701 = vmatprep.subr.bf16.mxu0 0
    %1702 = vmatpush1.bf16.msra.mxu0 %v1680
    %1703 = vmatprep.subr.bf16.mxu0 0
    %1704 = vmatpush2.bf16.msra.mxu0 0
    %1705 = vmatprep.subr.bf16.mxu0 0
    %1706 = vmatpush2.bf16.msra.mxu0 0
    %1707 = vmatprep.subr.bf16.mxu0 0
    %1708 = vmatpush2.bf16.msra.mxu0 0
    %1709 = vmatprep.subr.bf16.mxu0 0
    %1710 = vmatpush2.bf16.msra.mxu0 0
    %1711 = vmatprep.subr.bf16.mxu0 0
    %1712 = vmatpush2.bf16.msra.mxu0 0
    %1713 = vmatprep.subr.bf16.mxu0 0
    %1714 = vmatpush2.bf16.msra.mxu0 0
    %1715 = vmatprep.subr.bf16.mxu0 0
    %1716 = vmatpush2.bf16.msra.mxu0 0
    %1717 = vmatprep.subr.bf16.mxu0 0
    %1718 = vmatpush2.bf16.msra.mxu0 0
    %1719 = vmatprep.mubr.bf16.mxu0 0
    %1720 = vmatmul.mubr.bf16.gmra.mxu0 %v1685
    %v1721 = vpop.f32.mrf.mxu0
    %v1722 = vadd.f32 %v1670, %v1721
    %v1723 = vpop.f32.mrf.mxu0
    %v1724 = vpop.f32.mrf.mxu0
    %v1725 = vadd.f32 %v1670, %v1724
    %v1726 = vpop.f32.mrf.mxu0
    %1727 = vdwg.mxu0
    %v1728 = vpack.c.bf16 %v1725, %v1722
    %1730 = vrot.lane.b32.xlu0 %v1728, 96
    %v1731 = vpop.permute.xlu0 %1730
    %v1733 = vsel %vm769, %v1728, 0
    %v1736 = vsel %vm769, %v1731, 0
    %1738 = vmatprep.subr.bf16.mxu0 0
    %1739 = vmatpush1.bf16.xpose.msra.mxu0 0
    %1740 = vmatprep.subr.bf16.mxu0 0
    %1741 = vmatpush1.bf16.xpose.msra.mxu0 0
    %1742 = vmatprep.subr.bf16.mxu0 0
    %1743 = vmatpush1.bf16.xpose.msra.mxu0 0
    %1744 = vmatprep.subr.bf16.mxu0 0
    %1745 = vmatpush1.bf16.xpose.msra.mxu0 0
    %1746 = vmatprep.subr.bf16.mxu0 0
    %1747 = vmatpush1.bf16.xpose.msra.mxu0 0
    %1748 = vmatprep.subr.bf16.mxu0 0
    %1749 = vmatpush1.bf16.xpose.msra.mxu0 0
    %1750 = vmatprep.subr.bf16.mxu0 0
    %1751 = vmatpush1.bf16.xpose.msra.mxu0 0
    %1752 = vmatprep.subr.bf16.mxu0 0
    %1753 = vmatpush1.bf16.xpose.msra.mxu0 %v1736
    %1754 = vmatprep.subr.bf16.mxu0 0
    %1755 = vmatpush2.bf16.xpose.msra.mxu0 0
    %1756 = vmatprep.subr.bf16.mxu0 0
    %1757 = vmatpush2.bf16.xpose.msra.mxu0 0
    %1758 = vmatprep.subr.bf16.mxu0 0
    %1759 = vmatpush2.bf16.xpose.msra.mxu0 0
    %1760 = vmatprep.subr.bf16.mxu0 0
    %1761 = vmatpush2.bf16.xpose.msra.mxu0 0
    %1762 = vmatprep.subr.bf16.mxu0 0
    %1763 = vmatpush2.bf16.xpose.msra.mxu0 0
    %1764 = vmatprep.subr.bf16.mxu0 0
    %1765 = vmatpush2.bf16.xpose.msra.mxu0 0
    %1766 = vmatprep.subr.bf16.mxu0 0
    %1767 = vmatpush2.bf16.xpose.msra.mxu0 0
    %1768 = vmatprep.subr.bf16.mxu0 0
    %1769 = vmatpush2.bf16.xpose.msra.mxu0 0
    %1770 = vmatprep.mubr.bf16.mxu0 0
    %1771 = vmatmul.mubr.bf16.gmra.mxu0 %v1733
    %v1772 = vpop.f32.mrf.mxu0
    %v1773 = vadd.f32 0.0, %v1772
    %v1774 = vpop.f32.mrf.mxu0
    %v1775 = vpop.f32.mrf.mxu0
    %v1776 = vadd.f32 0.0, %v1775
    %v1777 = vpop.f32.mrf.mxu0
    %1778 = vdwg.mxu0
    %1779 = vrot.lane.b32.xlu0 %v1728, 120
    %v1780 = vpop.permute.xlu0 %1779
    %1781 = vrot.lane.b32.xlu0 %v1728, 88
    %v1782 = vpop.permute.xlu0 %1781
    %v1784 = vsel %vm769, %v1780, 0
    %v1787 = vsel %vm769, %v1782, 0
    %1789 = vmatprep.subr.bf16.mxu0 0
    %1790 = vmatpush1.bf16.xpose.msra.mxu0 0
    %1791 = vmatprep.subr.bf16.mxu0 0
    %1792 = vmatpush1.bf16.xpose.msra.mxu0 0
    %1793 = vmatprep.subr.bf16.mxu0 0
    %1794 = vmatpush1.bf16.xpose.msra.mxu0 0
    %1795 = vmatprep.subr.bf16.mxu0 0
    %1796 = vmatpush1.bf16.xpose.msra.mxu0 0
    %1797 = vmatprep.subr.bf16.mxu0 0
    %1798 = vmatpush1.bf16.xpose.msra.mxu0 0
    %1799 = vmatprep.subr.bf16.mxu0 0
    %1800 = vmatpush1.bf16.xpose.msra.mxu0 0
    %1801 = vmatprep.subr.bf16.mxu0 0
    %1802 = vmatpush1.bf16.xpose.msra.mxu0 0
    %1803 = vmatprep.subr.bf16.mxu0 0
    %1804 = vmatpush1.bf16.xpose.msra.mxu0 %v1787
    %1805 = vmatprep.subr.bf16.mxu0 0
    %1806 = vmatpush2.bf16.xpose.msra.mxu0 0
    %1807 = vmatprep.subr.bf16.mxu0 0
    %1808 = vmatpush2.bf16.xpose.msra.mxu0 0
    %1809 = vmatprep.subr.bf16.mxu0 0
    %1810 = vmatpush2.bf16.xpose.msra.mxu0 0
    %1811 = vmatprep.subr.bf16.mxu0 0
    %1812 = vmatpush2.bf16.xpose.msra.mxu0 0
    %1813 = vmatprep.subr.bf16.mxu0 0
    %1814 = vmatpush2.bf16.xpose.msra.mxu0 0
    %1815 = vmatprep.subr.bf16.mxu0 0
    %1816 = vmatpush2.bf16.xpose.msra.mxu0 0
    %1817 = vmatprep.subr.bf16.mxu0 0
    %1818 = vmatpush2.bf16.xpose.msra.mxu0 0
    %1819 = vmatprep.subr.bf16.mxu0 0
    %1820 = vmatpush2.bf16.xpose.msra.mxu0 0
    %1821 = vmatprep.mubr.bf16.mxu0 0
    %1822 = vmatmul.mubr.bf16.gmra.mxu0 %v1784
    %v1823 = vpop.f32.mrf.mxu0
    %v1824 = vadd.f32 0.0, %v1823
    %v1825 = vpop.f32.mrf.mxu0
    %v1826 = vpop.f32.mrf.mxu0
    %v1827 = vadd.f32 0.0, %v1826
    %v1828 = vpop.f32.mrf.mxu0
    %1829 = vdwg.mxu0
    %1830 = vrot.lane.b32.xlu0 %v1728, 112
    %v1831 = vpop.permute.xlu0 %1830
    %1832 = vrot.lane.b32.xlu0 %v1728, 80
    %v1833 = vpop.permute.xlu0 %1832
    %v1835 = vsel %vm769, %v1831, 0
    %v1838 = vsel %vm769, %v1833, 0
    %1840 = vmatprep.subr.bf16.mxu0 0
    %1841 = vmatpush1.bf16.xpose.msra.mxu0 0
    %1842 = vmatprep.subr.bf16.mxu0 0
    %1843 = vmatpush1.bf16.xpose.msra.mxu0 0
    %1844 = vmatprep.subr.bf16.mxu0 0
    %1845 = vmatpush1.bf16.xpose.msra.mxu0 0
    %1846 = vmatprep.subr.bf16.mxu0 0
    %1847 = vmatpush1.bf16.xpose.msra.mxu0 0
    %1848 = vmatprep.subr.bf16.mxu0 0
    %1849 = vmatpush1.bf16.xpose.msra.mxu0 0
    %1850 = vmatprep.subr.bf16.mxu0 0
    %1851 = vmatpush1.bf16.xpose.msra.mxu0 0
    %1852 = vmatprep.subr.bf16.mxu0 0
    %1853 = vmatpush1.bf16.xpose.msra.mxu0 0
    %1854 = vmatprep.subr.bf16.mxu0 0
    %1855 = vmatpush1.bf16.xpose.msra.mxu0 %v1838
    %1856 = vmatprep.subr.bf16.mxu0 0
    %1857 = vmatpush2.bf16.xpose.msra.mxu0 0
    %1858 = vmatprep.subr.bf16.mxu0 0
    %1859 = vmatpush2.bf16.xpose.msra.mxu0 0
    %1860 = vmatprep.subr.bf16.mxu0 0
    %1861 = vmatpush2.bf16.xpose.msra.mxu0 0
    %1862 = vmatprep.subr.bf16.mxu0 0
    %1863 = vmatpush2.bf16.xpose.msra.mxu0 0
    %1864 = vmatprep.subr.bf16.mxu0 0
    %1865 = vmatpush2.bf16.xpose.msra.mxu0 0
    %1866 = vmatprep.subr.bf16.mxu0 0
    %1867 = vmatpush2.bf16.xpose.msra.mxu0 0
    %1868 = vmatprep.subr.bf16.mxu0 0
    %1869 = vmatpush2.bf16.xpose.msra.mxu0 0
    %1870 = vmatprep.subr.bf16.mxu0 0
    %1871 = vmatpush2.bf16.xpose.msra.mxu0 0
    %1872 = vmatprep.mubr.bf16.mxu0 0
    %1873 = vmatmul.mubr.bf16.gmra.mxu0 %v1835
    %v1874 = vpop.f32.mrf.mxu0
    %v1875 = vadd.f32 0.0, %v1874
    %v1876 = vpop.f32.mrf.mxu0
    %v1877 = vpop.f32.mrf.mxu0
    %v1878 = vadd.f32 0.0, %v1877
    %v1879 = vpop.f32.mrf.mxu0
    %1880 = vdwg.mxu0
    %1881 = vrot.lane.b32.xlu0 %v1728, 104
    %v1882 = vpop.permute.xlu0 %1881
    %1883 = vrot.lane.b32.xlu0 %v1728, 72
    %v1884 = vpop.permute.xlu0 %1883
    %v1886 = vsel %vm769, %v1882, 0
    %v1889 = vsel %vm769, %v1884, 0
    %1891 = vmatprep.subr.bf16.mxu0 0
    %1892 = vmatpush1.bf16.xpose.msra.mxu0 0
    %1893 = vmatprep.subr.bf16.mxu0 0
    %1894 = vmatpush1.bf16.xpose.msra.mxu0 0
    %1895 = vmatprep.subr.bf16.mxu0 0
    %1896 = vmatpush1.bf16.xpose.msra.mxu0 0
    %1897 = vmatprep.subr.bf16.mxu0 0
    %1898 = vmatpush1.bf16.xpose.msra.mxu0 0
    %1899 = vmatprep.subr.bf16.mxu0 0
    %1900 = vmatpush1.bf16.xpose.msra.mxu0 0
    %1901 = vmatprep.subr.bf16.mxu0 0
    %1902 = vmatpush1.bf16.xpose.msra.mxu0 0
    %1903 = vmatprep.subr.bf16.mxu0 0
    %1904 = vmatpush1.bf16.xpose.msra.mxu0 0
    %1905 = vmatprep.subr.bf16.mxu0 0
    %1906 = vmatpush1.bf16.xpose.msra.mxu0 %v1889
    %1907 = vmatprep.subr.bf16.mxu0 0
    %1908 = vmatpush2.bf16.xpose.msra.mxu0 0
    %1909 = vmatprep.subr.bf16.mxu0 0
    %1910 = vmatpush2.bf16.xpose.msra.mxu0 0
    %1911 = vmatprep.subr.bf16.mxu0 0
    %1912 = vmatpush2.bf16.xpose.msra.mxu0 0
    %1913 = vmatprep.subr.bf16.mxu0 0
    %1914 = vmatpush2.bf16.xpose.msra.mxu0 0
    %1915 = vmatprep.subr.bf16.mxu0 0
    %1916 = vmatpush2.bf16.xpose.msra.mxu0 0
    %1917 = vmatprep.subr.bf16.mxu0 0
    %1918 = vmatpush2.bf16.xpose.msra.mxu0 0
    %1919 = vmatprep.subr.bf16.mxu0 0
    %1920 = vmatpush2.bf16.xpose.msra.mxu0 0
    %1921 = vmatprep.subr.bf16.mxu0 0
    %1922 = vmatpush2.bf16.xpose.msra.mxu0 0
    %1923 = vmatprep.mubr.bf16.mxu0 0
    %1924 = vmatmul.mubr.bf16.gmra.mxu0 %v1886
    %v1925 = vpop.f32.mrf.mxu0
    %v1926 = vadd.f32 0.0, %v1925
    %v1927 = vpop.f32.mrf.mxu0
    %v1928 = vpop.f32.mrf.mxu0
    %v1929 = vadd.f32 0.0, %v1928
    %v1930 = vpop.f32.mrf.mxu0
    %1931 = vdwg.mxu0
    %v1932 = vadd.f32 %v1773, %v652
    %v1933 = vadd.f32 %v1776, %v653
    %v1934 = vadd.f32 %v1824, %v652
    %v1935 = vadd.f32 %v1827, %v653
    %v1936 = vadd.f32 %v1875, %v652
    %v1937 = vadd.f32 %v1878, %v653
    %v1938 = vadd.f32 %v1926, %v652
    %v1939 = vadd.f32 %v1929, %v653
    %v1940 = vsel %vm978, %v1932, -inf
    %1941 = vmax.xlane.f32.xlu0 %v1940
    %v1942 = vpop.xlane.xlu0 %1941
    %v1943 = vsel %vm982, %v1933, -inf
    %1944 = vmax.xlane.f32.xlu0 %v1943
    %v1945 = vpop.xlane.xlu0 %1944
    %v1946 = vsel %vm978, %v1934, -inf
    %1947 = vmax.xlane.f32.xlu0 %v1946
    %v1948 = vpop.xlane.xlu0 %1947
    %v1949 = vsel %vm982, %v1935, -inf
    %1950 = vmax.xlane.f32.xlu0 %v1949
    %v1951 = vpop.xlane.xlu0 %1950
    %v1952 = vsel %vm978, %v1936, -inf
    %1953 = vmax.xlane.f32.xlu0 %v1952
    %v1954 = vpop.xlane.xlu0 %1953
    %v1955 = vsel %vm982, %v1937, -inf
    %1956 = vmax.xlane.f32.xlu0 %v1955
    %v1957 = vpop.xlane.xlu0 %1956
    %v1958 = vsel %vm978, %v1938, -inf
    %1959 = vmax.xlane.f32.xlu0 %v1958
    %v1960 = vpop.xlane.xlu0 %1959
    %v1961 = vsel %vm982, %v1939, -inf
    %1962 = vmax.xlane.f32.xlu0 %v1961
    %v1963 = vpop.xlane.xlu0 %1962
    %v1964 = vsub.f32 %v1932, %v1942
    %v1965 = vsub.f32 %v1933, %v1945
    %v1966 = vsub.f32 %v1934, %v1948
    %v1967 = vsub.f32 %v1935, %v1951
    %v1968 = vsub.f32 %v1936, %v1954
    %v1969 = vsub.f32 %v1937, %v1957
    %v1970 = vsub.f32 %v1938, %v1960
    %v1971 = vsub.f32 %v1939, %v1963
    %v1972 = vmul.f32 %v1964, 1.442695
    %v1973 = vpow.pop %v1972
    %v1974 = vmul.f32 %v1965, 1.442695
    %v1975 = vpow.pop %v1974
    %v1976 = vmul.f32 %v1966, 1.442695
    %v1977 = vpow.pop %v1976
    %v1978 = vmul.f32 %v1967, 1.442695
    %v1979 = vpow.pop %v1978
    %v1980 = vmul.f32 %v1968, 1.442695
    %v1981 = vpow.pop %v1980
    %v1982 = vmul.f32 %v1969, 1.442695
    %v1983 = vpow.pop %v1982
    %v1984 = vmul.f32 %v1970, 1.442695
    %v1985 = vpow.pop %v1984
    %v1986 = vmul.f32 %v1971, 1.442695
    %v1987 = vpow.pop %v1986
    %v1988 = vsel %vm978, %v1973, 0.0
    %1989 = vadd.xlane.f32.xlu0 %v1988
    %v1990 = vpop.xlane.xlu0 %1989
    %v1991 = vsel %vm982, %v1975, 0.0
    %1992 = vadd.xlane.f32.xlu0 %v1991
    %v1993 = vpop.xlane.xlu0 %1992
    %v1994 = vsel %vm978, %v1977, 0.0
    %1995 = vadd.xlane.f32.xlu0 %v1994
    %v1996 = vpop.xlane.xlu0 %1995
    %v1997 = vsel %vm982, %v1979, 0.0
    %1998 = vadd.xlane.f32.xlu0 %v1997
    %v1999 = vpop.xlane.xlu0 %1998
    %v2000 = vsel %vm978, %v1981, 0.0
    %2001 = vadd.xlane.f32.xlu0 %v2000
    %v2002 = vpop.xlane.xlu0 %2001
    %v2003 = vsel %vm982, %v1983, 0.0
    %2004 = vadd.xlane.f32.xlu0 %v2003
    %v2005 = vpop.xlane.xlu0 %2004
    %v2006 = vsel %vm978, %v1985, 0.0
    %2007 = vadd.xlane.f32.xlu0 %v2006
    %v2008 = vpop.xlane.xlu0 %2007
    %v2009 = vsel %vm982, %v1987, 0.0
    %2010 = vadd.xlane.f32.xlu0 %v2009
    %v2011 = vpop.xlane.xlu0 %2010
    %v2012 = vrcp.pop %v1990
    %v2013 = vrcp.pop %v1993
    %v2014 = vrcp.pop %v1996
    %v2015 = vrcp.pop %v1999
    %v2016 = vrcp.pop %v2002
    %v2017 = vrcp.pop %v2005
    %v2018 = vrcp.pop %v2008
    %v2019 = vrcp.pop %v2011
    %v2020 = vmul.f32 %v1973, %v2012
    %v2021 = vmul.f32 %v1975, %v2013
    %v2022 = vmul.f32 %v1977, %v2014
    %v2023 = vmul.f32 %v1979, %v2015
    %v2024 = vmul.f32 %v1981, %v2016
    %v2025 = vmul.f32 %v1983, %v2017
    %v2026 = vmul.f32 %v1985, %v2018
    %v2027 = vmul.f32 %v1987, %v2019
    %v2028 = vpack.c.bf16 %v2021, %v2020
    %2029 = vrot.lane.b32.xlu0 %v1728, 64
    %v2030 = vpop.permute.xlu0 %2029
    %v2032 = vsel %vm978, %v2028, 0
    %v2035 = vsel %vm1074, %v2030, 0
    %2037 = vmatprep.subr.bf16.mxu0 0
    %2038 = vmatpush1.bf16.msra.mxu0 0
    %2039 = vmatprep.subr.bf16.mxu0 0
    %2040 = vmatpush1.bf16.msra.mxu0 0
    %2041 = vmatprep.subr.bf16.mxu0 0
    %2042 = vmatpush1.bf16.msra.mxu0 0
    %2043 = vmatprep.subr.bf16.mxu0 0
    %2044 = vmatpush1.bf16.msra.mxu0 0
    %2045 = vmatprep.subr.bf16.mxu0 0
    %2046 = vmatpush1.bf16.msra.mxu0 0
    %2047 = vmatprep.subr.bf16.mxu0 0
    %2048 = vmatpush1.bf16.msra.mxu0 0
    %2049 = vmatprep.subr.bf16.mxu0 0
    %2050 = vmatpush1.bf16.msra.mxu0 0
    %2051 = vmatprep.subr.bf16.mxu0 0
    %2052 = vmatpush1.bf16.msra.mxu0 %v2035
    %2053 = vmatprep.subr.bf16.mxu0 0
    %2054 = vmatpush2.bf16.msra.mxu0 0
    %2055 = vmatprep.subr.bf16.mxu0 0
    %2056 = vmatpush2.bf16.msra.mxu0 0
    %2057 = vmatprep.subr.bf16.mxu0 0
    %2058 = vmatpush2.bf16.msra.mxu0 0
    %2059 = vmatprep.subr.bf16.mxu0 0
    %2060 = vmatpush2.bf16.msra.mxu0 0
    %2061 = vmatprep.subr.bf16.mxu0 0
    %2062 = vmatpush2.bf16.msra.mxu0 0
    %2063 = vmatprep.subr.bf16.mxu0 0
    %2064 = vmatpush2.bf16.msra.mxu0 0
    %2065 = vmatprep.subr.bf16.mxu0 0
    %2066 = vmatpush2.bf16.msra.mxu0 0
    %2067 = vmatprep.subr.bf16.mxu0 0
    %2068 = vmatpush2.bf16.msra.mxu0 0
    %2069 = vmatprep.mubr.bf16.mxu0 0
    %2070 = vmatmul.mubr.bf16.gmra.mxu0 %v2032
    %v2071 = vpop.f32.mrf.mxu0
    %v2072 = vadd.f32 0.0, %v2071
    %v2073 = vpop.f32.mrf.mxu0
    %v2074 = vpop.f32.mrf.mxu0
    %v2075 = vadd.f32 0.0, %v2074
    %v2076 = vpop.f32.mrf.mxu0
    %2077 = vdwg.mxu0
    %v2078 = vmul.f32 %v2072, %v1124
    %v2079 = vmul.f32 %v2075, %v1124
    %v2080 = vpack.c.bf16 %v2023, %v2022
    %v2082 = vsel %vm978, %v2080, 0
    %2084 = vmatprep.subr.bf16.mxu0 0
    %2085 = vmatpush1.bf16.msra.mxu0 0
    %2086 = vmatprep.subr.bf16.mxu0 0
    %2087 = vmatpush1.bf16.msra.mxu0 0
    %2088 = vmatprep.subr.bf16.mxu0 0
    %2089 = vmatpush1.bf16.msra.mxu0 0
    %2090 = vmatprep.subr.bf16.mxu0 0
    %2091 = vmatpush1.bf16.msra.mxu0 0
    %2092 = vmatprep.subr.bf16.mxu0 0
    %2093 = vmatpush1.bf16.msra.mxu0 0
    %2094 = vmatprep.subr.bf16.mxu0 0
    %2095 = vmatpush1.bf16.msra.mxu0 0
    %2096 = vmatprep.subr.bf16.mxu0 0
    %2097 = vmatpush1.bf16.msra.mxu0 0
    %2098 = vmatprep.subr.bf16.mxu0 0
    %2099 = vmatpush1.bf16.msra.mxu0 %v2035
    %2100 = vmatprep.subr.bf16.mxu0 0
    %2101 = vmatpush2.bf16.msra.mxu0 0
    %2102 = vmatprep.subr.bf16.mxu0 0
    %2103 = vmatpush2.bf16.msra.mxu0 0
    %2104 = vmatprep.subr.bf16.mxu0 0
    %2105 = vmatpush2.bf16.msra.mxu0 0
    %2106 = vmatprep.subr.bf16.mxu0 0
    %2107 = vmatpush2.bf16.msra.mxu0 0
    %2108 = vmatprep.subr.bf16.mxu0 0
    %2109 = vmatpush2.bf16.msra.mxu0 0
    %2110 = vmatprep.subr.bf16.mxu0 0
    %2111 = vmatpush2.bf16.msra.mxu0 0
    %2112 = vmatprep.subr.bf16.mxu0 0
    %2113 = vmatpush2.bf16.msra.mxu0 0
    %2114 = vmatprep.subr.bf16.mxu0 0
    %2115 = vmatpush2.bf16.msra.mxu0 0
    %2116 = vmatprep.mubr.bf16.mxu0 0
    %2117 = vmatmul.mubr.bf16.gmra.mxu0 %v2082
    %v2118 = vpop.f32.mrf.mxu0
    %v2119 = vadd.f32 0.0, %v2118
    %v2120 = vpop.f32.mrf.mxu0
    %v2121 = vpop.f32.mrf.mxu0
    %v2122 = vadd.f32 0.0, %v2121
    %v2123 = vpop.f32.mrf.mxu0
    %2124 = vdwg.mxu0
    %v2125 = vmul.f32 %v2119, %v1179
    %v2126 = vmul.f32 %v2122, %v1179
    %v2127 = vadd.f32 %v2078, %v2125
    %v2128 = vadd.f32 %v2079, %v2126
    %v2129 = vpack.c.bf16 %v2025, %v2024
    %v2131 = vsel %vm978, %v2129, 0
    %2133 = vmatprep.subr.bf16.mxu0 0
    %2134 = vmatpush1.bf16.msra.mxu0 0
    %2135 = vmatprep.subr.bf16.mxu0 0
    %2136 = vmatpush1.bf16.msra.mxu0 0
    %2137 = vmatprep.subr.bf16.mxu0 0
    %2138 = vmatpush1.bf16.msra.mxu0 0
    %2139 = vmatprep.subr.bf16.mxu0 0
    %2140 = vmatpush1.bf16.msra.mxu0 0
    %2141 = vmatprep.subr.bf16.mxu0 0
    %2142 = vmatpush1.bf16.msra.mxu0 0
    %2143 = vmatprep.subr.bf16.mxu0 0
    %2144 = vmatpush1.bf16.msra.mxu0 0
    %2145 = vmatprep.subr.bf16.mxu0 0
    %2146 = vmatpush1.bf16.msra.mxu0 0
    %2147 = vmatprep.subr.bf16.mxu0 0
    %2148 = vmatpush1.bf16.msra.mxu0 %v2035
    %2149 = vmatprep.subr.bf16.mxu0 0
    %2150 = vmatpush2.bf16.msra.mxu0 0
    %2151 = vmatprep.subr.bf16.mxu0 0
    %2152 = vmatpush2.bf16.msra.mxu0 0
    %2153 = vmatprep.subr.bf16.mxu0 0
    %2154 = vmatpush2.bf16.msra.mxu0 0
    %2155 = vmatprep.subr.bf16.mxu0 0
    %2156 = vmatpush2.bf16.msra.mxu0 0
    %2157 = vmatprep.subr.bf16.mxu0 0
    %2158 = vmatpush2.bf16.msra.mxu0 0
    %2159 = vmatprep.subr.bf16.mxu0 0
    %2160 = vmatpush2.bf16.msra.mxu0 0
    %2161 = vmatprep.subr.bf16.mxu0 0
    %2162 = vmatpush2.bf16.msra.mxu0 0
    %2163 = vmatprep.subr.bf16.mxu0 0
    %2164 = vmatpush2.bf16.msra.mxu0 0
    %2165 = vmatprep.mubr.bf16.mxu0 0
    %2166 = vmatmul.mubr.bf16.gmra.mxu0 %v2131
    %v2167 = vpop.f32.mrf.mxu0
    %v2168 = vadd.f32 0.0, %v2167
    %v2169 = vpop.f32.mrf.mxu0
    %v2170 = vpop.f32.mrf.mxu0
    %v2171 = vadd.f32 0.0, %v2170
    %v2172 = vpop.f32.mrf.mxu0
    %2173 = vdwg.mxu0
    %v2174 = vmul.f32 %v2168, %v1236
    %v2175 = vmul.f32 %v2171, %v1236
    %v2176 = vadd.f32 %v2127, %v2174
    %v2177 = vadd.f32 %v2128, %v2175
    %v2178 = vpack.c.bf16 %v2027, %v2026
    %v2180 = vsel %vm978, %v2178, 0
    %2182 = vmatprep.subr.bf16.mxu0 0
    %2183 = vmatpush1.bf16.msra.mxu0 0
    %2184 = vmatprep.subr.bf16.mxu0 0
    %2185 = vmatpush1.bf16.msra.mxu0 0
    %2186 = vmatprep.subr.bf16.mxu0 0
    %2187 = vmatpush1.bf16.msra.mxu0 0
    %2188 = vmatprep.subr.bf16.mxu0 0
    %2189 = vmatpush1.bf16.msra.mxu0 0
    %2190 = vmatprep.subr.bf16.mxu0 0
    %2191 = vmatpush1.bf16.msra.mxu0 0
    %2192 = vmatprep.subr.bf16.mxu0 0
    %2193 = vmatpush1.bf16.msra.mxu0 0
    %2194 = vmatprep.subr.bf16.mxu0 0
    %2195 = vmatpush1.bf16.msra.mxu0 0
    %2196 = vmatprep.subr.bf16.mxu0 0
    %2197 = vmatpush1.bf16.msra.mxu0 %v2035
    %2198 = vmatprep.subr.bf16.mxu0 0
    %2199 = vmatpush2.bf16.msra.mxu0 0
    %2200 = vmatprep.subr.bf16.mxu0 0
    %2201 = vmatpush2.bf16.msra.mxu0 0
    %2202 = vmatprep.subr.bf16.mxu0 0
    %2203 = vmatpush2.bf16.msra.mxu0 0
    %2204 = vmatprep.subr.bf16.mxu0 0
    %2205 = vmatpush2.bf16.msra.mxu0 0
    %2206 = vmatprep.subr.bf16.mxu0 0
    %2207 = vmatpush2.bf16.msra.mxu0 0
    %2208 = vmatprep.subr.bf16.mxu0 0
    %2209 = vmatpush2.bf16.msra.mxu0 0
    %2210 = vmatprep.subr.bf16.mxu0 0
    %2211 = vmatpush2.bf16.msra.mxu0 0
    %2212 = vmatprep.subr.bf16.mxu0 0
    %2213 = vmatpush2.bf16.msra.mxu0 0
    %2214 = vmatprep.mubr.bf16.mxu0 0
    %2215 = vmatmul.mubr.bf16.gmra.mxu0 %v2180
    %v2216 = vpop.f32.mrf.mxu0
    %v2217 = vadd.f32 0.0, %v2216
    %v2218 = vpop.f32.mrf.mxu0
    %v2219 = vpop.f32.mrf.mxu0
    %v2220 = vadd.f32 0.0, %v2219
    %v2221 = vpop.f32.mrf.mxu0
    %2222 = vdwg.mxu0
    %v2223 = vmul.f32 %v2217, %v1293
    %v2224 = vmul.f32 %v2220, %v1293
    %v2225 = vadd.f32 %v2176, %v2223
    %v2226 = vadd.f32 %v2177, %v2224
    %s2227 = scalar_lea.vmem %s11, 16
    %v2228 = vld [vmem:[%s2227] sm:$0xf]
    %v2229 = vld [vmem:[%s2227 + $0x4] sm:$0xf]
    %v2230 = vld [vmem:[%s2227 + $0x8] sm:$0xf]
    %v2231 = vld [vmem:[%s2227 + $0xc] sm:$0xf]
    %v2232 = vpack.c.bf16 %v2226, %v2225
    %v2237 = vunpack.c.l.b16 %v2228
    %v2238 = vunpack.c.l.b16 %v2229
    %v2239 = vunpack.c.l.b16 %v2230
    %v2240 = vunpack.c.l.b16 %v2231
    %v2241 = vpack.c.b16 %v2238, %v2237
    %v2242 = vpack.c.b16 %v2240, %v2239
    %v2246 = vsel %vm607, %v2232, 0
    %2248 = vmatprep.subr.bf16.mxu0 0
    %2249 = vmatpush1.bf16.msra.mxu0 0
    %2250 = vmatprep.subr.bf16.mxu0 0
    %2251 = vmatpush1.bf16.msra.mxu0 0
    %2252 = vmatprep.subr.bf16.mxu0 0
    %2253 = vmatpush1.bf16.msra.mxu0 0
    %2254 = vmatprep.subr.bf16.mxu0 0
    %2255 = vmatpush1.bf16.msra.mxu0 0
    %2256 = vmatprep.subr.bf16.mxu0 0
    %2257 = vmatpush1.bf16.msra.mxu0 0
    %2258 = vmatprep.subr.bf16.mxu0 0
    %2259 = vmatpush1.bf16.msra.mxu0 0
    %2260 = vmatprep.subr.bf16.mxu0 0
    %2261 = vmatpush1.bf16.msra.mxu0 %v2242
    %2262 = vmatprep.subr.bf16.mxu0 0
    %2263 = vmatpush1.bf16.msra.mxu0 %v2241
    %2264 = vmatprep.subr.bf16.mxu0 0
    %2265 = vmatpush2.bf16.msra.mxu0 0
    %2266 = vmatprep.subr.bf16.mxu0 0
    %2267 = vmatpush2.bf16.msra.mxu0 0
    %2268 = vmatprep.subr.bf16.mxu0 0
    %2269 = vmatpush2.bf16.msra.mxu0 0
    %2270 = vmatprep.subr.bf16.mxu0 0
    %2271 = vmatpush2.bf16.msra.mxu0 0
    %2272 = vmatprep.subr.bf16.mxu0 0
    %2273 = vmatpush2.bf16.msra.mxu0 0
    %2274 = vmatprep.subr.bf16.mxu0 0
    %2275 = vmatpush2.bf16.msra.mxu0 0
    %2276 = vmatprep.subr.bf16.mxu0 0
    %2277 = vmatpush2.bf16.msra.mxu0 0
    %2278 = vmatprep.subr.bf16.mxu0 0
    %2279 = vmatpush2.bf16.msra.mxu0 0
    %2280 = vmatprep.mubr.bf16.mxu0 0
    %2281 = vmatmul.mubr.bf16.gmra.mxu0 %v2246
    %v2282 = vpop.f32.mrf.mxu0
    %v2283 = vadd.f32 0.0, %v2282
    %v2284 = vpop.f32.mrf.mxu0
    %v2285 = vpop.f32.mrf.mxu0
    %v2286 = vadd.f32 0.0, %v2285
    %v2287 = vpop.f32.mrf.mxu0
    %2288 = vdwg.mxu0
    %v2289 = vadd.f32 %v1612, %v2283
    %v2290 = vadd.f32 %v1613, %v2286
    %s2291 = scalar_lea.vmem %s12, 1
    %v2292 = vld [vmem:[%s2291] sm:$0x1]
    %v2294 = vlaneseq
    %v2295 = vshrl.u32 %v2294, 7
    %v2296 = vsub.s32 0, %v2295
    %v2297 = vrot.slane %v2292, %v2296
    %v2299 = vadd.f32 %v2289, %v2297
    %v2300 = vadd.f32 %v2290, %v2297
    %v2301 = vsel %vm607, %v2299, 0.0
    %2302 = vadd.xlane.f32.xlu0 %v2301
    %v2303 = vpop.xlane.xlu0 %2302
    %v2304 = vsel %vm611, %v2300, 0.0
    %2305 = vadd.xlane.f32.xlu0 %v2304
    %v2306 = vpop.xlane.xlu0 %2305
    %v2307 = vmul.f32 %v2303, %v615
    %v2308 = vmul.f32 %v2306, %v615
    %v2309 = vmul.f32 %v2299, %v2299
    %v2310 = vmul.f32 %v2300, %v2300
    %v2311 = vsel %vm607, %v2309, 0.0
    %2312 = vadd.xlane.f32.xlu0 %v2311
    %v2313 = vpop.xlane.xlu0 %2312
    %v2314 = vsel %vm611, %v2310, 0.0
    %2315 = vadd.xlane.f32.xlu0 %v2314
    %v2316 = vpop.xlane.xlu0 %2315
    %v2317 = vmul.f32 %v2313, %v615
    %v2318 = vmul.f32 %v2316, %v615
    %v2319 = vmul.f32 %v2307, %v2307
    %v2320 = vmul.f32 %v2308, %v2308
    %v2321 = vsub.f32 %v2317, %v2319
    %v2322 = vsub.f32 %v2318, %v2320
    %v2323 = vsub.f32 %v2299, %v2307
    %v2324 = vsub.f32 %v2300, %v2308
    %v2325 = vadd.f32 %v2321, 1e-05
    %v2326 = vadd.f32 %v2322, 1e-05
    %v2327 = vrsqrt.pop %v2325
    %v2328 = vrsqrt.pop %v2326
    %v2329 = vmul.f32 %v2323, %v2327
    %v2330 = vmul.f32 %v2324, %v2328
    %v2331 = vlaneseq
    %v2332 = vshrl.u32 %v2331, 7
    %v2333 = vsub.s32 2, %v2332
    %v2334 = vrot.slane %v1615, %v2333
    %v2335 = vmul.f32 %v2329, %v2334
    %v2336 = vmul.f32 %v2330, %v2334
    %v2337 = vlaneseq
    %v2338 = vshrl.u32 %v2337, 7
    %v2339 = vsub.s32 3, %v2338
    %v2340 = vrot.slane %v1615, %v2339
    %v2341 = vadd.f32 %v2335, %v2340
    %v2342 = vadd.f32 %v2336, %v2340
    %s2343 = scalar_lea.vmem %s13, 16
    %v2344 = vld [vmem:[%s2343] sm:$0xf]
    %v2345 = vld [vmem:[%s2343 + $0x4] sm:$0xf]
    %v2346 = vld [vmem:[%s2343 + $0x8] sm:$0xf]
    %v2347 = vld [vmem:[%s2343 + $0xc] sm:$0xf]
    %v2348 = vpack.c.bf16 %v2342, %v2341
    %s2349 = scalar_lea.vmem %s14, 1
    %v2350 = vld [vmem:[%s2349] sm:$0x1]
    %v2352 = vlaneseq
    %v2353 = vshrl.u32 %v2352, 7
    %v2354 = vsub.s32 0, %v2353
    %v2355 = vrot.slane %v2350, %v2354
    %v2361 = vunpack.c.l.b16 %v2344
    %v2362 = vunpack.c.l.b16 %v2345
    %v2363 = vunpack.c.l.b16 %v2346
    %v2364 = vunpack.c.l.b16 %v2347
    %v2365 = vpack.c.b16 %v2362, %v2361
    %v2366 = vpack.c.b16 %v2364, %v2363
    %v2370 = vsel %vm607, %v2348, 0
    %2372 = vmatprep.subr.bf16.mxu0 0
    %2373 = vmatpush1.bf16.msra.mxu0 0
    %2374 = vmatprep.subr.bf16.mxu0 0
    %2375 = vmatpush1.bf16.msra.mxu0 0
    %2376 = vmatprep.subr.bf16.mxu0 0
    %2377 = vmatpush1.bf16.msra.mxu0 0
    %2378 = vmatprep.subr.bf16.mxu0 0
    %2379 = vmatpush1.bf16.msra.mxu0 0
    %2380 = vmatprep.subr.bf16.mxu0 0
    %2381 = vmatpush1.bf16.msra.mxu0 0
    %2382 = vmatprep.subr.bf16.mxu0 0
    %2383 = vmatpush1.bf16.msra.mxu0 0
    %2384 = vmatprep.subr.bf16.mxu0 0
    %2385 = vmatpush1.bf16.msra.mxu0 %v2366
    %2386 = vmatprep.subr.bf16.mxu0 0
    %2387 = vmatpush1.bf16.msra.mxu0 %v2365
    %2388 = vmatprep.subr.bf16.mxu0 0
    %2389 = vmatpush2.bf16.msra.mxu0 0
    %2390 = vmatprep.subr.bf16.mxu0 0
    %2391 = vmatpush2.bf16.msra.mxu0 0
    %2392 = vmatprep.subr.bf16.mxu0 0
    %2393 = vmatpush2.bf16.msra.mxu0 0
    %2394 = vmatprep.subr.bf16.mxu0 0
    %2395 = vmatpush2.bf16.msra.mxu0 0
    %2396 = vmatprep.subr.bf16.mxu0 0
    %2397 = vmatpush2.bf16.msra.mxu0 0
    %2398 = vmatprep.subr.bf16.mxu0 0
    %2399 = vmatpush2.bf16.msra.mxu0 0
    %2400 = vmatprep.subr.bf16.mxu0 0
    %2401 = vmatpush2.bf16.msra.mxu0 0
    %2402 = vmatprep.subr.bf16.mxu0 0
    %2403 = vmatpush2.bf16.msra.mxu0 0
    %2404 = vmatprep.mubr.bf16.mxu0 0
    %2405 = vmatmul.mubr.bf16.gmra.mxu0 %v2370
    %v2406 = vpop.f32.mrf.mxu0
    %v2407 = vadd.f32 %v2355, %v2406
    %v2408 = vpop.f32.mrf.mxu0
    %v2409 = vpop.f32.mrf.mxu0
    %v2410 = vadd.f32 %v2355, %v2409
    %v2411 = vpop.f32.mrf.mxu0
    %2412 = vdwg.mxu0
    %v2413 = vmul.f32 %v2407, 1.702
    %v2414 = vmul.f32 %v2410, 1.702
    %v2415 = vxor.u32 %v2413, 2147483648
    %v2416 = vxor.u32 %v2414, 2147483648
    %v2417 = vmul.f32 %v2415, 1.442695
    %v2418 = vpow.pop %v2417
    %v2419 = vmul.f32 %v2416, 1.442695
    %v2420 = vpow.pop %v2419
    %v2421 = vadd.f32 %v2418, 1.0
    %v2422 = vadd.f32 %v2420, 1.0
    %v2423 = vrcp.pop %v2421
    %v2424 = vmul.f32 1.0, %v2423
    %v2425 = vrcp.pop %v2422
    %v2426 = vmul.f32 1.0, %v2425
    %v2427 = vmul.f32 %v2407, %v2424
    %v2428 = vmul.f32 %v2410, %v2426
    %s2429 = scalar_lea.vmem %s15, 64
    %v2430 = vld [vmem:[%s2429] sm:$0xf]
    %v2431 = vld [vmem:[%s2429 + $0x4] sm:$0xf]
    %v2432 = vld [vmem:[%s2429 + $0x8] sm:$0xf]
    %v2433 = vld [vmem:[%s2429 + $0xc] sm:$0xf]
    %v2434 = vld [vmem:[%s2429 + $0x10] sm:$0xf]
    %v2435 = vld [vmem:[%s2429 + $0x14] sm:$0xf]
    %v2436 = vld [vmem:[%s2429 + $0x18] sm:$0xf]
    %v2437 = vld [vmem:[%s2429 + $0x1c] sm:$0xf]
    %v2438 = vld [vmem:[%s2429 + $0x20] sm:$0xf]
    %v2439 = vld [vmem:[%s2429 + $0x24] sm:$0xf]
    %v2440 = vld [vmem:[%s2429 + $0x28] sm:$0xf]
    %v2441 = vld [vmem:[%s2429 + $0x2c] sm:$0xf]
    %v2442 = vld [vmem:[%s2429 + $0x30] sm:$0xf]
    %v2443 = vld [vmem:[%s2429 + $0x34] sm:$0xf]
    %v2444 = vld [vmem:[%s2429 + $0x38] sm:$0xf]
    %v2445 = vld [vmem:[%s2429 + $0x3c] sm:$0xf]
    %v2446 = vpack.c.bf16 %v2428, %v2427
    %v2463 = vunpack.c.l.b16 %v2430
    %v2464 = vunpack.c.l.b16 %v2431
    %v2465 = vunpack.c.l.b16 %v2432
    %v2466 = vunpack.c.l.b16 %v2433
    %v2467 = vunpack.c.l.b16 %v2434
    %v2468 = vunpack.c.l.b16 %v2435
    %v2469 = vunpack.c.l.b16 %v2436
    %v2470 = vunpack.c.l.b16 %v2437
    %v2471 = vunpack.c.l.b16 %v2438
    %v2472 = vunpack.c.l.b16 %v2439
    %v2473 = vunpack.c.l.b16 %v2440
    %v2474 = vunpack.c.l.b16 %v2441
    %v2475 = vunpack.c.l.b16 %v2442
    %v2476 = vunpack.c.l.b16 %v2443
    %v2477 = vunpack.c.l.b16 %v2444
    %v2478 = vunpack.c.l.b16 %v2445
    %v2479 = vpack.c.b16 %v2464, %v2463
    %v2480 = vpack.c.b16 %v2466, %v2465
    %v2481 = vpack.c.b16 %v2468, %v2467
    %v2482 = vpack.c.b16 %v2470, %v2469
    %v2483 = vpack.c.b16 %v2472, %v2471
    %v2484 = vpack.c.b16 %v2474, %v2473
    %v2485 = vpack.c.b16 %v2476, %v2475
    %v2486 = vpack.c.b16 %v2478, %v2477
    %2495 = vmatprep.subr.bf16.mxu0 0
    %2496 = vmatpush1.bf16.msra.mxu0 %v2486
    %2497 = vmatprep.subr.bf16.mxu0 0
    %2498 = vmatpush1.bf16.msra.mxu0 %v2485
    %2499 = vmatprep.subr.bf16.mxu0 0
    %2500 = vmatpush1.bf16.msra.mxu0 %v2484
    %2501 = vmatprep.subr.bf16.mxu0 0
    %2502 = vmatpush1.bf16.msra.mxu0 %v2483
    %2503 = vmatprep.subr.bf16.mxu0 0
    %2504 = vmatpush1.bf16.msra.mxu0 %v2482
    %2505 = vmatprep.subr.bf16.mxu0 0
    %2506 = vmatpush1.bf16.msra.mxu0 %v2481
    %2507 = vmatprep.subr.bf16.mxu0 0
    %2508 = vmatpush1.bf16.msra.mxu0 %v2480
    %2509 = vmatprep.subr.bf16.mxu0 0
    %2510 = vmatpush1.bf16.msra.mxu0 %v2479
    %2511 = vmatprep.subr.bf16.mxu0 0
    %2512 = vmatpush2.bf16.msra.mxu0 0
    %2513 = vmatprep.subr.bf16.mxu0 0
    %2514 = vmatpush2.bf16.msra.mxu0 0
    %2515 = vmatprep.subr.bf16.mxu0 0
    %2516 = vmatpush2.bf16.msra.mxu0 0
    %2517 = vmatprep.subr.bf16.mxu0 0
    %2518 = vmatpush2.bf16.msra.mxu0 0
    %2519 = vmatprep.subr.bf16.mxu0 0
    %2520 = vmatpush2.bf16.msra.mxu0 0
    %2521 = vmatprep.subr.bf16.mxu0 0
    %2522 = vmatpush2.bf16.msra.mxu0 0
    %2523 = vmatprep.subr.bf16.mxu0 0
    %2524 = vmatpush2.bf16.msra.mxu0 0
    %2525 = vmatprep.subr.bf16.mxu0 0
    %2526 = vmatpush2.bf16.msra.mxu0 0
    %2527 = vmatprep.mubr.bf16.mxu0 0
    %2528 = vmatmul.mubr.bf16.gmra.mxu0 %v2446
    %v2529 = vpop.f32.mrf.mxu0
    %v2530 = vpop.f32.mrf.mxu0
    %v2531 = vpop.f32.mrf.mxu0
    %v2532 = vadd.f32 0.0, %v2531
    %v2533 = vpop.f32.mrf.mxu0
    %2534 = vdwg.mxu0
    %v2535 = vadd.f32 %v2300, %v2532
    %s2536 = scalar_lea.vmem %s16, 1
    %v2537 = vld [vmem:[%s2536] sm:$0x1]
    %v2539 = vlaneseq
    %v2540 = vshrl.u32 %v2539, 7
    %v2541 = vsub.s32 0, %v2540
    %v2542 = vrot.slane %v2537, %v2541
    %v2544 = vadd.f32 %v2535, %v2542
    %v2545 = vld [vmem:[%s6] sm:$0x1]
    %v2546 = vld [vmem:[%s6 + $0x1] sm:$0x1]
    %v2547 = vsel %vm611, %v2544, 0.0
    %2548 = vadd.xlane.f32.xlu0 %v2547
    %v2549 = vpop.xlane.xlu0 %2548
    %v2550 = vmul.f32 %v2549, %v615
    %v2551 = vmul.f32 %v2544, %v2544
    %v2552 = vsel %vm611, %v2551, 0.0
    %2553 = vadd.xlane.f32.xlu0 %v2552
    %v2554 = vpop.xlane.xlu0 %2553
    %v2555 = vmul.f32 %v2554, %v615
    %v2556 = vmul.f32 %v2550, %v2550
    %v2557 = vsub.f32 %v2555, %v2556
    %v2558 = vsub.f32 %v2544, %v2550
    %v2559 = vadd.f32 %v2557, 1e-05
    %v2560 = vrsqrt.pop %v2559
    %v2561 = vmul.f32 %v2558, %v2560
    %v2562 = vlaneseq
    %v2563 = vshrl.u32 %v2562, 7
    %v2564 = vsub.s32 0, %v2563
    %v2565 = vrot.slane %v2545, %v2564
    %v2566 = vmul.f32 %v2561, %v2565
    %v2567 = vlaneseq
    %v2568 = vshrl.u32 %v2567, 7
    %v2569 = vsub.s32 0, %v2568
    %v2570 = vrot.slane %v2546, %v2569
    %v2571 = vadd.f32 %v2566, %v2570
    %v2572 = vld [vmem:[%s7] sm:$0xf]
    %v2573 = vld [vmem:[%s7 + $0x4] sm:$0xf]
    %v2574 = vld [vmem:[%s7 + $0x8] sm:$0xf]
    %v2575 = vld [vmem:[%s7 + $0xc] sm:$0xf]
    %v2576 = vpack.c.bf16 %v2571, %v2571
    %v2581 = vunpack.c.l.b16 %v2572
    %v2582 = vunpack.c.l.b16 %v2573
    %v2583 = vunpack.c.l.b16 %v2574
    %v2584 = vunpack.c.l.b16 %v2575
    %v2585 = vpack.c.b16 %v2582, %v2581
    %v2586 = vpack.c.b16 %v2584, %v2583
    %v2590 = vsel %vm607, %v2576, 0
    %2592 = vmatprep.subr.bf16.mxu0 0
    %2593 = vmatpush1.bf16.msra.mxu0 0
    %2594 = vmatprep.subr.bf16.mxu0 0
    %2595 = vmatpush1.bf16.msra.mxu0 0
    %2596 = vmatprep.subr.bf16.mxu0 0
    %2597 = vmatpush1.bf16.msra.mxu0 0
    %2598 = vmatprep.subr.bf16.mxu0 0
    %2599 = vmatpush1.bf16.msra.mxu0 0
    %2600 = vmatprep.subr.bf16.mxu0 0
    %2601 = vmatpush1.bf16.msra.mxu0 0
    %2602 = vmatprep.subr.bf16.mxu0 0
    %2603 = vmatpush1.bf16.msra.mxu0 0
    %2604 = vmatprep.subr.bf16.mxu0 0
    %2605 = vmatpush1.bf16.msra.mxu0 %v2586
    %2606 = vmatprep.subr.bf16.mxu0 0
    %2607 = vmatpush1.bf16.msra.mxu0 %v2585
    %2608 = vmatprep.subr.bf16.mxu0 0
    %2609 = vmatpush2.bf16.msra.mxu0 0
    %2610 = vmatprep.subr.bf16.mxu0 0
    %2611 = vmatpush2.bf16.msra.mxu0 0
    %2612 = vmatprep.subr.bf16.mxu0 0
    %2613 = vmatpush2.bf16.msra.mxu0 0
    %2614 = vmatprep.subr.bf16.mxu0 0
    %2615 = vmatpush2.bf16.msra.mxu0 0
    %2616 = vmatprep.subr.bf16.mxu0 0
    %2617 = vmatpush2.bf16.msra.mxu0 0
    %2618 = vmatprep.subr.bf16.mxu0 0
    %2619 = vmatpush2.bf16.msra.mxu0 0
    %2620 = vmatprep.subr.bf16.mxu0 0
    %2621 = vmatpush2.bf16.msra.mxu0 0
    %2622 = vmatprep.subr.bf16.mxu0 0
    %2623 = vmatpush2.bf16.msra.mxu0 0
    %2624 = vmatprep.mubr.bf16.mxu0 0
    %2625 = vmatmul.mubr.bf16.gmra.mxu0 %v2590
    %v2626 = vpop.f32.mrf.mxu0
    %v2627 = vadd.f32 0.0, %v2626
    %v2628 = vpop.f32.mrf.mxu0
    %v2629 = vpop.f32.mrf.mxu0
    %v2630 = vpop.f32.mrf.mxu0
    %2631 = vdwg.mxu0
    %vm2632 = vcmask 123904
    %2633 = vst.msk [vmem:[#allocation2] sm:$0x3] %vm2632, %v2627
    // Predicated region
    $region70: #{encode_image.1} parent=1 // pred_check
      _
    $region71: #{encode_image.1} parent=1 // pred_check_branch
      %2635 = sbr.rel (0) target = $region73
    $region72: #{encode_image.1} parent=1 // pred_region
      %s2637 = ssub.s32 32, 32
      %2638 = vsyncadd [#allocation3], %s2637
      %s2640 = sshll.u32 [#allocation2], 4
      %s2641 = int_to_ptr.vmem [resolvable:$true] %s2640
      %2643 = dma.vmem_to_hbm [thread:$0]  %s2641, 32, %s17, [#allocation3]
    $region73: #{encode_image.1} parent=1 // pred_fallthru
      _
    // Predicated region
    $region74: #{encode_image.1} parent=1 // pred_check
      _
    $region75: #{encode_image.1} parent=1 // pred_check_branch
      %2645 = sbr.rel (0) target = $region77
    $region76: #{encode_image.1} parent=1 // pred_region
      %2646 = dma.done [#allocation3], 32
    $region77: #{encode_image.1} parent=1 // pred_fallthru
      _
    %2647 = vsyncpa [#allocation3], 1

</llo_original>
